<compile_context>
chip_gen: v6e
topology: v6e:2x2x1
jax: 0.10.0
libtpu: 0.0.40
codegen_flags: <defaults>
</compile_context>

<pallas_src>
import functools

import jax
import jax.numpy as jnp
from jax import lax
from jax.experimental import pallas as pl
from jax.experimental.pallas import tpu as pltpu

NEG_INF = -1e30


def _mm(x, w):
    """MXU matmul: bf16 operands, f32 accumulation."""
    return jnp.dot(x.astype(jnp.bfloat16), w.astype(jnp.bfloat16),
                   preferred_element_type=jnp.float32)


# -----------------------------------------------------------------------------
# fused forward kernel
#   grid = (n_obj,):  step i   -> encode + max-pool object i into pooled scratch
#                     step N-1 -> vis_emb_fc, 3x EdgeConv, gather, graph match
# -----------------------------------------------------------------------------
def fused_kernel(
    # scalar-prefetch (SMEM)
    batch_smem, filt_smem,
    # data (VMEM)
    pts_ref, obb_ref, bcol_ref, center_ref,
    # weights (VMEM, resident)
    w_enc_ref, b_enc_ref,
    w1_ref, b1_ref, ln_g_ref, ln_b_ref, w2_ref, b2_ref,
    g1_wav_ref, g1_wao_ref, g1_wbv_ref, g1_wbo_ref, g1_b_ref,
    g2_wav_ref, g2_wao_ref, g2_wbv_ref, g2_wbo_ref, g2_b_ref,
    g3_wav_ref, g3_wao_ref, g3_wbv_ref, g3_wbo_ref, g3_b_ref,
    w_gm_ref,
    # output
    out_ref,
    # scratch
    pooled_scr, row_scr, gf_scr,
    *, n_obj, n_match):
    i = pl.program_id(0)

    # ---- stage A (every grid step): encode + global max-pool object i -------
    pts = pts_ref[0]                                        # (P, Fin)
    h = _mm(pts, w_enc_ref[...]) + b_enc_ref[...]           # (P, V)
    # ReLU deferred to stage B (ReLU/max commute): saves the (P, V) elementwise
    pooled_scr[pl.ds(i, 1), :] = jnp.max(h, axis=0, keepdims=True)

    # ---- stage B (last grid step only): rest of the forward ------------------
    @pl.when(i == n_obj - 1)
    def _():
        pooled = jnp.maximum(pooled_scr[...], 0.0)          # (N, V)  pooled+ReLU
        obb = obb_ref[...]                                  # (N, 3 + C)
        bcol = bcol_ref[...]                                # (N, 1) int32

        # vis_emb_fc: Linear -> LayerNorm -> ReLU -> Linear
        hh = _mm(pooled, w1_ref[...]) + b1_ref[...]
        mu = jnp.mean(hh, axis=-1, keepdims=True)
        var = jnp.mean((hh - mu) * (hh - mu), axis=-1, keepdims=True)
        hh = (hh - mu) * lax.rsqrt(var + 1e-5) * ln_g_ref[...] + ln_b_ref[...]
        hh = jnp.maximum(hh, 0.0)
        vis = _mm(hh, w2_ref[...]) + b2_ref[...]            # (N, H)

        def edge_conv(x, wav, wao, wbv, wbo, b):
            # edge(i,j) = ReLU(Wa [x_i;obb_i] + Wb([x_j;obb_j] - [x_i;obb_i]) + b)
            # weight-split matmuls; bias + (-Wb x_i) folded into 'a_minus'
            a = _mm(x, wav) + _mm(obb, wao) + b             # (N, H)
            bb = _mm(x, wbv) + _mm(obb, wbo)                # (N, H)
            row_scr[...] = bb                               # rows read dynamically
            a_minus = a - bb                                # a_i + b - Wb x_i

            def body(j, acc):
                bb_j = row_scr[pl.ds(j, 1), :]              # (1, H)
                e = jnp.maximum(a_minus + bb_j, 0.0)        # (N, H)
                same = bcol == batch_smem[j]                # (N, 1) same-scene mask
                return jnp.maximum(acc, jnp.where(same, e, NEG_INF))

            acc0 = jnp.full((n_obj, a.shape[-1]), NEG_INF, jnp.float32)
            # self-edge (j == i) is always in-batch, so the max is never NEG_INF
            return lax.fori_loop(0, n_obj, body, acc0, unroll=True)

        g1 = jnp.maximum(edge_conv(vis, g1_wav_ref[...], g1_wao_ref[...],
                                   g1_wbv_ref[...], g1_wbo_ref[...],
                                   g1_b_ref[...]), 0.0)
        g2 = jnp.maximum(edge_conv(g1, g2_wav_ref[...], g2_wao_ref[...],
                                   g2_wbv_ref[...], g2_wbo_ref[...],
                                   g2_b_ref[...]), 0.0)
        # gcn3 ('part' mode): no ReLU before the matcher, matching the reference
        g3 = edge_conv(g2, g3_wav_ref[...], g3_wao_ref[...],
                       g3_wbv_ref[...], g3_wbo_ref[...], g3_b_ref[...])

        # gather filtered candidates (indices from SMEM) + bilinear graph match
        row_scr[...] = g3
        for m in range(n_match):
            gf_scr[pl.ds(m, 1), :] = row_scr[pl.ds(filt_smem[m], 1), :]
        gf = gf_scr[...]                                    # (M, H)
        proj = _mm(gf, w_gm_ref[...])                       # (M, H)
        out_ref[...] = jnp.sum(proj * center_ref[...], axis=-1, keepdims=True)


# -----------------------------------------------------------------------------
# wrapper: GraphMatchModule.forward (gcd path) on pre-filtered candidates
# -----------------------------------------------------------------------------
def graph_match_forward(params, point_clouds, obb_feats, batch_index,
                        filtered_index, center_node_attr):
    n_obj, n_pts, fin = point_clouds.shape
    v_dim = params["w_enc"].shape[1]
    h_dim = params["w1"].shape[1]
    n_match = filtered_index.shape[0]

    batch_index = batch_index.astype(jnp.int32)
    filtered_index = filtered_index.astype(jnp.int32)
    batch_col = batch_index.reshape(n_obj, 1)               # vectorised batch-id compare

    weight_keys = [
        "w_enc", "b_enc",
        "w1", "b1", "ln_g", "ln_b", "w2", "b2",
        "g1_wa_v", "g1_wa_o", "g1_wb_v", "g1_wb_o", "g1_b",
        "g2_wa_v", "g2_wa_o", "g2_wb_v", "g2_wb_o", "g2_b",
        "g3_wa_v", "g3_wa_o", "g3_wb_v", "g3_wb_o", "g3_b",
        "w_gm",
    ]
    weights = [params[k] for k in weight_keys]

    def const_spec(a):
        nd = a.ndim
        return pl.BlockSpec(a.shape, lambda i, *_: (0,) * nd)   # resident, one DMA

    pts_spec = pl.BlockSpec((1, n_pts, fin), lambda i, *_: (i, 0, 0))
    in_specs = ([pts_spec, const_spec(obb_feats), const_spec(batch_col),
                 const_spec(center_node_attr)]
                + [const_spec(w) for w in weights])

    grid_spec = pltpu.PrefetchScalarGridSpec(
        num_scalar_prefetch=2,                               # batch_index, filtered_index
        grid=(n_obj,),
        in_specs=in_specs,
        out_specs=pl.BlockSpec((n_match, 1), lambda i, *_: (0, 0)),
        scratch_shapes=[
            pltpu.VMEM((n_obj, v_dim), jnp.float32),         # pooled features
            pltpu.VMEM((n_obj, h_dim), jnp.float32),         # bb rows / g3 for gather
            pltpu.VMEM((n_match, h_dim), jnp.float32),       # gathered candidates
        ])

    kernel = functools.partial(fused_kernel, n_obj=n_obj, n_match=n_match)
    scores = pl.pallas_call(
        kernel,
        out_shape=jax.ShapeDtypeStruct((n_match, 1), jnp.float32),
        grid_spec=grid_spec,
        compiler_params=pltpu.CompilerParams(
            # scratch carried across the object axis -> must be "arbitrary"
            dimension_semantics=("arbitrary",),
            vmem_limit_bytes=32 * 1024 * 1024),
    )(batch_index, filtered_index,
      point_clouds, obb_feats, batch_col, center_node_attr, *weights)
    return scores[:, 0]                                      # relation_scores (M,)


# -----------------------------------------------------------------------------
# pure-JAX reference (same bf16-matmul / f32-accumulate numerics) for checking
# -----------------------------------------------------------------------------
def reference_forward(params, point_clouds, obb_feats, batch_index,
                      filtered_index, center_node_attr):
    n_obj, n_pts, fin = point_clouds.shape
    h = _mm(point_clouds.reshape(n_obj * n_pts, fin), params["w_enc"]) + params["b_enc"]
    h = h.reshape(n_obj, n_pts, -1)
    pooled = jnp.maximum(jnp.max(h, axis=1), 0.0)            # (N, V)

    hh = _mm(pooled, params["w1"]) + params["b1"]
    mu = jnp.mean(hh, axis=-1, keepdims=True)
    var = jnp.mean((hh - mu) ** 2, axis=-1, keepdims=True)
    hh = (hh - mu) * lax.rsqrt(var + 1e-5) * params["ln_g"] + params["ln_b"]
    hh = jnp.maximum(hh, 0.0)
    vis = _mm(hh, params["w2"]) + params["b2"]               # (N, H)

    same = batch_index[:, None] == batch_index[None, :]      # (N, N)

    def edge_conv(x, wav, wao, wbv, wbo, b):
        a = _mm(x, wav) + _mm(obb_feats, wao) + b
        bb = _mm(x, wbv) + _mm(obb_feats, wbo)
        e = jnp.maximum(a[:, None, :] - bb[:, None, :] + bb[None, :, :], 0.0)
        e = jnp.where(same[:, :, None], e, NEG_INF)
        return jnp.max(e, axis=1)

    g1 = jnp.maximum(edge_conv(vis, params["g1_wa_v"], params["g1_wa_o"],
                               params["g1_wb_v"], params["g1_wb_o"], params["g1_b"]), 0.0)
    g2 = jnp.maximum(edge_conv(g1, params["g2_wa_v"], params["g2_wa_o"],
                               params["g2_wb_v"], params["g2_wb_o"], params["g2_b"]), 0.0)
    g3 = edge_conv(g2, params["g3_wa_v"], params["g3_wa_o"],
                   params["g3_wb_v"], params["g3_wb_o"], params["g3_b"])
    gf = g3[filtered_index]
    proj = _mm(gf, params["w_gm"])
    return jnp.sum(proj * center_node_attr, axis=-1)


# -----------------------------------------------------------------------------
# deterministic parameter init (matmul weights bf16, biases / LN params f32)
# -----------------------------------------------------------------------------
def init_params(key, fin, v_dim, h_dim, num_classes):
    d_obb = 3 + num_classes
    ks = jax.random.split(key, 16)

    def w(k, shape, scale=0.1):
        return (scale * jax.random.normal(k, shape)).astype(jnp.bfloat16)

    def zeros(shape):
        return jnp.zeros(shape, jnp.float32)

    return {
        "w_enc": w(ks[0], (fin, v_dim)),
        "b_enc": zeros((1, v_dim)),
        "w1": w(ks[1], (v_dim, h_dim)),
        "b1": zeros((1, h_dim)),
        "ln_g": jnp.ones((1, h_dim), jnp.float32),
        "ln_b": zeros((1, h_dim)),
        "w2": w(ks[2], (h_dim, h_dim)),
        "b2": zeros((1, h_dim)),
        # EdgeConv weights, split into [visual | obb] halves (same linear map
        # as the concatenated (h_dim+3+C, h_dim) weight of the reference).
        "g1_wa_v": w(ks[3], (h_dim, h_dim)), "g1_wa_o": w(ks[4], (d_obb, h_dim)),
        "g1_wb_v": w(ks[5], (h_dim, h_dim)), "g1_wb_o": w(ks[6], (d_obb, h_dim)),
        "g1_b": zeros((1, h_dim)),
        "g2_wa_v": w(ks[7], (h_dim, h_dim)), "g2_wa_o": w(ks[8], (d_obb, h_dim)),
        "g2_wb_v": w(ks[9], (h_dim, h_dim)), "g2_wb_o": w(ks[10], (d_obb, h_dim)),
        "g2_b": zeros((1, h_dim)),
        "g3_wa_v": w(ks[11], (h_dim, h_dim)), "g3_wa_o": w(ks[12], (d_obb, h_dim)),
        "g3_wb_v": w(ks[13], (h_dim, h_dim)), "g3_wb_o": w(ks[14], (d_obb, h_dim)),
        "g3_b": zeros((1, h_dim)),
        "w_gm": w(ks[15], (h_dim, h_dim)),
    }


# -----------------------------------------------------------------------------
if __name__ == "__main__":
    # small synthetic shapes consistent with the module's forward
    fin = 6            # input_feature_dim (xyz + rgb)
    v_dim = 128        # args.visual_dim   (lane-aligned)
    h_dim = 128        # args.hidden_dim   (lane-aligned)
    num_classes = 4    # args.num_classes
    n_obj = 8          # total candidate objects across the batch
    n_pts = 32         # points per object (after sparse_quantize, stand-in)

    key = jax.random.PRNGKey(0)
    k_param, k_pc, k_obb, k_cls, k_center = jax.random.split(key, 5)

    params = init_params(k_param, fin, v_dim, h_dim, num_classes)

    point_clouds = jax.random.normal(k_pc, (n_obj, n_pts, fin), jnp.float32)
    obb_center = jax.random.normal(k_obb, (n_obj, 3), jnp.float32)
    inst_class = jax.random.randint(k_cls, (n_obj,), 0, num_classes)
    one_hot = jax.nn.one_hot(inst_class, num_classes, dtype=jnp.float32)
    obb_feats = jnp.concatenate([obb_center, one_hot], axis=1)        # (N, 3 + C)

    batch_index = jnp.array([0, 0, 0, 0, 1, 1, 1, 1], jnp.int32)      # 2 scenes
    filtered_index = jnp.array([1, 4, 6], jnp.int32)                  # M = 3 candidates
    center_node_attr = jax.random.normal(k_center, (3, h_dim), jnp.float32)

    scores = graph_match_forward(params, point_clouds, obb_feats,
                                 batch_index, filtered_index, center_node_attr)
    scores = jax.block_until_ready(scores)

    ref = reference_forward(params, point_clouds, obb_feats,
                            batch_index, filtered_index, center_node_attr)
    ref = jax.block_until_ready(ref)

    assert scores.shape == (3,)
    assert bool(jnp.all(jnp.isfinite(scores)))
    assert bool(jnp.allclose(scores, ref, rtol=1e-2, atol=5e-2))
    print("KERNEL_OK")
</pallas_src>

<mosaic_0001>
module attributes {stable_mosaic.version = 11 : i64} {
  func.func @fused_kernel(%arg0: i32, %arg1: memref<8xi32, #tpu.memory_space<smem>>, %arg2: memref<3xi32, #tpu.memory_space<smem>>, %arg3: memref<1x32x6xf32, #tpu.memory_space<vmem>>, %arg4: memref<8x7xf32, #tpu.memory_space<vmem>>, %arg5: memref<8x1xi32, #tpu.memory_space<vmem>>, %arg6: memref<3x128xf32, #tpu.memory_space<vmem>>, %arg7: memref<6x128xbf16, #tpu.memory_space<vmem>>, %arg8: memref<1x128xf32, #tpu.memory_space<vmem>>, %arg9: memref<128x128xbf16, #tpu.memory_space<vmem>>, %arg10: memref<1x128xf32, #tpu.memory_space<vmem>>, %arg11: memref<1x128xf32, #tpu.memory_space<vmem>>, %arg12: memref<1x128xf32, #tpu.memory_space<vmem>>, %arg13: memref<128x128xbf16, #tpu.memory_space<vmem>>, %arg14: memref<1x128xf32, #tpu.memory_space<vmem>>, %arg15: memref<128x128xbf16, #tpu.memory_space<vmem>>, %arg16: memref<7x128xbf16, #tpu.memory_space<vmem>>, %arg17: memref<128x128xbf16, #tpu.memory_space<vmem>>, %arg18: memref<7x128xbf16, #tpu.memory_space<vmem>>, %arg19: memref<1x128xf32, #tpu.memory_space<vmem>>, %arg20: memref<128x128xbf16, #tpu.memory_space<vmem>>, %arg21: memref<7x128xbf16, #tpu.memory_space<vmem>>, %arg22: memref<128x128xbf16, #tpu.memory_space<vmem>>, %arg23: memref<7x128xbf16, #tpu.memory_space<vmem>>, %arg24: memref<1x128xf32, #tpu.memory_space<vmem>>, %arg25: memref<128x128xbf16, #tpu.memory_space<vmem>>, %arg26: memref<7x128xbf16, #tpu.memory_space<vmem>>, %arg27: memref<128x128xbf16, #tpu.memory_space<vmem>>, %arg28: memref<7x128xbf16, #tpu.memory_space<vmem>>, %arg29: memref<1x128xf32, #tpu.memory_space<vmem>>, %arg30: memref<128x128xbf16, #tpu.memory_space<vmem>>, %arg31: memref<3x1xf32, #tpu.memory_space<vmem>>, %arg32: memref<8x128xf32, #tpu.memory_space<vmem>>, %arg33: memref<8x128xf32, #tpu.memory_space<vmem>>, %arg34: memref<3x128xf32, #tpu.memory_space<vmem>>) attributes {dimension_semantics = [#tpu.dimension_semantics<arbitrary>], iteration_bounds = array<i64: 8>, scalar_prefetch = 2 : i64, scratch_operands = 3 : i64, tpu.core_type = #tpu.core_type<tc>, window_params = [{transform_indices = @transform_0, window_bounds = array<i64: 1, 32, 6>}, {pipeline_mode = #tpu.pipeline_mode<synchronous>, transform_indices = @transform_1, window_bounds = array<i64: 8, 7>}, {pipeline_mode = #tpu.pipeline_mode<synchronous>, transform_indices = @transform_2, window_bounds = array<i64: 8, 1>}, {pipeline_mode = #tpu.pipeline_mode<synchronous>, transform_indices = @transform_3, window_bounds = array<i64: 3, 128>}, {pipeline_mode = #tpu.pipeline_mode<synchronous>, transform_indices = @transform_4, window_bounds = array<i64: 6, 128>}, {pipeline_mode = #tpu.pipeline_mode<synchronous>, transform_indices = @transform_5, window_bounds = array<i64: 1, 128>}, {pipeline_mode = #tpu.pipeline_mode<synchronous>, transform_indices = @transform_6, window_bounds = array<i64: 128, 128>}, {pipeline_mode = #tpu.pipeline_mode<synchronous>, transform_indices = @transform_7, window_bounds = array<i64: 1, 128>}, {pipeline_mode = #tpu.pipeline_mode<synchronous>, transform_indices = @transform_8, window_bounds = array<i64: 1, 128>}, {pipeline_mode = #tpu.pipeline_mode<synchronous>, transform_indices = @transform_9, window_bounds = array<i64: 1, 128>}, {pipeline_mode = #tpu.pipeline_mode<synchronous>, transform_indices = @transform_10, window_bounds = array<i64: 128, 128>}, {pipeline_mode = #tpu.pipeline_mode<synchronous>, transform_indices = @transform_11, window_bounds = array<i64: 1, 128>}, {pipeline_mode = #tpu.pipeline_mode<synchronous>, transform_indices = @transform_12, window_bounds = array<i64: 128, 128>}, {pipeline_mode = #tpu.pipeline_mode<synchronous>, transform_indices = @transform_13, window_bounds = array<i64: 7, 128>}, {pipeline_mode = #tpu.pipeline_mode<synchronous>, transform_indices = @transform_14, window_bounds = array<i64: 128, 128>}, {pipeline_mode = #tpu.pipeline_mode<synchronous>, transform_indices = @transform_15, window_bounds = array<i64: 7, 128>}, {pipeline_mode = #tpu.pipeline_mode<synchronous>, transform_indices = @transform_16, window_bounds = array<i64: 1, 128>}, {pipeline_mode = #tpu.pipeline_mode<synchronous>, transform_indices = @transform_17, window_bounds = array<i64: 128, 128>}, {pipeline_mode = #tpu.pipeline_mode<synchronous>, transform_indices = @transform_18, window_bounds = array<i64: 7, 128>}, {pipeline_mode = #tpu.pipeline_mode<synchronous>, transform_indices = @transform_19, window_bounds = array<i64: 128, 128>}, {pipeline_mode = #tpu.pipeline_mode<synchronous>, transform_indices = @transform_20, window_bounds = array<i64: 7, 128>}, {pipeline_mode = #tpu.pipeline_mode<synchronous>, transform_indices = @transform_21, window_bounds = array<i64: 1, 128>}, {pipeline_mode = #tpu.pipeline_mode<synchronous>, transform_indices = @transform_22, window_bounds = array<i64: 128, 128>}, {pipeline_mode = #tpu.pipeline_mode<synchronous>, transform_indices = @transform_23, window_bounds = array<i64: 7, 128>}, {pipeline_mode = #tpu.pipeline_mode<synchronous>, transform_indices = @transform_24, window_bounds = array<i64: 128, 128>}, {pipeline_mode = #tpu.pipeline_mode<synchronous>, transform_indices = @transform_25, window_bounds = array<i64: 7, 128>}, {pipeline_mode = #tpu.pipeline_mode<synchronous>, transform_indices = @transform_26, window_bounds = array<i64: 1, 128>}, {pipeline_mode = #tpu.pipeline_mode<synchronous>, transform_indices = @transform_27, window_bounds = array<i64: 128, 128>}, {pipeline_mode = #tpu.pipeline_mode<synchronous>, transform_indices = @transform_28, window_bounds = array<i64: 3, 1>}]} {
    %c0 = arith.constant 0 : index
    %c0_0 = arith.constant 0 : index
    %c0_1 = arith.constant 0 : index
    %0 = vector.load %arg3[%c0, %c0_0, %c0_1] : memref<1x32x6xf32, #tpu.memory_space<vmem>>, vector<1x32x6xf32>
    %1 = vector.shape_cast %0 : vector<1x32x6xf32> to vector<32x6xf32>
    %c0_2 = arith.constant 0 : index
    %c0_3 = arith.constant 0 : index
    %2 = vector.load %arg7[%c0_2, %c0_3] : memref<6x128xbf16, #tpu.memory_space<vmem>>, vector<6x128xbf16>
    %3 = arith.truncf %1 : vector<32x6xf32> to vector<32x6xbf16>
    %cst = arith.constant dense<0.000000e+00> : vector<32x128xf32>
    %4 = tpu.matmul %3, %2, %cst {dimension_numbers = #tpu.dot_dimension_numbers<[1], [0], [0], [1], [0, 0, 1, 1], [], []>} : vector<32x6xbf16>, vector<6x128xbf16>, vector<32x128xf32> -> vector<32x128xf32>
    %c0_4 = arith.constant 0 : index
    %c0_5 = arith.constant 0 : index
    %5 = vector.load %arg8[%c0_4, %c0_5] : memref<1x128xf32, #tpu.memory_space<vmem>>, vector<1x128xf32>
    %6 = vector.broadcast %5 : vector<1x128xf32> to vector<32x128xf32>
    %7 = arith.addf %4, %6 : vector<32x128xf32>
    %cst_6 = arith.constant dense<0xFF800000> : vector<128xf32>
    %8 = vector.multi_reduction <maximumf>, %7, %cst_6 [0] : vector<32x128xf32> to vector<128xf32>
    %9 = vector.shape_cast %8 : vector<128xf32> to vector<1x128xf32>
    %10 = arith.index_cast %arg0 : i32 to index
    %c0_7 = arith.constant 0 : index
    %11 = vector.load %arg32[%10, %c0_7] : memref<8x128xf32, #tpu.memory_space<vmem>>, vector<1x128xf32>
    tpu.vector_store %arg32[%10, %c0_7], %9 {strides = array<i32>} : memref<8x128xf32, #tpu.memory_space<vmem>>, vector<1x128xf32>,
    %c7_i32 = arith.constant 7 : i32
    %12 = arith.cmpi eq, %arg0, %c7_i32 : i32
    %13 = arith.extui %12 : i1 to i32
    %c0_i32 = arith.constant 0 : i32
    %14 = arith.cmpi ne, %13, %c0_i32 : i32
    scf.if %14 {
      %c0_8 = arith.constant 0 : index
      %c0_9 = arith.constant 0 : index
      %15 = vector.load %arg32[%c0_8, %c0_9] : memref<8x128xf32, #tpu.memory_space<vmem>>, vector<8x128xf32>
      %cst_10 = arith.constant 0.000000e+00 : f32
      %16 = vector.broadcast %cst_10 : f32 to vector<8x128xf32>
      %17 = arith.maximumf %15, %16 : vector<8x128xf32>
      %c0_11 = arith.constant 0 : index
      %c0_12 = arith.constant 0 : index
      %18 = vector.load %arg4[%c0_11, %c0_12] : memref<8x7xf32, #tpu.memory_space<vmem>>, vector<8x7xf32>
      %c0_13 = arith.constant 0 : index
      %c0_14 = arith.constant 0 : index
      %19 = vector.load %arg5[%c0_13, %c0_14] : memref<8x1xi32, #tpu.memory_space<vmem>>, vector<8x1xi32>
      %c0_15 = arith.constant 0 : index
      %c0_16 = arith.constant 0 : index
      %20 = vector.load %arg9[%c0_15, %c0_16] : memref<128x128xbf16, #tpu.memory_space<vmem>>, vector<128x128xbf16>
      %21 = arith.truncf %17 : vector<8x128xf32> to vector<8x128xbf16>
      %cst_17 = arith.constant dense<0.000000e+00> : vector<8x128xf32>
      %22 = tpu.matmul %21, %20, %cst_17 {dimension_numbers = #tpu.dot_dimension_numbers<[1], [0], [0], [1], [0, 0, 1, 1], [], []>} : vector<8x128xbf16>, vector<128x128xbf16>, vector<8x128xf32> -> vector<8x128xf32>
      %c0_18 = arith.constant 0 : index
      %c0_19 = arith.constant 0 : index
      %23 = vector.load %arg10[%c0_18, %c0_19] : memref<1x128xf32, #tpu.memory_space<vmem>>, vector<1x128xf32>
      %24 = vector.broadcast %23 : vector<1x128xf32> to vector<8x128xf32>
      %25 = arith.addf %22, %24 : vector<8x128xf32>
      %cst_20 = arith.constant dense<0.000000e+00> : vector<8xf32>
      %26 = vector.multi_reduction <add>, %25, %cst_20 [1] : vector<8x128xf32> to vector<8xf32>
      %27 = vector.shape_cast %26 : vector<8xf32> to vector<8x1xf32>
      %cst_21 = arith.constant 1.280000e+02 : f32
      %28 = vector.broadcast %cst_21 : f32 to vector<8x1xf32>
      %29 = arith.divf %27, %28 : vector<8x1xf32>
      %30 = vector.broadcast %29 : vector<8x1xf32> to vector<8x128xf32>
      %31 = arith.subf %25, %30 : vector<8x128xf32>
      %32 = vector.broadcast %29 : vector<8x1xf32> to vector<8x128xf32>
      %33 = arith.subf %25, %32 : vector<8x128xf32>
      %34 = arith.mulf %31, %33 : vector<8x128xf32>
      %cst_22 = arith.constant dense<0.000000e+00> : vector<8xf32>
      %35 = vector.multi_reduction <add>, %34, %cst_22 [1] : vector<8x128xf32> to vector<8xf32>
      %36 = vector.shape_cast %35 : vector<8xf32> to vector<8x1xf32>
      %cst_23 = arith.constant 1.280000e+02 : f32
      %37 = vector.broadcast %cst_23 : f32 to vector<8x1xf32>
      %38 = arith.divf %36, %37 : vector<8x1xf32>
      %39 = vector.broadcast %29 : vector<8x1xf32> to vector<8x128xf32>
      %40 = arith.subf %25, %39 : vector<8x128xf32>
      %cst_24 = arith.constant 9.99999974E-6 : f32
      %41 = vector.broadcast %cst_24 : f32 to vector<8x1xf32>
      %42 = arith.addf %38, %41 : vector<8x1xf32>
      %43 = math.rsqrt %42 : vector<8x1xf32>
      %44 = vector.broadcast %43 : vector<8x1xf32> to vector<8x128xf32>
      %45 = arith.mulf %40, %44 : vector<8x128xf32>
      %c0_25 = arith.constant 0 : index
      %c0_26 = arith.constant 0 : index
      %46 = vector.load %arg11[%c0_25, %c0_26] : memref<1x128xf32, #tpu.memory_space<vmem>>, vector<1x128xf32>
      %47 = vector.broadcast %46 : vector<1x128xf32> to vector<8x128xf32>
      %48 = arith.mulf %45, %47 : vector<8x128xf32>
      %c0_27 = arith.constant 0 : index
      %c0_28 = arith.constant 0 : index
      %49 = vector.load %arg12[%c0_27, %c0_28] : memref<1x128xf32, #tpu.memory_space<vmem>>, vector<1x128xf32>
      %50 = vector.broadcast %49 : vector<1x128xf32> to vector<8x128xf32>
      %51 = arith.addf %48, %50 : vector<8x128xf32>
      %cst_29 = arith.constant 0.000000e+00 : f32
      %52 = vector.broadcast %cst_29 : f32 to vector<8x128xf32>
      %53 = arith.maximumf %51, %52 : vector<8x128xf32>
      %c0_30 = arith.constant 0 : index
      %c0_31 = arith.constant 0 : index
      %54 = vector.load %arg13[%c0_30, %c0_31] : memref<128x128xbf16, #tpu.memory_space<vmem>>, vector<128x128xbf16>
      %55 = arith.truncf %53 : vector<8x128xf32> to vector<8x128xbf16>
      %cst_32 = arith.constant dense<0.000000e+00> : vector<8x128xf32>
      %56 = tpu.matmul %55, %54, %cst_32 {dimension_numbers = #tpu.dot_dimension_numbers<[1], [0], [0], [1], [0, 0, 1, 1], [], []>} : vector<8x128xbf16>, vector<128x128xbf16>, vector<8x128xf32> -> vector<8x128xf32>
      %c0_33 = arith.constant 0 : index
      %c0_34 = arith.constant 0 : index
      %57 = vector.load %arg14[%c0_33, %c0_34] : memref<1x128xf32, #tpu.memory_space<vmem>>, vector<1x128xf32>
      %58 = vector.broadcast %57 : vector<1x128xf32> to vector<8x128xf32>
      %59 = arith.addf %56, %58 : vector<8x128xf32>
      %c0_35 = arith.constant 0 : index
      %c0_36 = arith.constant 0 : index
      %60 = vector.load %arg15[%c0_35, %c0_36] : memref<128x128xbf16, #tpu.memory_space<vmem>>, vector<128x128xbf16>
      %c0_37 = arith.constant 0 : index
      %c0_38 = arith.constant 0 : index
      %61 = vector.load %arg16[%c0_37, %c0_38] : memref<7x128xbf16, #tpu.memory_space<vmem>>, vector<7x128xbf16>
      %c0_39 = arith.constant 0 : index
      %c0_40 = arith.constant 0 : index
      %62 = vector.load %arg17[%c0_39, %c0_40] : memref<128x128xbf16, #tpu.memory_space<vmem>>, vector<128x128xbf16>
      %c0_41 = arith.constant 0 : index
      %c0_42 = arith.constant 0 : index
      %63 = vector.load %arg18[%c0_41, %c0_42] : memref<7x128xbf16, #tpu.memory_space<vmem>>, vector<7x128xbf16>
      %c0_43 = arith.constant 0 : index
      %c0_44 = arith.constant 0 : index
      %64 = vector.load %arg19[%c0_43, %c0_44] : memref<1x128xf32, #tpu.memory_space<vmem>>, vector<1x128xf32>
      %65 = arith.truncf %59 : vector<8x128xf32> to vector<8x128xbf16>
      %cst_45 = arith.constant dense<0.000000e+00> : vector<8x128xf32>
      %66 = tpu.matmul %65, %60, %cst_45 {dimension_numbers = #tpu.dot_dimension_numbers<[1], [0], [0], [1], [0, 0, 1, 1], [], []>} : vector<8x128xbf16>, vector<128x128xbf16>, vector<8x128xf32> -> vector<8x128xf32>
      %67 = arith.truncf %18 : vector<8x7xf32> to vector<8x7xbf16>
      %cst_46 = arith.constant dense<0.000000e+00> : vector<8x128xf32>
      %68 = tpu.matmul %67, %61, %cst_46 {dimension_numbers = #tpu.dot_dimension_numbers<[1], [0], [0], [1], [0, 0, 1, 1], [], []>} : vector<8x7xbf16>, vector<7x128xbf16>, vector<8x128xf32> -> vector<8x128xf32>
      %69 = arith.addf %66, %68 : vector<8x128xf32>
      %70 = vector.broadcast %64 : vector<1x128xf32> to vector<8x128xf32>
      %71 = arith.addf %69, %70 : vector<8x128xf32>
      %72 = arith.truncf %59 : vector<8x128xf32> to vector<8x128xbf16>
      %cst_47 = arith.constant dense<0.000000e+00> : vector<8x128xf32>
      %73 = tpu.matmul %72, %62, %cst_47 {dimension_numbers = #tpu.dot_dimension_numbers<[1], [0], [0], [1], [0, 0, 1, 1], [], []>} : vector<8x128xbf16>, vector<128x128xbf16>, vector<8x128xf32> -> vector<8x128xf32>
      %74 = arith.truncf %18 : vector<8x7xf32> to vector<8x7xbf16>
      %cst_48 = arith.constant dense<0.000000e+00> : vector<8x128xf32>
      %75 = tpu.matmul %74, %63, %cst_48 {dimension_numbers = #tpu.dot_dimension_numbers<[1], [0], [0], [1], [0, 0, 1, 1], [], []>} : vector<8x7xbf16>, vector<7x128xbf16>, vector<8x128xf32> -> vector<8x128xf32>
      %76 = arith.addf %73, %75 : vector<8x128xf32>
      %c0_49 = arith.constant 0 : index
      %c0_50 = arith.constant 0 : index
      %77 = vector.load %arg33[%c0_49, %c0_50] : memref<8x128xf32, #tpu.memory_space<vmem>>, vector<8x128xf32>
      tpu.vector_store %arg33[%c0_49, %c0_50], %76 {strides = array<i32>} : memref<8x128xf32, #tpu.memory_space<vmem>>, vector<8x128xf32>,
      %78 = arith.subf %71, %76 : vector<8x128xf32>
      %cst_51 = arith.constant -1.000000e+30 : f32
      %79 = vector.broadcast %cst_51 : f32 to vector<8x128xf32>
      %c0_i32_52 = arith.constant 0 : i32
      %80 = arith.index_cast %c0_i32_52 : i32 to index
      %c0_53 = arith.constant 0 : index
      %81 = vector.load %arg33[%80, %c0_53] : memref<8x128xf32, #tpu.memory_space<vmem>>, vector<1x128xf32>
      %82 = vector.broadcast %81 : vector<1x128xf32> to vector<8x128xf32>
      %83 = arith.addf %78, %82 : vector<8x128xf32>
      %cst_54 = arith.constant 0.000000e+00 : f32
      %84 = vector.broadcast %cst_54 : f32 to vector<8x128xf32>
      %85 = arith.maximumf %83, %84 : vector<8x128xf32>
      %86 = arith.index_cast %c0_i32_52 : i32 to index
      %87 = memref.load %arg1[%86] : memref<8xi32, #tpu.memory_space<smem>>
      %88 = vector.broadcast %87 : i32 to vector<8x1xi32>
      %89 = arith.cmpi eq, %19, %88 : vector<8x1xi32>
      %cst_55 = arith.constant -1.000000e+30 : f32
      %90 = vector.shape_cast %89 : vector<8x1xi1> to vector<8x1xi1>
      %91 = vector.broadcast %90 : vector<8x1xi1> to vector<8x128xi1>
      %92 = vector.broadcast %cst_55 : f32 to vector<8x128xf32>
      %93 = arith.select %91, %85, %92 : vector<8x128xi1>, vector<8x128xf32>
      %94 = arith.maximumf %79, %93 : vector<8x128xf32>
      %c1_i32 = arith.constant 1 : i32
      %95 = arith.index_cast %c1_i32 : i32 to index
      %c0_56 = arith.constant 0 : index
      %96 = vector.load %arg33[%95, %c0_56] : memref<8x128xf32, #tpu.memory_space<vmem>>, vector<1x128xf32>
      %97 = vector.broadcast %96 : vector<1x128xf32> to vector<8x128xf32>
      %98 = arith.addf %78, %97 : vector<8x128xf32>
      %cst_57 = arith.constant 0.000000e+00 : f32
      %99 = vector.broadcast %cst_57 : f32 to vector<8x128xf32>
      %100 = arith.maximumf %98, %99 : vector<8x128xf32>
      %101 = arith.index_cast %c1_i32 : i32 to index
      %102 = memref.load %arg1[%101] : memref<8xi32, #tpu.memory_space<smem>>
      %103 = vector.broadcast %102 : i32 to vector<8x1xi32>
      %104 = arith.cmpi eq, %19, %103 : vector<8x1xi32>
      %cst_58 = arith.constant -1.000000e+30 : f32
      %105 = vector.shape_cast %104 : vector<8x1xi1> to vector<8x1xi1>
      %106 = vector.broadcast %105 : vector<8x1xi1> to vector<8x128xi1>
      %107 = vector.broadcast %cst_58 : f32 to vector<8x128xf32>
      %108 = arith.select %106, %100, %107 : vector<8x128xi1>, vector<8x128xf32>
      %109 = arith.maximumf %94, %108 : vector<8x128xf32>
      %c2_i32 = arith.constant 2 : i32
      %110 = arith.index_cast %c2_i32 : i32 to index
      %c0_59 = arith.constant 0 : index
      %111 = vector.load %arg33[%110, %c0_59] : memref<8x128xf32, #tpu.memory_space<vmem>>, vector<1x128xf32>
      %112 = vector.broadcast %111 : vector<1x128xf32> to vector<8x128xf32>
      %113 = arith.addf %78, %112 : vector<8x128xf32>
      %cst_60 = arith.constant 0.000000e+00 : f32
      %114 = vector.broadcast %cst_60 : f32 to vector<8x128xf32>
      %115 = arith.maximumf %113, %114 : vector<8x128xf32>
      %116 = arith.index_cast %c2_i32 : i32 to index
      %117 = memref.load %arg1[%116] : memref<8xi32, #tpu.memory_space<smem>>
      %118 = vector.broadcast %117 : i32 to vector<8x1xi32>
      %119 = arith.cmpi eq, %19, %118 : vector<8x1xi32>
      %cst_61 = arith.constant -1.000000e+30 : f32
      %120 = vector.shape_cast %119 : vector<8x1xi1> to vector<8x1xi1>
      %121 = vector.broadcast %120 : vector<8x1xi1> to vector<8x128xi1>
      %122 = vector.broadcast %cst_61 : f32 to vector<8x128xf32>
      %123 = arith.select %121, %115, %122 : vector<8x128xi1>, vector<8x128xf32>
      %124 = arith.maximumf %109, %123 : vector<8x128xf32>
      %c3_i32 = arith.constant 3 : i32
      %125 = arith.index_cast %c3_i32 : i32 to index
      %c0_62 = arith.constant 0 : index
      %126 = vector.load %arg33[%125, %c0_62] : memref<8x128xf32, #tpu.memory_space<vmem>>, vector<1x128xf32>
      %127 = vector.broadcast %126 : vector<1x128xf32> to vector<8x128xf32>
      %128 = arith.addf %78, %127 : vector<8x128xf32>
      %cst_63 = arith.constant 0.000000e+00 : f32
      %129 = vector.broadcast %cst_63 : f32 to vector<8x128xf32>
      %130 = arith.maximumf %128, %129 : vector<8x128xf32>
      %131 = arith.index_cast %c3_i32 : i32 to index
      %132 = memref.load %arg1[%131] : memref<8xi32, #tpu.memory_space<smem>>
      %133 = vector.broadcast %132 : i32 to vector<8x1xi32>
      %134 = arith.cmpi eq, %19, %133 : vector<8x1xi32>
      %cst_64 = arith.constant -1.000000e+30 : f32
      %135 = vector.shape_cast %134 : vector<8x1xi1> to vector<8x1xi1>
      %136 = vector.broadcast %135 : vector<8x1xi1> to vector<8x128xi1>
      %137 = vector.broadcast %cst_64 : f32 to vector<8x128xf32>
      %138 = arith.select %136, %130, %137 : vector<8x128xi1>, vector<8x128xf32>
      %139 = arith.maximumf %124, %138 : vector<8x128xf32>
      %c4_i32 = arith.constant 4 : i32
      %140 = arith.index_cast %c4_i32 : i32 to index
      %c0_65 = arith.constant 0 : index
      %141 = vector.load %arg33[%140, %c0_65] : memref<8x128xf32, #tpu.memory_space<vmem>>, vector<1x128xf32>
      %142 = vector.broadcast %141 : vector<1x128xf32> to vector<8x128xf32>
      %143 = arith.addf %78, %142 : vector<8x128xf32>
      %cst_66 = arith.constant 0.000000e+00 : f32
      %144 = vector.broadcast %cst_66 : f32 to vector<8x128xf32>
      %145 = arith.maximumf %143, %144 : vector<8x128xf32>
      %146 = arith.index_cast %c4_i32 : i32 to index
      %147 = memref.load %arg1[%146] : memref<8xi32, #tpu.memory_space<smem>>
      %148 = vector.broadcast %147 : i32 to vector<8x1xi32>
      %149 = arith.cmpi eq, %19, %148 : vector<8x1xi32>
      %cst_67 = arith.constant -1.000000e+30 : f32
      %150 = vector.shape_cast %149 : vector<8x1xi1> to vector<8x1xi1>
      %151 = vector.broadcast %150 : vector<8x1xi1> to vector<8x128xi1>
      %152 = vector.broadcast %cst_67 : f32 to vector<8x128xf32>
      %153 = arith.select %151, %145, %152 : vector<8x128xi1>, vector<8x128xf32>
      %154 = arith.maximumf %139, %153 : vector<8x128xf32>
      %c5_i32 = arith.constant 5 : i32
      %155 = arith.index_cast %c5_i32 : i32 to index
      %c0_68 = arith.constant 0 : index
      %156 = vector.load %arg33[%155, %c0_68] : memref<8x128xf32, #tpu.memory_space<vmem>>, vector<1x128xf32>
      %157 = vector.broadcast %156 : vector<1x128xf32> to vector<8x128xf32>
      %158 = arith.addf %78, %157 : vector<8x128xf32>
      %cst_69 = arith.constant 0.000000e+00 : f32
      %159 = vector.broadcast %cst_69 : f32 to vector<8x128xf32>
      %160 = arith.maximumf %158, %159 : vector<8x128xf32>
      %161 = arith.index_cast %c5_i32 : i32 to index
      %162 = memref.load %arg1[%161] : memref<8xi32, #tpu.memory_space<smem>>
      %163 = vector.broadcast %162 : i32 to vector<8x1xi32>
      %164 = arith.cmpi eq, %19, %163 : vector<8x1xi32>
      %cst_70 = arith.constant -1.000000e+30 : f32
      %165 = vector.shape_cast %164 : vector<8x1xi1> to vector<8x1xi1>
      %166 = vector.broadcast %165 : vector<8x1xi1> to vector<8x128xi1>
      %167 = vector.broadcast %cst_70 : f32 to vector<8x128xf32>
      %168 = arith.select %166, %160, %167 : vector<8x128xi1>, vector<8x128xf32>
      %169 = arith.maximumf %154, %168 : vector<8x128xf32>
      %c6_i32 = arith.constant 6 : i32
      %170 = arith.index_cast %c6_i32 : i32 to index
      %c0_71 = arith.constant 0 : index
      %171 = vector.load %arg33[%170, %c0_71] : memref<8x128xf32, #tpu.memory_space<vmem>>, vector<1x128xf32>
      %172 = vector.broadcast %171 : vector<1x128xf32> to vector<8x128xf32>
      %173 = arith.addf %78, %172 : vector<8x128xf32>
      %cst_72 = arith.constant 0.000000e+00 : f32
      %174 = vector.broadcast %cst_72 : f32 to vector<8x128xf32>
      %175 = arith.maximumf %173, %174 : vector<8x128xf32>
      %176 = arith.index_cast %c6_i32 : i32 to index
      %177 = memref.load %arg1[%176] : memref<8xi32, #tpu.memory_space<smem>>
      %178 = vector.broadcast %177 : i32 to vector<8x1xi32>
      %179 = arith.cmpi eq, %19, %178 : vector<8x1xi32>
      %cst_73 = arith.constant -1.000000e+30 : f32
      %180 = vector.shape_cast %179 : vector<8x1xi1> to vector<8x1xi1>
      %181 = vector.broadcast %180 : vector<8x1xi1> to vector<8x128xi1>
      %182 = vector.broadcast %cst_73 : f32 to vector<8x128xf32>
      %183 = arith.select %181, %175, %182 : vector<8x128xi1>, vector<8x128xf32>
      %184 = arith.maximumf %169, %183 : vector<8x128xf32>
      %c7_i32_74 = arith.constant 7 : i32
      %185 = arith.index_cast %c7_i32_74 : i32 to index
      %c0_75 = arith.constant 0 : index
      %186 = vector.load %arg33[%185, %c0_75] : memref<8x128xf32, #tpu.memory_space<vmem>>, vector<1x128xf32>
      %187 = vector.broadcast %186 : vector<1x128xf32> to vector<8x128xf32>
      %188 = arith.addf %78, %187 : vector<8x128xf32>
      %cst_76 = arith.constant 0.000000e+00 : f32
      %189 = vector.broadcast %cst_76 : f32 to vector<8x128xf32>
      %190 = arith.maximumf %188, %189 : vector<8x128xf32>
      %191 = arith.index_cast %c7_i32_74 : i32 to index
      %192 = memref.load %arg1[%191] : memref<8xi32, #tpu.memory_space<smem>>
      %193 = vector.broadcast %192 : i32 to vector<8x1xi32>
      %194 = arith.cmpi eq, %19, %193 : vector<8x1xi32>
      %cst_77 = arith.constant -1.000000e+30 : f32
      %195 = vector.shape_cast %194 : vector<8x1xi1> to vector<8x1xi1>
      %196 = vector.broadcast %195 : vector<8x1xi1> to vector<8x128xi1>
      %197 = vector.broadcast %cst_77 : f32 to vector<8x128xf32>
      %198 = arith.select %196, %190, %197 : vector<8x128xi1>, vector<8x128xf32>
      %199 = arith.maximumf %184, %198 : vector<8x128xf32>
      %c8_i32 = arith.constant 8 : i32
      %cst_78 = arith.constant 0.000000e+00 : f32
      %200 = vector.broadcast %cst_78 : f32 to vector<8x128xf32>
      %201 = arith.maximumf %199, %200 : vector<8x128xf32>
      %c0_79 = arith.constant 0 : index
      %c0_80 = arith.constant 0 : index
      %202 = vector.load %arg20[%c0_79, %c0_80] : memref<128x128xbf16, #tpu.memory_space<vmem>>, vector<128x128xbf16>
      %c0_81 = arith.constant 0 : index
      %c0_82 = arith.constant 0 : index
      %203 = vector.load %arg21[%c0_81, %c0_82] : memref<7x128xbf16, #tpu.memory_space<vmem>>, vector<7x128xbf16>
      %c0_83 = arith.constant 0 : index
      %c0_84 = arith.constant 0 : index
      %204 = vector.load %arg22[%c0_83, %c0_84] : memref<128x128xbf16, #tpu.memory_space<vmem>>, vector<128x128xbf16>
      %c0_85 = arith.constant 0 : index
      %c0_86 = arith.constant 0 : index
      %205 = vector.load %arg23[%c0_85, %c0_86] : memref<7x128xbf16, #tpu.memory_space<vmem>>, vector<7x128xbf16>
      %c0_87 = arith.constant 0 : index
      %c0_88 = arith.constant 0 : index
      %206 = vector.load %arg24[%c0_87, %c0_88] : memref<1x128xf32, #tpu.memory_space<vmem>>, vector<1x128xf32>
      %207 = arith.truncf %201 : vector<8x128xf32> to vector<8x128xbf16>
      %cst_89 = arith.constant dense<0.000000e+00> : vector<8x128xf32>
      %208 = tpu.matmul %207, %202, %cst_89 {dimension_numbers = #tpu.dot_dimension_numbers<[1], [0], [0], [1], [0, 0, 1, 1], [], []>} : vector<8x128xbf16>, vector<128x128xbf16>, vector<8x128xf32> -> vector<8x128xf32>
      %209 = arith.truncf %18 : vector<8x7xf32> to vector<8x7xbf16>
      %cst_90 = arith.constant dense<0.000000e+00> : vector<8x128xf32>
      %210 = tpu.matmul %209, %203, %cst_90 {dimension_numbers = #tpu.dot_dimension_numbers<[1], [0], [0], [1], [0, 0, 1, 1], [], []>} : vector<8x7xbf16>, vector<7x128xbf16>, vector<8x128xf32> -> vector<8x128xf32>
      %211 = arith.addf %208, %210 : vector<8x128xf32>
      %212 = vector.broadcast %206 : vector<1x128xf32> to vector<8x128xf32>
      %213 = arith.addf %211, %212 : vector<8x128xf32>
      %214 = arith.truncf %201 : vector<8x128xf32> to vector<8x128xbf16>
      %cst_91 = arith.constant dense<0.000000e+00> : vector<8x128xf32>
      %215 = tpu.matmul %214, %204, %cst_91 {dimension_numbers = #tpu.dot_dimension_numbers<[1], [0], [0], [1], [0, 0, 1, 1], [], []>} : vector<8x128xbf16>, vector<128x128xbf16>, vector<8x128xf32> -> vector<8x128xf32>
      %216 = arith.truncf %18 : vector<8x7xf32> to vector<8x7xbf16>
      %cst_92 = arith.constant dense<0.000000e+00> : vector<8x128xf32>
      %217 = tpu.matmul %216, %205, %cst_92 {dimension_numbers = #tpu.dot_dimension_numbers<[1], [0], [0], [1], [0, 0, 1, 1], [], []>} : vector<8x7xbf16>, vector<7x128xbf16>, vector<8x128xf32> -> vector<8x128xf32>
      %218 = arith.addf %215, %217 : vector<8x128xf32>
      %c0_93 = arith.constant 0 : index
      %c0_94 = arith.constant 0 : index
      %219 = vector.load %arg33[%c0_93, %c0_94] : memref<8x128xf32, #tpu.memory_space<vmem>>, vector<8x128xf32>
      tpu.vector_store %arg33[%c0_93, %c0_94], %218 {strides = array<i32>} : memref<8x128xf32, #tpu.memory_space<vmem>>, vector<8x128xf32>,
      %220 = arith.subf %213, %218 : vector<8x128xf32>
      %cst_95 = arith.constant -1.000000e+30 : f32
      %221 = vector.broadcast %cst_95 : f32 to vector<8x128xf32>
      %c0_i32_96 = arith.constant 0 : i32
      %222 = arith.index_cast %c0_i32_96 : i32 to index
      %c0_97 = arith.constant 0 : index
      %223 = vector.load %arg33[%222, %c0_97] : memref<8x128xf32, #tpu.memory_space<vmem>>, vector<1x128xf32>
      %224 = vector.broadcast %223 : vector<1x128xf32> to vector<8x128xf32>
      %225 = arith.addf %220, %224 : vector<8x128xf32>
      %cst_98 = arith.constant 0.000000e+00 : f32
      %226 = vector.broadcast %cst_98 : f32 to vector<8x128xf32>
      %227 = arith.maximumf %225, %226 : vector<8x128xf32>
      %228 = arith.index_cast %c0_i32_96 : i32 to index
      %229 = memref.load %arg1[%228] : memref<8xi32, #tpu.memory_space<smem>>
      %230 = vector.broadcast %229 : i32 to vector<8x1xi32>
      %231 = arith.cmpi eq, %19, %230 : vector<8x1xi32>
      %cst_99 = arith.constant -1.000000e+30 : f32
      %232 = vector.shape_cast %231 : vector<8x1xi1> to vector<8x1xi1>
      %233 = vector.broadcast %232 : vector<8x1xi1> to vector<8x128xi1>
      %234 = vector.broadcast %cst_99 : f32 to vector<8x128xf32>
      %235 = arith.select %233, %227, %234 : vector<8x128xi1>, vector<8x128xf32>
      %236 = arith.maximumf %221, %235 : vector<8x128xf32>
      %c1_i32_100 = arith.constant 1 : i32
      %237 = arith.index_cast %c1_i32_100 : i32 to index
      %c0_101 = arith.constant 0 : index
      %238 = vector.load %arg33[%237, %c0_101] : memref<8x128xf32, #tpu.memory_space<vmem>>, vector<1x128xf32>
      %239 = vector.broadcast %238 : vector<1x128xf32> to vector<8x128xf32>
      %240 = arith.addf %220, %239 : vector<8x128xf32>
      %cst_102 = arith.constant 0.000000e+00 : f32
      %241 = vector.broadcast %cst_102 : f32 to vector<8x128xf32>
      %242 = arith.maximumf %240, %241 : vector<8x128xf32>
      %243 = arith.index_cast %c1_i32_100 : i32 to index
      %244 = memref.load %arg1[%243] : memref<8xi32, #tpu.memory_space<smem>>
      %245 = vector.broadcast %244 : i32 to vector<8x1xi32>
      %246 = arith.cmpi eq, %19, %245 : vector<8x1xi32>
      %cst_103 = arith.constant -1.000000e+30 : f32
      %247 = vector.shape_cast %246 : vector<8x1xi1> to vector<8x1xi1>
      %248 = vector.broadcast %247 : vector<8x1xi1> to vector<8x128xi1>
      %249 = vector.broadcast %cst_103 : f32 to vector<8x128xf32>
      %250 = arith.select %248, %242, %249 : vector<8x128xi1>, vector<8x128xf32>
      %251 = arith.maximumf %236, %250 : vector<8x128xf32>
      %c2_i32_104 = arith.constant 2 : i32
      %252 = arith.index_cast %c2_i32_104 : i32 to index
      %c0_105 = arith.constant 0 : index
      %253 = vector.load %arg33[%252, %c0_105] : memref<8x128xf32, #tpu.memory_space<vmem>>, vector<1x128xf32>
      %254 = vector.broadcast %253 : vector<1x128xf32> to vector<8x128xf32>
      %255 = arith.addf %220, %254 : vector<8x128xf32>
      %cst_106 = arith.constant 0.000000e+00 : f32
      %256 = vector.broadcast %cst_106 : f32 to vector<8x128xf32>
      %257 = arith.maximumf %255, %256 : vector<8x128xf32>
      %258 = arith.index_cast %c2_i32_104 : i32 to index
      %259 = memref.load %arg1[%258] : memref<8xi32, #tpu.memory_space<smem>>
      %260 = vector.broadcast %259 : i32 to vector<8x1xi32>
      %261 = arith.cmpi eq, %19, %260 : vector<8x1xi32>
      %cst_107 = arith.constant -1.000000e+30 : f32
      %262 = vector.shape_cast %261 : vector<8x1xi1> to vector<8x1xi1>
      %263 = vector.broadcast %262 : vector<8x1xi1> to vector<8x128xi1>
      %264 = vector.broadcast %cst_107 : f32 to vector<8x128xf32>
      %265 = arith.select %263, %257, %264 : vector<8x128xi1>, vector<8x128xf32>
      %266 = arith.maximumf %251, %265 : vector<8x128xf32>
      %c3_i32_108 = arith.constant 3 : i32
      %267 = arith.index_cast %c3_i32_108 : i32 to index
      %c0_109 = arith.constant 0 : index
      %268 = vector.load %arg33[%267, %c0_109] : memref<8x128xf32, #tpu.memory_space<vmem>>, vector<1x128xf32>
      %269 = vector.broadcast %268 : vector<1x128xf32> to vector<8x128xf32>
      %270 = arith.addf %220, %269 : vector<8x128xf32>
      %cst_110 = arith.constant 0.000000e+00 : f32
      %271 = vector.broadcast %cst_110 : f32 to vector<8x128xf32>
      %272 = arith.maximumf %270, %271 : vector<8x128xf32>
      %273 = arith.index_cast %c3_i32_108 : i32 to index
      %274 = memref.load %arg1[%273] : memref<8xi32, #tpu.memory_space<smem>>
      %275 = vector.broadcast %274 : i32 to vector<8x1xi32>
      %276 = arith.cmpi eq, %19, %275 : vector<8x1xi32>
      %cst_111 = arith.constant -1.000000e+30 : f32
      %277 = vector.shape_cast %276 : vector<8x1xi1> to vector<8x1xi1>
      %278 = vector.broadcast %277 : vector<8x1xi1> to vector<8x128xi1>
      %279 = vector.broadcast %cst_111 : f32 to vector<8x128xf32>
      %280 = arith.select %278, %272, %279 : vector<8x128xi1>, vector<8x128xf32>
      %281 = arith.maximumf %266, %280 : vector<8x128xf32>
      %c4_i32_112 = arith.constant 4 : i32
      %282 = arith.index_cast %c4_i32_112 : i32 to index
      %c0_113 = arith.constant 0 : index
      %283 = vector.load %arg33[%282, %c0_113] : memref<8x128xf32, #tpu.memory_space<vmem>>, vector<1x128xf32>
      %284 = vector.broadcast %283 : vector<1x128xf32> to vector<8x128xf32>
      %285 = arith.addf %220, %284 : vector<8x128xf32>
      %cst_114 = arith.constant 0.000000e+00 : f32
      %286 = vector.broadcast %cst_114 : f32 to vector<8x128xf32>
      %287 = arith.maximumf %285, %286 : vector<8x128xf32>
      %288 = arith.index_cast %c4_i32_112 : i32 to index
      %289 = memref.load %arg1[%288] : memref<8xi32, #tpu.memory_space<smem>>
      %290 = vector.broadcast %289 : i32 to vector<8x1xi32>
      %291 = arith.cmpi eq, %19, %290 : vector<8x1xi32>
      %cst_115 = arith.constant -1.000000e+30 : f32
      %292 = vector.shape_cast %291 : vector<8x1xi1> to vector<8x1xi1>
      %293 = vector.broadcast %292 : vector<8x1xi1> to vector<8x128xi1>
      %294 = vector.broadcast %cst_115 : f32 to vector<8x128xf32>
      %295 = arith.select %293, %287, %294 : vector<8x128xi1>, vector<8x128xf32>
      %296 = arith.maximumf %281, %295 : vector<8x128xf32>
      %c5_i32_116 = arith.constant 5 : i32
      %297 = arith.index_cast %c5_i32_116 : i32 to index
      %c0_117 = arith.constant 0 : index
      %298 = vector.load %arg33[%297, %c0_117] : memref<8x128xf32, #tpu.memory_space<vmem>>, vector<1x128xf32>
      %299 = vector.broadcast %298 : vector<1x128xf32> to vector<8x128xf32>
      %300 = arith.addf %220, %299 : vector<8x128xf32>
      %cst_118 = arith.constant 0.000000e+00 : f32
      %301 = vector.broadcast %cst_118 : f32 to vector<8x128xf32>
      %302 = arith.maximumf %300, %301 : vector<8x128xf32>
      %303 = arith.index_cast %c5_i32_116 : i32 to index
      %304 = memref.load %arg1[%303] : memref<8xi32, #tpu.memory_space<smem>>
      %305 = vector.broadcast %304 : i32 to vector<8x1xi32>
      %306 = arith.cmpi eq, %19, %305 : vector<8x1xi32>
      %cst_119 = arith.constant -1.000000e+30 : f32
      %307 = vector.shape_cast %306 : vector<8x1xi1> to vector<8x1xi1>
      %308 = vector.broadcast %307 : vector<8x1xi1> to vector<8x128xi1>
      %309 = vector.broadcast %cst_119 : f32 to vector<8x128xf32>
      %310 = arith.select %308, %302, %309 : vector<8x128xi1>, vector<8x128xf32>
      %311 = arith.maximumf %296, %310 : vector<8x128xf32>
      %c6_i32_120 = arith.constant 6 : i32
      %312 = arith.index_cast %c6_i32_120 : i32 to index
      %c0_121 = arith.constant 0 : index
      %313 = vector.load %arg33[%312, %c0_121] : memref<8x128xf32, #tpu.memory_space<vmem>>, vector<1x128xf32>
      %314 = vector.broadcast %313 : vector<1x128xf32> to vector<8x128xf32>
      %315 = arith.addf %220, %314 : vector<8x128xf32>
      %cst_122 = arith.constant 0.000000e+00 : f32
      %316 = vector.broadcast %cst_122 : f32 to vector<8x128xf32>
      %317 = arith.maximumf %315, %316 : vector<8x128xf32>
      %318 = arith.index_cast %c6_i32_120 : i32 to index
      %319 = memref.load %arg1[%318] : memref<8xi32, #tpu.memory_space<smem>>
      %320 = vector.broadcast %319 : i32 to vector<8x1xi32>
      %321 = arith.cmpi eq, %19, %320 : vector<8x1xi32>
      %cst_123 = arith.constant -1.000000e+30 : f32
      %322 = vector.shape_cast %321 : vector<8x1xi1> to vector<8x1xi1>
      %323 = vector.broadcast %322 : vector<8x1xi1> to vector<8x128xi1>
      %324 = vector.broadcast %cst_123 : f32 to vector<8x128xf32>
      %325 = arith.select %323, %317, %324 : vector<8x128xi1>, vector<8x128xf32>
      %326 = arith.maximumf %311, %325 : vector<8x128xf32>
      %c7_i32_124 = arith.constant 7 : i32
      %327 = arith.index_cast %c7_i32_124 : i32 to index
      %c0_125 = arith.constant 0 : index
      %328 = vector.load %arg33[%327, %c0_125] : memref<8x128xf32, #tpu.memory_space<vmem>>, vector<1x128xf32>
      %329 = vector.broadcast %328 : vector<1x128xf32> to vector<8x128xf32>
      %330 = arith.addf %220, %329 : vector<8x128xf32>
      %cst_126 = arith.constant 0.000000e+00 : f32
      %331 = vector.broadcast %cst_126 : f32 to vector<8x128xf32>
      %332 = arith.maximumf %330, %331 : vector<8x128xf32>
      %333 = arith.index_cast %c7_i32_124 : i32 to index
      %334 = memref.load %arg1[%333] : memref<8xi32, #tpu.memory_space<smem>>
      %335 = vector.broadcast %334 : i32 to vector<8x1xi32>
      %336 = arith.cmpi eq, %19, %335 : vector<8x1xi32>
      %cst_127 = arith.constant -1.000000e+30 : f32
      %337 = vector.shape_cast %336 : vector<8x1xi1> to vector<8x1xi1>
      %338 = vector.broadcast %337 : vector<8x1xi1> to vector<8x128xi1>
      %339 = vector.broadcast %cst_127 : f32 to vector<8x128xf32>
      %340 = arith.select %338, %332, %339 : vector<8x128xi1>, vector<8x128xf32>
      %341 = arith.maximumf %326, %340 : vector<8x128xf32>
      %c8_i32_128 = arith.constant 8 : i32
      %cst_129 = arith.constant 0.000000e+00 : f32
      %342 = vector.broadcast %cst_129 : f32 to vector<8x128xf32>
      %343 = arith.maximumf %341, %342 : vector<8x128xf32>
      %c0_130 = arith.constant 0 : index
      %c0_131 = arith.constant 0 : index
      %344 = vector.load %arg25[%c0_130, %c0_131] : memref<128x128xbf16, #tpu.memory_space<vmem>>, vector<128x128xbf16>
      %c0_132 = arith.constant 0 : index
      %c0_133 = arith.constant 0 : index
      %345 = vector.load %arg26[%c0_132, %c0_133] : memref<7x128xbf16, #tpu.memory_space<vmem>>, vector<7x128xbf16>
      %c0_134 = arith.constant 0 : index
      %c0_135 = arith.constant 0 : index
      %346 = vector.load %arg27[%c0_134, %c0_135] : memref<128x128xbf16, #tpu.memory_space<vmem>>, vector<128x128xbf16>
      %c0_136 = arith.constant 0 : index
      %c0_137 = arith.constant 0 : index
      %347 = vector.load %arg28[%c0_136, %c0_137] : memref<7x128xbf16, #tpu.memory_space<vmem>>, vector<7x128xbf16>
      %c0_138 = arith.constant 0 : index
      %c0_139 = arith.constant 0 : index
      %348 = vector.load %arg29[%c0_138, %c0_139] : memref<1x128xf32, #tpu.memory_space<vmem>>, vector<1x128xf32>
      %349 = arith.truncf %343 : vector<8x128xf32> to vector<8x128xbf16>
      %cst_140 = arith.constant dense<0.000000e+00> : vector<8x128xf32>
      %350 = tpu.matmul %349, %344, %cst_140 {dimension_numbers = #tpu.dot_dimension_numbers<[1], [0], [0], [1], [0, 0, 1, 1], [], []>} : vector<8x128xbf16>, vector<128x128xbf16>, vector<8x128xf32> -> vector<8x128xf32>
      %351 = arith.truncf %18 : vector<8x7xf32> to vector<8x7xbf16>
      %cst_141 = arith.constant dense<0.000000e+00> : vector<8x128xf32>
      %352 = tpu.matmul %351, %345, %cst_141 {dimension_numbers = #tpu.dot_dimension_numbers<[1], [0], [0], [1], [0, 0, 1, 1], [], []>} : vector<8x7xbf16>, vector<7x128xbf16>, vector<8x128xf32> -> vector<8x128xf32>
      %353 = arith.addf %350, %352 : vector<8x128xf32>
      %354 = vector.broadcast %348 : vector<1x128xf32> to vector<8x128xf32>
      %355 = arith.addf %353, %354 : vector<8x128xf32>
      %356 = arith.truncf %343 : vector<8x128xf32> to vector<8x128xbf16>
      %cst_142 = arith.constant dense<0.000000e+00> : vector<8x128xf32>
      %357 = tpu.matmul %356, %346, %cst_142 {dimension_numbers = #tpu.dot_dimension_numbers<[1], [0], [0], [1], [0, 0, 1, 1], [], []>} : vector<8x128xbf16>, vector<128x128xbf16>, vector<8x128xf32> -> vector<8x128xf32>
      %358 = arith.truncf %18 : vector<8x7xf32> to vector<8x7xbf16>
      %cst_143 = arith.constant dense<0.000000e+00> : vector<8x128xf32>
      %359 = tpu.matmul %358, %347, %cst_143 {dimension_numbers = #tpu.dot_dimension_numbers<[1], [0], [0], [1], [0, 0, 1, 1], [], []>} : vector<8x7xbf16>, vector<7x128xbf16>, vector<8x128xf32> -> vector<8x128xf32>
      %360 = arith.addf %357, %359 : vector<8x128xf32>
      %c0_144 = arith.constant 0 : index
      %c0_145 = arith.constant 0 : index
      %361 = vector.load %arg33[%c0_144, %c0_145] : memref<8x128xf32, #tpu.memory_space<vmem>>, vector<8x128xf32>
      tpu.vector_store %arg33[%c0_144, %c0_145], %360 {strides = array<i32>} : memref<8x128xf32, #tpu.memory_space<vmem>>, vector<8x128xf32>,
      %362 = arith.subf %355, %360 : vector<8x128xf32>
      %cst_146 = arith.constant -1.000000e+30 : f32
      %363 = vector.broadcast %cst_146 : f32 to vector<8x128xf32>
      %c0_i32_147 = arith.constant 0 : i32
      %364 = arith.index_cast %c0_i32_147 : i32 to index
      %c0_148 = arith.constant 0 : index
      %365 = vector.load %arg33[%364, %c0_148] : memref<8x128xf32, #tpu.memory_space<vmem>>, vector<1x128xf32>
      %366 = vector.broadcast %365 : vector<1x128xf32> to vector<8x128xf32>
      %367 = arith.addf %362, %366 : vector<8x128xf32>
      %cst_149 = arith.constant 0.000000e+00 : f32
      %368 = vector.broadcast %cst_149 : f32 to vector<8x128xf32>
      %369 = arith.maximumf %367, %368 : vector<8x128xf32>
      %370 = arith.index_cast %c0_i32_147 : i32 to index
      %371 = memref.load %arg1[%370] : memref<8xi32, #tpu.memory_space<smem>>
      %372 = vector.broadcast %371 : i32 to vector<8x1xi32>
      %373 = arith.cmpi eq, %19, %372 : vector<8x1xi32>
      %cst_150 = arith.constant -1.000000e+30 : f32
      %374 = vector.shape_cast %373 : vector<8x1xi1> to vector<8x1xi1>
      %375 = vector.broadcast %374 : vector<8x1xi1> to vector<8x128xi1>
      %376 = vector.broadcast %cst_150 : f32 to vector<8x128xf32>
      %377 = arith.select %375, %369, %376 : vector<8x128xi1>, vector<8x128xf32>
      %378 = arith.maximumf %363, %377 : vector<8x128xf32>
      %c1_i32_151 = arith.constant 1 : i32
      %379 = arith.index_cast %c1_i32_151 : i32 to index
      %c0_152 = arith.constant 0 : index
      %380 = vector.load %arg33[%379, %c0_152] : memref<8x128xf32, #tpu.memory_space<vmem>>, vector<1x128xf32>
      %381 = vector.broadcast %380 : vector<1x128xf32> to vector<8x128xf32>
      %382 = arith.addf %362, %381 : vector<8x128xf32>
      %cst_153 = arith.constant 0.000000e+00 : f32
      %383 = vector.broadcast %cst_153 : f32 to vector<8x128xf32>
      %384 = arith.maximumf %382, %383 : vector<8x128xf32>
      %385 = arith.index_cast %c1_i32_151 : i32 to index
      %386 = memref.load %arg1[%385] : memref<8xi32, #tpu.memory_space<smem>>
      %387 = vector.broadcast %386 : i32 to vector<8x1xi32>
      %388 = arith.cmpi eq, %19, %387 : vector<8x1xi32>
      %cst_154 = arith.constant -1.000000e+30 : f32
      %389 = vector.shape_cast %388 : vector<8x1xi1> to vector<8x1xi1>
      %390 = vector.broadcast %389 : vector<8x1xi1> to vector<8x128xi1>
      %391 = vector.broadcast %cst_154 : f32 to vector<8x128xf32>
      %392 = arith.select %390, %384, %391 : vector<8x128xi1>, vector<8x128xf32>
      %393 = arith.maximumf %378, %392 : vector<8x128xf32>
      %c2_i32_155 = arith.constant 2 : i32
      %394 = arith.index_cast %c2_i32_155 : i32 to index
      %c0_156 = arith.constant 0 : index
      %395 = vector.load %arg33[%394, %c0_156] : memref<8x128xf32, #tpu.memory_space<vmem>>, vector<1x128xf32>
      %396 = vector.broadcast %395 : vector<1x128xf32> to vector<8x128xf32>
      %397 = arith.addf %362, %396 : vector<8x128xf32>
      %cst_157 = arith.constant 0.000000e+00 : f32
      %398 = vector.broadcast %cst_157 : f32 to vector<8x128xf32>
      %399 = arith.maximumf %397, %398 : vector<8x128xf32>
      %400 = arith.index_cast %c2_i32_155 : i32 to index
      %401 = memref.load %arg1[%400] : memref<8xi32, #tpu.memory_space<smem>>
      %402 = vector.broadcast %401 : i32 to vector<8x1xi32>
      %403 = arith.cmpi eq, %19, %402 : vector<8x1xi32>
      %cst_158 = arith.constant -1.000000e+30 : f32
      %404 = vector.shape_cast %403 : vector<8x1xi1> to vector<8x1xi1>
      %405 = vector.broadcast %404 : vector<8x1xi1> to vector<8x128xi1>
      %406 = vector.broadcast %cst_158 : f32 to vector<8x128xf32>
      %407 = arith.select %405, %399, %406 : vector<8x128xi1>, vector<8x128xf32>
      %408 = arith.maximumf %393, %407 : vector<8x128xf32>
      %c3_i32_159 = arith.constant 3 : i32
      %409 = arith.index_cast %c3_i32_159 : i32 to index
      %c0_160 = arith.constant 0 : index
      %410 = vector.load %arg33[%409, %c0_160] : memref<8x128xf32, #tpu.memory_space<vmem>>, vector<1x128xf32>
      %411 = vector.broadcast %410 : vector<1x128xf32> to vector<8x128xf32>
      %412 = arith.addf %362, %411 : vector<8x128xf32>
      %cst_161 = arith.constant 0.000000e+00 : f32
      %413 = vector.broadcast %cst_161 : f32 to vector<8x128xf32>
      %414 = arith.maximumf %412, %413 : vector<8x128xf32>
      %415 = arith.index_cast %c3_i32_159 : i32 to index
      %416 = memref.load %arg1[%415] : memref<8xi32, #tpu.memory_space<smem>>
      %417 = vector.broadcast %416 : i32 to vector<8x1xi32>
      %418 = arith.cmpi eq, %19, %417 : vector<8x1xi32>
      %cst_162 = arith.constant -1.000000e+30 : f32
      %419 = vector.shape_cast %418 : vector<8x1xi1> to vector<8x1xi1>
      %420 = vector.broadcast %419 : vector<8x1xi1> to vector<8x128xi1>
      %421 = vector.broadcast %cst_162 : f32 to vector<8x128xf32>
      %422 = arith.select %420, %414, %421 : vector<8x128xi1>, vector<8x128xf32>
      %423 = arith.maximumf %408, %422 : vector<8x128xf32>
      %c4_i32_163 = arith.constant 4 : i32
      %424 = arith.index_cast %c4_i32_163 : i32 to index
      %c0_164 = arith.constant 0 : index
      %425 = vector.load %arg33[%424, %c0_164] : memref<8x128xf32, #tpu.memory_space<vmem>>, vector<1x128xf32>
      %426 = vector.broadcast %425 : vector<1x128xf32> to vector<8x128xf32>
      %427 = arith.addf %362, %426 : vector<8x128xf32>
      %cst_165 = arith.constant 0.000000e+00 : f32
      %428 = vector.broadcast %cst_165 : f32 to vector<8x128xf32>
      %429 = arith.maximumf %427, %428 : vector<8x128xf32>
      %430 = arith.index_cast %c4_i32_163 : i32 to index
      %431 = memref.load %arg1[%430] : memref<8xi32, #tpu.memory_space<smem>>
      %432 = vector.broadcast %431 : i32 to vector<8x1xi32>
      %433 = arith.cmpi eq, %19, %432 : vector<8x1xi32>
      %cst_166 = arith.constant -1.000000e+30 : f32
      %434 = vector.shape_cast %433 : vector<8x1xi1> to vector<8x1xi1>
      %435 = vector.broadcast %434 : vector<8x1xi1> to vector<8x128xi1>
      %436 = vector.broadcast %cst_166 : f32 to vector<8x128xf32>
      %437 = arith.select %435, %429, %436 : vector<8x128xi1>, vector<8x128xf32>
      %438 = arith.maximumf %423, %437 : vector<8x128xf32>
      %c5_i32_167 = arith.constant 5 : i32
      %439 = arith.index_cast %c5_i32_167 : i32 to index
      %c0_168 = arith.constant 0 : index
      %440 = vector.load %arg33[%439, %c0_168] : memref<8x128xf32, #tpu.memory_space<vmem>>, vector<1x128xf32>
      %441 = vector.broadcast %440 : vector<1x128xf32> to vector<8x128xf32>
      %442 = arith.addf %362, %441 : vector<8x128xf32>
      %cst_169 = arith.constant 0.000000e+00 : f32
      %443 = vector.broadcast %cst_169 : f32 to vector<8x128xf32>
      %444 = arith.maximumf %442, %443 : vector<8x128xf32>
      %445 = arith.index_cast %c5_i32_167 : i32 to index
      %446 = memref.load %arg1[%445] : memref<8xi32, #tpu.memory_space<smem>>
      %447 = vector.broadcast %446 : i32 to vector<8x1xi32>
      %448 = arith.cmpi eq, %19, %447 : vector<8x1xi32>
      %cst_170 = arith.constant -1.000000e+30 : f32
      %449 = vector.shape_cast %448 : vector<8x1xi1> to vector<8x1xi1>
      %450 = vector.broadcast %449 : vector<8x1xi1> to vector<8x128xi1>
      %451 = vector.broadcast %cst_170 : f32 to vector<8x128xf32>
      %452 = arith.select %450, %444, %451 : vector<8x128xi1>, vector<8x128xf32>
      %453 = arith.maximumf %438, %452 : vector<8x128xf32>
      %c6_i32_171 = arith.constant 6 : i32
      %454 = arith.index_cast %c6_i32_171 : i32 to index
      %c0_172 = arith.constant 0 : index
      %455 = vector.load %arg33[%454, %c0_172] : memref<8x128xf32, #tpu.memory_space<vmem>>, vector<1x128xf32>
      %456 = vector.broadcast %455 : vector<1x128xf32> to vector<8x128xf32>
      %457 = arith.addf %362, %456 : vector<8x128xf32>
      %cst_173 = arith.constant 0.000000e+00 : f32
      %458 = vector.broadcast %cst_173 : f32 to vector<8x128xf32>
      %459 = arith.maximumf %457, %458 : vector<8x128xf32>
      %460 = arith.index_cast %c6_i32_171 : i32 to index
      %461 = memref.load %arg1[%460] : memref<8xi32, #tpu.memory_space<smem>>
      %462 = vector.broadcast %461 : i32 to vector<8x1xi32>
      %463 = arith.cmpi eq, %19, %462 : vector<8x1xi32>
      %cst_174 = arith.constant -1.000000e+30 : f32
      %464 = vector.shape_cast %463 : vector<8x1xi1> to vector<8x1xi1>
      %465 = vector.broadcast %464 : vector<8x1xi1> to vector<8x128xi1>
      %466 = vector.broadcast %cst_174 : f32 to vector<8x128xf32>
      %467 = arith.select %465, %459, %466 : vector<8x128xi1>, vector<8x128xf32>
      %468 = arith.maximumf %453, %467 : vector<8x128xf32>
      %c7_i32_175 = arith.constant 7 : i32
      %469 = arith.index_cast %c7_i32_175 : i32 to index
      %c0_176 = arith.constant 0 : index
      %470 = vector.load %arg33[%469, %c0_176] : memref<8x128xf32, #tpu.memory_space<vmem>>, vector<1x128xf32>
      %471 = vector.broadcast %470 : vector<1x128xf32> to vector<8x128xf32>
      %472 = arith.addf %362, %471 : vector<8x128xf32>
      %cst_177 = arith.constant 0.000000e+00 : f32
      %473 = vector.broadcast %cst_177 : f32 to vector<8x128xf32>
      %474 = arith.maximumf %472, %473 : vector<8x128xf32>
      %475 = arith.index_cast %c7_i32_175 : i32 to index
      %476 = memref.load %arg1[%475] : memref<8xi32, #tpu.memory_space<smem>>
      %477 = vector.broadcast %476 : i32 to vector<8x1xi32>
      %478 = arith.cmpi eq, %19, %477 : vector<8x1xi32>
      %cst_178 = arith.constant -1.000000e+30 : f32
      %479 = vector.shape_cast %478 : vector<8x1xi1> to vector<8x1xi1>
      %480 = vector.broadcast %479 : vector<8x1xi1> to vector<8x128xi1>
      %481 = vector.broadcast %cst_178 : f32 to vector<8x128xf32>
      %482 = arith.select %480, %474, %481 : vector<8x128xi1>, vector<8x128xf32>
      %483 = arith.maximumf %468, %482 : vector<8x128xf32>
      %c8_i32_179 = arith.constant 8 : i32
      %c0_180 = arith.constant 0 : index
      %c0_181 = arith.constant 0 : index
      %484 = vector.load %arg33[%c0_180, %c0_181] : memref<8x128xf32, #tpu.memory_space<vmem>>, vector<8x128xf32>
      tpu.vector_store %arg33[%c0_180, %c0_181], %483 {strides = array<i32>} : memref<8x128xf32, #tpu.memory_space<vmem>>, vector<8x128xf32>,
      %c0_182 = arith.constant 0 : index
      %485 = memref.load %arg2[%c0_182] : memref<3xi32, #tpu.memory_space<smem>>
      %486 = arith.index_cast %485 : i32 to index
      %c0_183 = arith.constant 0 : index
      %487 = vector.load %arg33[%486, %c0_183] : memref<8x128xf32, #tpu.memory_space<vmem>>, vector<1x128xf32>
      %c0_184 = arith.constant 0 : index
      %c0_185 = arith.constant 0 : index
      %488 = vector.load %arg34[%c0_184, %c0_185] : memref<3x128xf32, #tpu.memory_space<vmem>>, vector<1x128xf32>
      tpu.vector_store %arg34[%c0_184, %c0_185], %487 {strides = array<i32>} : memref<3x128xf32, #tpu.memory_space<vmem>>, vector<1x128xf32>,
      %c1 = arith.constant 1 : index
      %489 = memref.load %arg2[%c1] : memref<3xi32, #tpu.memory_space<smem>>
      %490 = arith.index_cast %489 : i32 to index
      %c0_186 = arith.constant 0 : index
      %491 = vector.load %arg33[%490, %c0_186] : memref<8x128xf32, #tpu.memory_space<vmem>>, vector<1x128xf32>
      %c1_187 = arith.constant 1 : index
      %c0_188 = arith.constant 0 : index
      %492 = vector.load %arg34[%c1_187, %c0_188] : memref<3x128xf32, #tpu.memory_space<vmem>>, vector<1x128xf32>
      tpu.vector_store %arg34[%c1_187, %c0_188], %491 {strides = array<i32>} : memref<3x128xf32, #tpu.memory_space<vmem>>, vector<1x128xf32>,
      %c2 = arith.constant 2 : index
      %493 = memref.load %arg2[%c2] : memref<3xi32, #tpu.memory_space<smem>>
      %494 = arith.index_cast %493 : i32 to index
      %c0_189 = arith.constant 0 : index
      %495 = vector.load %arg33[%494, %c0_189] : memref<8x128xf32, #tpu.memory_space<vmem>>, vector<1x128xf32>
      %c2_190 = arith.constant 2 : index
      %c0_191 = arith.constant 0 : index
      %496 = vector.load %arg34[%c2_190, %c0_191] : memref<3x128xf32, #tpu.memory_space<vmem>>, vector<1x128xf32>
      tpu.vector_store %arg34[%c2_190, %c0_191], %495 {strides = array<i32>} : memref<3x128xf32, #tpu.memory_space<vmem>>, vector<1x128xf32>,
      %c0_192 = arith.constant 0 : index
      %c0_193 = arith.constant 0 : index
      %497 = vector.load %arg34[%c0_192, %c0_193] : memref<3x128xf32, #tpu.memory_space<vmem>>, vector<3x128xf32>
      %c0_194 = arith.constant 0 : index
      %c0_195 = arith.constant 0 : index
      %498 = vector.load %arg30[%c0_194, %c0_195] : memref<128x128xbf16, #tpu.memory_space<vmem>>, vector<128x128xbf16>
      %499 = arith.truncf %497 : vector<3x128xf32> to vector<3x128xbf16>
      %cst_196 = arith.constant dense<0.000000e+00> : vector<3x128xf32>
      %500 = tpu.matmul %499, %498, %cst_196 {dimension_numbers = #tpu.dot_dimension_numbers<[1], [0], [0], [1], [0, 0, 1, 1], [], []>} : vector<3x128xbf16>, vector<128x128xbf16>, vector<3x128xf32> -> vector<3x128xf32>
      %c0_197 = arith.constant 0 : index
      %c0_198 = arith.constant 0 : index
      %501 = vector.load %arg6[%c0_197, %c0_198] : memref<3x128xf32, #tpu.memory_space<vmem>>, vector<3x128xf32>
      %502 = arith.mulf %500, %501 : vector<3x128xf32>
      %cst_199 = arith.constant dense<0.000000e+00> : vector<3xf32>
      %503 = vector.multi_reduction <add>, %502, %cst_199 [1] : vector<3x128xf32> to vector<3xf32>
      %504 = vector.shape_cast %503 : vector<3xf32> to vector<3x1xf32>
      %c0_200 = arith.constant 0 : index
      %c0_201 = arith.constant 0 : index
      %505 = vector.load %arg31[%c0_200, %c0_201] : memref<3x1xf32, #tpu.memory_space<vmem>>, vector<3x1xf32>
      tpu.vector_store %arg31[%c0_200, %c0_201], %504 {strides = array<i32>} : memref<3x1xf32, #tpu.memory_space<vmem>>, vector<3x1xf32>,
    } else {
    }
    return
  }
  func.func @transform_0(%arg0: i32, %arg1: memref<8xi32, #tpu.memory_space<smem>>, %arg2: memref<3xi32, #tpu.memory_space<smem>>) -> (i32, i32, i32) {
    %c0_i32 = arith.constant 0 : i32
    %c0_i32_0 = arith.constant 0 : i32
    %c0_i32_1 = arith.constant 0 : i32
    return %arg0, %c0_i32, %c0_i32_0 : i32, i32, i32
  }
  func.func @transform_1(%arg0: i32, %arg1: memref<8xi32, #tpu.memory_space<smem>>, %arg2: memref<3xi32, #tpu.memory_space<smem>>) -> (i32, i32) {
    %c0_i32 = arith.constant 0 : i32
    %c0_i32_0 = arith.constant 0 : i32
    %c0_i32_1 = arith.constant 0 : i32
    return %c0_i32, %c0_i32_0 : i32, i32
  }
  func.func @transform_2(%arg0: i32, %arg1: memref<8xi32, #tpu.memory_space<smem>>, %arg2: memref<3xi32, #tpu.memory_space<smem>>) -> (i32, i32) {
    %c0_i32 = arith.constant 0 : i32
    %c0_i32_0 = arith.constant 0 : i32
    %c0_i32_1 = arith.constant 0 : i32
    return %c0_i32, %c0_i32_0 : i32, i32
  }
  func.func @transform_3(%arg0: i32, %arg1: memref<8xi32, #tpu.memory_space<smem>>, %arg2: memref<3xi32, #tpu.memory_space<smem>>) -> (i32, i32) {
    %c0_i32 = arith.constant 0 : i32
    %c0_i32_0 = arith.constant 0 : i32
    %c0_i32_1 = arith.constant 0 : i32
    return %c0_i32, %c0_i32_0 : i32, i32
  }
  func.func @transform_4(%arg0: i32, %arg1: memref<8xi32, #tpu.memory_space<smem>>, %arg2: memref<3xi32, #tpu.memory_space<smem>>) -> (i32, i32) {
    %c0_i32 = arith.constant 0 : i32
    %c0_i32_0 = arith.constant 0 : i32
    %c0_i32_1 = arith.constant 0 : i32
    return %c0_i32, %c0_i32_0 : i32, i32
  }
  func.func @transform_5(%arg0: i32, %arg1: memref<8xi32, #tpu.memory_space<smem>>, %arg2: memref<3xi32, #tpu.memory_space<smem>>) -> (i32, i32) {
    %c0_i32 = arith.constant 0 : i32
    %c0_i32_0 = arith.constant 0 : i32
    %c0_i32_1 = arith.constant 0 : i32
    return %c0_i32, %c0_i32_0 : i32, i32
  }
  func.func @transform_6(%arg0: i32, %arg1: memref<8xi32, #tpu.memory_space<smem>>, %arg2: memref<3xi32, #tpu.memory_space<smem>>) -> (i32, i32) {
    %c0_i32 = arith.constant 0 : i32
    %c0_i32_0 = arith.constant 0 : i32
    %c0_i32_1 = arith.constant 0 : i32
    return %c0_i32, %c0_i32_0 : i32, i32
  }
  func.func @transform_7(%arg0: i32, %arg1: memref<8xi32, #tpu.memory_space<smem>>, %arg2: memref<3xi32, #tpu.memory_space<smem>>) -> (i32, i32) {
    %c0_i32 = arith.constant 0 : i32
    %c0_i32_0 = arith.constant 0 : i32
    %c0_i32_1 = arith.constant 0 : i32
    return %c0_i32, %c0_i32_0 : i32, i32
  }
  func.func @transform_8(%arg0: i32, %arg1: memref<8xi32, #tpu.memory_space<smem>>, %arg2: memref<3xi32, #tpu.memory_space<smem>>) -> (i32, i32) {
    %c0_i32 = arith.constant 0 : i32
    %c0_i32_0 = arith.constant 0 : i32
    %c0_i32_1 = arith.constant 0 : i32
    return %c0_i32, %c0_i32_0 : i32, i32
  }
  func.func @transform_9(%arg0: i32, %arg1: memref<8xi32, #tpu.memory_space<smem>>, %arg2: memref<3xi32, #tpu.memory_space<smem>>) -> (i32, i32) {
    %c0_i32 = arith.constant 0 : i32
    %c0_i32_0 = arith.constant 0 : i32
    %c0_i32_1 = arith.constant 0 : i32
    return %c0_i32, %c0_i32_0 : i32, i32
  }
  func.func @transform_10(%arg0: i32, %arg1: memref<8xi32, #tpu.memory_space<smem>>, %arg2: memref<3xi32, #tpu.memory_space<smem>>) -> (i32, i32) {
    %c0_i32 = arith.constant 0 : i32
    %c0_i32_0 = arith.constant 0 : i32
    %c0_i32_1 = arith.constant 0 : i32
    return %c0_i32, %c0_i32_0 : i32, i32
  }
  func.func @transform_11(%arg0: i32, %arg1: memref<8xi32, #tpu.memory_space<smem>>, %arg2: memref<3xi32, #tpu.memory_space<smem>>) -> (i32, i32) {
    %c0_i32 = arith.constant 0 : i32
    %c0_i32_0 = arith.constant 0 : i32
    %c0_i32_1 = arith.constant 0 : i32
    return %c0_i32, %c0_i32_0 : i32, i32
  }
  func.func @transform_12(%arg0: i32, %arg1: memref<8xi32, #tpu.memory_space<smem>>, %arg2: memref<3xi32, #tpu.memory_space<smem>>) -> (i32, i32) {
    %c0_i32 = arith.constant 0 : i32
    %c0_i32_0 = arith.constant 0 : i32
    %c0_i32_1 = arith.constant 0 : i32
    return %c0_i32, %c0_i32_0 : i32, i32
  }
  func.func @transform_13(%arg0: i32, %arg1: memref<8xi32, #tpu.memory_space<smem>>, %arg2: memref<3xi32, #tpu.memory_space<smem>>) -> (i32, i32) {
    %c0_i32 = arith.constant 0 : i32
    %c0_i32_0 = arith.constant 0 : i32
    %c0_i32_1 = arith.constant 0 : i32
    return %c0_i32, %c0_i32_0 : i32, i32
  }
  func.func @transform_14(%arg0: i32, %arg1: memref<8xi32, #tpu.memory_space<smem>>, %arg2: memref<3xi32, #tpu.memory_space<smem>>) -> (i32, i32) {
    %c0_i32 = arith.constant 0 : i32
    %c0_i32_0 = arith.constant 0 : i32
    %c0_i32_1 = arith.constant 0 : i32
    return %c0_i32, %c0_i32_0 : i32, i32
  }
  func.func @transform_15(%arg0: i32, %arg1: memref<8xi32, #tpu.memory_space<smem>>, %arg2: memref<3xi32, #tpu.memory_space<smem>>) -> (i32, i32) {
    %c0_i32 = arith.constant 0 : i32
    %c0_i32_0 = arith.constant 0 : i32
    %c0_i32_1 = arith.constant 0 : i32
    return %c0_i32, %c0_i32_0 : i32, i32
  }
  func.func @transform_16(%arg0: i32, %arg1: memref<8xi32, #tpu.memory_space<smem>>, %arg2: memref<3xi32, #tpu.memory_space<smem>>) -> (i32, i32) {
    %c0_i32 = arith.constant 0 : i32
    %c0_i32_0 = arith.constant 0 : i32
    %c0_i32_1 = arith.constant 0 : i32
    return %c0_i32, %c0_i32_0 : i32, i32
  }
  func.func @transform_17(%arg0: i32, %arg1: memref<8xi32, #tpu.memory_space<smem>>, %arg2: memref<3xi32, #tpu.memory_space<smem>>) -> (i32, i32) {
    %c0_i32 = arith.constant 0 : i32
    %c0_i32_0 = arith.constant 0 : i32
    %c0_i32_1 = arith.constant 0 : i32
    return %c0_i32, %c0_i32_0 : i32, i32
  }
  func.func @transform_18(%arg0: i32, %arg1: memref<8xi32, #tpu.memory_space<smem>>, %arg2: memref<3xi32, #tpu.memory_space<smem>>) -> (i32, i32) {
    %c0_i32 = arith.constant 0 : i32
    %c0_i32_0 = arith.constant 0 : i32
    %c0_i32_1 = arith.constant 0 : i32
    return %c0_i32, %c0_i32_0 : i32, i32
  }
  func.func @transform_19(%arg0: i32, %arg1: memref<8xi32, #tpu.memory_space<smem>>, %arg2: memref<3xi32, #tpu.memory_space<smem>>) -> (i32, i32) {
    %c0_i32 = arith.constant 0 : i32
    %c0_i32_0 = arith.constant 0 : i32
    %c0_i32_1 = arith.constant 0 : i32
    return %c0_i32, %c0_i32_0 : i32, i32
  }
  func.func @transform_20(%arg0: i32, %arg1: memref<8xi32, #tpu.memory_space<smem>>, %arg2: memref<3xi32, #tpu.memory_space<smem>>) -> (i32, i32) {
    %c0_i32 = arith.constant 0 : i32
    %c0_i32_0 = arith.constant 0 : i32
    %c0_i32_1 = arith.constant 0 : i32
    return %c0_i32, %c0_i32_0 : i32, i32
  }
  func.func @transform_21(%arg0: i32, %arg1: memref<8xi32, #tpu.memory_space<smem>>, %arg2: memref<3xi32, #tpu.memory_space<smem>>) -> (i32, i32) {
    %c0_i32 = arith.constant 0 : i32
    %c0_i32_0 = arith.constant 0 : i32
    %c0_i32_1 = arith.constant 0 : i32
    return %c0_i32, %c0_i32_0 : i32, i32
  }
  func.func @transform_22(%arg0: i32, %arg1: memref<8xi32, #tpu.memory_space<smem>>, %arg2: memref<3xi32, #tpu.memory_space<smem>>) -> (i32, i32) {
    %c0_i32 = arith.constant 0 : i32
    %c0_i32_0 = arith.constant 0 : i32
    %c0_i32_1 = arith.constant 0 : i32
    return %c0_i32, %c0_i32_0 : i32, i32
  }
  func.func @transform_23(%arg0: i32, %arg1: memref<8xi32, #tpu.memory_space<smem>>, %arg2: memref<3xi32, #tpu.memory_space<smem>>) -> (i32, i32) {
    %c0_i32 = arith.constant 0 : i32
    %c0_i32_0 = arith.constant 0 : i32
    %c0_i32_1 = arith.constant 0 : i32
    return %c0_i32, %c0_i32_0 : i32, i32
  }
  func.func @transform_24(%arg0: i32, %arg1: memref<8xi32, #tpu.memory_space<smem>>, %arg2: memref<3xi32, #tpu.memory_space<smem>>) -> (i32, i32) {
    %c0_i32 = arith.constant 0 : i32
    %c0_i32_0 = arith.constant 0 : i32
    %c0_i32_1 = arith.constant 0 : i32
    return %c0_i32, %c0_i32_0 : i32, i32
  }
  func.func @transform_25(%arg0: i32, %arg1: memref<8xi32, #tpu.memory_space<smem>>, %arg2: memref<3xi32, #tpu.memory_space<smem>>) -> (i32, i32) {
    %c0_i32 = arith.constant 0 : i32
    %c0_i32_0 = arith.constant 0 : i32
    %c0_i32_1 = arith.constant 0 : i32
    return %c0_i32, %c0_i32_0 : i32, i32
  }
  func.func @transform_26(%arg0: i32, %arg1: memref<8xi32, #tpu.memory_space<smem>>, %arg2: memref<3xi32, #tpu.memory_space<smem>>) -> (i32, i32) {
    %c0_i32 = arith.constant 0 : i32
    %c0_i32_0 = arith.constant 0 : i32
    %c0_i32_1 = arith.constant 0 : i32
    return %c0_i32, %c0_i32_0 : i32, i32
  }
  func.func @transform_27(%arg0: i32, %arg1: memref<8xi32, #tpu.memory_space<smem>>, %arg2: memref<3xi32, #tpu.memory_space<smem>>) -> (i32, i32) {
    %c0_i32 = arith.constant 0 : i32
    %c0_i32_0 = arith.constant 0 : i32
    %c0_i32_1 = arith.constant 0 : i32
    return %c0_i32, %c0_i32_0 : i32, i32
  }
  func.func @transform_28(%arg0: i32, %arg1: memref<8xi32, #tpu.memory_space<smem>>, %arg2: memref<3xi32, #tpu.memory_space<smem>>) -> (i32, i32) {
    %c0_i32 = arith.constant 0 : i32
    %c0_i32_0 = arith.constant 0 : i32
    %c0_i32_1 = arith.constant 0 : i32
    return %c0_i32, %c0_i32_0 : i32, i32
  }
}

</mosaic_0001>

<llo_original>
// kernel: tpu_custom_call.1
$region0: #{tpu_custom_call.1}
  #allocation0 [shape = 'u32[]', space=smem, size = 0x4, offset = 0x4, fixed_abs, tag = 'smem constant byte address 0x4 - core index']
  #allocation1 [shape = 'u32[144,128]{1,0:T(1,128)}', space=vmem, size = 0x12000, scoped, tag = 'internal scratch']
  #allocation2 [shape = 'f32[8,128]{1,0:T(8,128)}', space=vmem, size = 0x1000, scoped, tag = 'scratch operand']
  #allocation3 [shape = 'f32[8,128]{1,0:T(8,128)}', space=vmem, size = 0x1000, scoped, tag = 'scratch operand']
  #allocation4 [shape = 'f32[3,128]{1,0:T(4,128)}', space=vmem, size = 0x800, scoped, tag = 'scratch operand']
  #allocation5 [shape = 's32[1]{0}', space=sflag, size = 0x4, scoped, tag = 'scoped memory for tpu_custom_call.1']
  #allocation6 [shape = 'u8[512]{0}', space=smem, size = 0x200, scoped, tag = 'prefetched SMEM operand 0']
  #allocation7 [shape = 'u8[512]{0}', space=smem, size = 0x200, scoped, tag = 'prefetched SMEM operand 1']
  %s0 = inlined_call_operand.smem [shape: u32[31], index: -1, kind: input, shape index: {}]
  %s1 = sld [smem:[%s0]]
  %s2 = scalar_lea.smem %s0, 1
  %s3 = sld [smem:[%s2]]
  %s4 = scalar_lea.smem %s0, 2
  %s5 = sld [smem:[%s4]]
  %s6 = scalar_lea.smem %s0, 3
  %s7 = sld [smem:[%s6]]
  %s8 = scalar_lea.smem %s0, 4
  %s9 = sld [smem:[%s8]]
  %s10 = scalar_lea.smem %s0, 5
  %s11 = sld [smem:[%s10]]
  %s12 = scalar_lea.smem %s0, 6
  %s13 = sld [smem:[%s12]]
  %s14 = scalar_lea.smem %s0, 7
  %s15 = sld [smem:[%s14]]
  %s16 = scalar_lea.smem %s0, 8
  %s17 = sld [smem:[%s16]]
  %s18 = scalar_lea.smem %s0, 9
  %s19 = sld [smem:[%s18]]
  %s20 = scalar_lea.smem %s0, 10
  %s21 = sld [smem:[%s20]]
  %s22 = scalar_lea.smem %s0, 11
  %s23 = sld [smem:[%s22]]
  %s24 = scalar_lea.smem %s0, 12
  %s25 = sld [smem:[%s24]]
  %s26 = scalar_lea.smem %s0, 13
  %s27 = sld [smem:[%s26]]
  %s28 = scalar_lea.smem %s0, 14
  %s29 = sld [smem:[%s28]]
  %s30 = scalar_lea.smem %s0, 15
  %s31 = sld [smem:[%s30]]
  %s32 = scalar_lea.smem %s0, 16
  %s33 = sld [smem:[%s32]]
  %s34 = scalar_lea.smem %s0, 17
  %s35 = sld [smem:[%s34]]
  %s36 = scalar_lea.smem %s0, 18
  %s37 = sld [smem:[%s36]]
  %s38 = scalar_lea.smem %s0, 19
  %s39 = sld [smem:[%s38]]
  %s40 = scalar_lea.smem %s0, 20
  %s41 = sld [smem:[%s40]]
  %s42 = scalar_lea.smem %s0, 21
  %s43 = sld [smem:[%s42]]
  %s44 = scalar_lea.smem %s0, 22
  %s45 = sld [smem:[%s44]]
  %s46 = scalar_lea.smem %s0, 23
  %s47 = sld [smem:[%s46]]
  %s48 = scalar_lea.smem %s0, 24
  %s49 = sld [smem:[%s48]]
  %s50 = scalar_lea.smem %s0, 25
  %s51 = sld [smem:[%s50]]
  %s52 = scalar_lea.smem %s0, 26
  %s53 = sld [smem:[%s52]]
  %s54 = scalar_lea.smem %s0, 27
  %s55 = sld [smem:[%s54]]
  %s56 = scalar_lea.smem %s0, 28
  %s57 = sld [smem:[%s56]]
  %s58 = scalar_lea.smem %s0, 29
  %s59 = sld [smem:[%s58]]
  %s60 = scalar_lea.smem %s0, 30
  %s61 = sld [smem:[%s60]]
  %s62 = sld [smem:[#allocation0]]
  $region197: #{tpu_custom_call.1} parent=0
    _
  %s64 = ssub.s32 1, %s62
  %s65 = scalar_select 0, %s64, %s62
  %67 = dma.hbm_to_smem %s1, 16, [#allocation6], [#allocation5]
  %69 = dma.hbm_to_smem %s3, 16, [#allocation7], [#allocation5]
  %70 = dma.done [#allocation5], 32
  %71 = sfence
  $region1: #{tpu_custom_call.1} parent=0
    #allocation8 [shape = 'u8[4096]{0}', space=vmem, size = 0x1000, scoped, tag = 'input window, operand 3, single buffered']
    #allocation9 [shape = 's32[2]{0}', space=sflag, size = 0x8, scoped, tag = 'scoped memory for tpu_custom_call.1']
    #allocation10 [shape = 'u8[2048]{0}', space=vmem, size = 0x800, scoped, tag = 'input window, operand 5, single buffered']
    #allocation11 [shape = 's32[1]{0}', space=sflag, size = 0x4, scoped, tag = 'scoped memory for tpu_custom_call.1']
    #allocation12 [shape = 'u8[2048]{0}', space=vmem, size = 0x800, scoped, tag = 'input window, operand 6, single buffered']
    #allocation13 [shape = 'u8[512]{0}', space=vmem, size = 0x400, scoped, tag = 'input window, operand 9, single buffered']
    #allocation14 [shape = 's32[1]{0}', space=sflag, size = 0x4, scoped, tag = 'scoped memory for tpu_custom_call.1']
    #allocation15 [shape = 'u8[512]{0}', space=vmem, size = 0x400, scoped, tag = 'input window, operand 10, single buffered']
    #allocation16 [shape = 'u8[512]{0}', space=vmem, size = 0x400, scoped, tag = 'input window, operand 11, single buffered']
    #allocation17 [shape = 's32[1]{0}', space=sflag, size = 0x4, scoped, tag = 'scoped memory for tpu_custom_call.1']
    #allocation18 [shape = 'u8[512]{0}', space=vmem, size = 0x400, scoped, tag = 'input window, operand 13, single buffered']
    #allocation19 [shape = 'u8[512]{0}', space=vmem, size = 0x400, scoped, tag = 'input window, operand 18, single buffered']
    #allocation20 [shape = 's32[1]{0}', space=sflag, size = 0x4, scoped, tag = 'scoped memory for tpu_custom_call.1']
    #allocation21 [shape = 'u8[32768]{0}', space=vmem, size = 0x8000, scoped, tag = 'input window, operand 21, single buffered']
    #allocation22 [shape = 'u8[32768]{0}', space=vmem, size = 0x8000, scoped, tag = 'input window, operand 24, single buffered']
    #allocation23 [shape = 's32[1]{0}', space=sflag, size = 0x4, scoped, tag = 'scoped memory for tpu_custom_call.1']
    #allocation24 [shape = 'u8[32768]{0}', space=vmem, size = 0x8000, scoped, tag = 'input window, operand 26, single buffered']
    #allocation25 [shape = 'u8[32768]{0}', space=vmem, size = 0x8000, scoped, tag = 'input window, operand 29, single buffered']
    #allocation26 [shape = 's32[1]{0}', space=sflag, size = 0x4, scoped, tag = 'scoped memory for tpu_custom_call.1']
    %72 = vsyncpa [#allocation9], 0
    %73 = vsyncpa [#allocation11], 0
    %74 = vsyncpa [#allocation14], 0
    %75 = vsyncpa [#allocation17], 0
    %76 = vsyncpa [#allocation20], 0
    %77 = vsyncpa [#allocation23], 0
    %78 = vsyncpa [#allocation26], 0
    loop: start=0, step=1, limit=10
    $region2: #{tpu_custom_call.1} parent=1 // loop_pre_header
      _
    $region3: #{tpu_custom_call.1} parent=1 // loop_header
      %s80 = sphi 0, %s84
      %p81 = scmp.ge.s32.totalorder %s80, 10
      %s90 = sphi 0, %s92
      %s93 = sphi 0, %s90
      %s94 = sphi 0, %s93
      %s110 = sphi 0, %s94
      %s114 = sphi 0, %s114
      %s116 = sphi 0, %s114
      %s117 = sphi 0, %s116
      %s131 = sphi 0, %s117
      %s135 = sphi 0, %s135
      %s137 = sphi 0, %s135
      %s138 = sphi 0, %s137
      %s152 = sphi 0, %s138
      %s156 = sphi 0, %s156
      %s158 = sphi 0, %s156
      %s159 = sphi 0, %s158
      %s173 = sphi 0, %s159
      %s177 = sphi 0, %s177
      %s179 = sphi 0, %s177
      %s180 = sphi 0, %s179
      %s194 = sphi 0, %s180
      %s198 = sphi 0, %s198
      %s200 = sphi 0, %s198
      %s201 = sphi 0, %s200
      %s215 = sphi 0, %s201
      %s219 = sphi 0, %s219
      %s221 = sphi 0, %s219
      %s222 = sphi 0, %s221
      %s236 = sphi 0, %s222
      %s240 = sphi 0, %s240
      %s242 = sphi 0, %s240
      %s243 = sphi 0, %s242
      %s257 = sphi 0, %s243
      %s261 = sphi 0, %s261
      %s263 = sphi 0, %s261
      %s264 = sphi 0, %s263
      %s278 = sphi 0, %s264
      %s282 = sphi 0, %s282
      %s284 = sphi 0, %s282
      %s285 = sphi 0, %s284
      %s299 = sphi 0, %s285
      %s303 = sphi 0, %s303
      %s305 = sphi 0, %s303
      %s306 = sphi 0, %s305
      %s320 = sphi 0, %s306
      %s324 = sphi 0, %s324
      %s326 = sphi 0, %s324
      %s327 = sphi 0, %s326
      %s341 = sphi 0, %s327
      %s345 = sphi 0, %s345
      %s347 = sphi 0, %s345
      %s348 = sphi 0, %s347
      %s362 = sphi 0, %s348
      %s366 = sphi 0, %s366
      %s368 = sphi 0, %s366
      %s369 = sphi 0, %s368
      %s383 = sphi 0, %s369
      %s387 = sphi 0, %s387
      %s389 = sphi 0, %s387
      %s390 = sphi 0, %s389
      %s404 = sphi 0, %s390
      %s408 = sphi 0, %s408
      %s410 = sphi 0, %s408
      %s411 = sphi 0, %s410
      %s425 = sphi 0, %s411
      %s429 = sphi 0, %s429
      %s431 = sphi 0, %s429
      %s432 = sphi 0, %s431
      %s446 = sphi 0, %s432
      %s450 = sphi 0, %s450
      %s452 = sphi 0, %s450
      %s453 = sphi 0, %s452
      %s467 = sphi 0, %s453
      %s471 = sphi 0, %s471
      %s473 = sphi 0, %s471
      %s474 = sphi 0, %s473
      %s488 = sphi 0, %s474
      %s492 = sphi 0, %s492
      %s494 = sphi 0, %s492
      %s495 = sphi 0, %s494
      %s509 = sphi 0, %s495
      %s513 = sphi 0, %s513
      %s515 = sphi 0, %s513
      %s516 = sphi 0, %s515
      %s530 = sphi 0, %s516
      %s534 = sphi 0, %s534
      %s536 = sphi 0, %s534
      %s537 = sphi 0, %s536
      %s551 = sphi 0, %s537
      %s555 = sphi 0, %s555
      %s557 = sphi 0, %s555
      %s558 = sphi 0, %s557
      %s572 = sphi 0, %s558
      %s576 = sphi 0, %s576
      %s578 = sphi 0, %s576
      %s579 = sphi 0, %s578
      %s593 = sphi 0, %s579
      %s597 = sphi 0, %s597
      %s599 = sphi 0, %s597
      %s600 = sphi 0, %s599
      %s614 = sphi 0, %s600
      %s618 = sphi 0, %s618
      %s620 = sphi 0, %s618
      %s621 = sphi 0, %s620
      %s635 = sphi 0, %s621
      %s639 = sphi 0, %s639
      %s641 = sphi 0, %s639
      %s642 = sphi 0, %s641
      %s656 = sphi 0, %s642
      %s660 = sphi 0, %s660
      %s662 = sphi 0, %s660
      %s663 = sphi 0, %s662
      %s677 = sphi 0, %s663
      %s681 = sphi 0, %s681
      %s683 = sphi 0, %s681
      %s684 = sphi 0, %s683
      %s698 = sphi 0, %s684
    $region4: #{tpu_custom_call.1} parent=1 // loop_header_branch
      %83 = sbr.rel (%p81) target = $region8
    $region5: #{tpu_custom_call.1} parent=1 // loop_body
      %s85 = ssub.s32 %s80, 1
      %s86 = ssub.s32 %s80, 2
      %s87 = sadd.s32 %s80, 1
      %s88 = ssub.s32 %s80, %s87
      %p89 = scmp.eq.s32.totalorder %s88, 0
      %s91 = sadd.s32 %s90, 1
      %s92 = scalar_select %p89, %s90, %s91
      %p95 = pneg %p89
      %p96 = scmp.eq.s32.totalorder %s80, 7
      %p97 = por %p95, %p96
      %p98 = scmp.ne.s32.totalorder %s90, %s93
      %p99 = scmp.eq.s32.totalorder %s80, 0
      %p100 = por %p98, %p99
      %p101 = scmp.ne.s32.totalorder %s90, %s93
      %p102 = scmp.eq.s32.totalorder %s85, 7
      %p103 = por %p101, %p102
      %p104 = scmp.ne.s32.totalorder %s93, %s94
      %p105 = scmp.eq.s32.totalorder %s85, 0
      %p106 = por %p104, %p105
      %p107 = scmp.ne.s32.totalorder %s93, %s94
      %p108 = scmp.eq.s32.totalorder %s86, 7
      %p109 = por %p107, %p108
      %p111 = scmp.ne.s32.totalorder %s94, %s110
      %p112 = scmp.eq.s32.totalorder %s86, 0
      %p113 = por %p111, %p112
      %s115 = sadd.s32 %s114, 1
      %p118 = scmp.eq.s32.totalorder %s80, 7
      %p119 = scmp.ne.s32.totalorder %s114, %s116
      %p120 = scmp.eq.s32.totalorder %s80, 0
      %p121 = por %p119, %p120
      %p122 = scmp.ne.s32.totalorder %s114, %s116
      %p123 = scmp.eq.s32.totalorder %s85, 7
      %p124 = por %p122, %p123
      %p125 = scmp.ne.s32.totalorder %s116, %s117
      %p126 = scmp.eq.s32.totalorder %s85, 0
      %p127 = por %p125, %p126
      %p128 = scmp.ne.s32.totalorder %s116, %s117
      %p129 = scmp.eq.s32.totalorder %s86, 7
      %p130 = por %p128, %p129
      %p132 = scmp.ne.s32.totalorder %s117, %s131
      %p133 = scmp.eq.s32.totalorder %s86, 0
      %p134 = por %p132, %p133
      %s136 = sadd.s32 %s135, 1
      %p139 = scmp.eq.s32.totalorder %s80, 7
      %p140 = scmp.ne.s32.totalorder %s135, %s137
      %p141 = scmp.eq.s32.totalorder %s80, 0
      %p142 = por %p140, %p141
      %p143 = scmp.ne.s32.totalorder %s135, %s137
      %p144 = scmp.eq.s32.totalorder %s85, 7
      %p145 = por %p143, %p144
      %p146 = scmp.ne.s32.totalorder %s137, %s138
      %p147 = scmp.eq.s32.totalorder %s85, 0
      %p148 = por %p146, %p147
      %p149 = scmp.ne.s32.totalorder %s137, %s138
      %p150 = scmp.eq.s32.totalorder %s86, 7
      %p151 = por %p149, %p150
      %p153 = scmp.ne.s32.totalorder %s138, %s152
      %p154 = scmp.eq.s32.totalorder %s86, 0
      %p155 = por %p153, %p154
      %s157 = sadd.s32 %s156, 1
      %p160 = scmp.eq.s32.totalorder %s80, 7
      %p161 = scmp.ne.s32.totalorder %s156, %s158
      %p162 = scmp.eq.s32.totalorder %s80, 0
      %p163 = por %p161, %p162
      %p164 = scmp.ne.s32.totalorder %s156, %s158
      %p165 = scmp.eq.s32.totalorder %s85, 7
      %p166 = por %p164, %p165
      %p167 = scmp.ne.s32.totalorder %s158, %s159
      %p168 = scmp.eq.s32.totalorder %s85, 0
      %p169 = por %p167, %p168
      %p170 = scmp.ne.s32.totalorder %s158, %s159
      %p171 = scmp.eq.s32.totalorder %s86, 7
      %p172 = por %p170, %p171
      %p174 = scmp.ne.s32.totalorder %s159, %s173
      %p175 = scmp.eq.s32.totalorder %s86, 0
      %p176 = por %p174, %p175
      %s178 = sadd.s32 %s177, 1
      %p181 = scmp.eq.s32.totalorder %s80, 7
      %p182 = scmp.ne.s32.totalorder %s177, %s179
      %p183 = scmp.eq.s32.totalorder %s80, 0
      %p184 = por %p182, %p183
      %p185 = scmp.ne.s32.totalorder %s177, %s179
      %p186 = scmp.eq.s32.totalorder %s85, 7
      %p187 = por %p185, %p186
      %p188 = scmp.ne.s32.totalorder %s179, %s180
      %p189 = scmp.eq.s32.totalorder %s85, 0
      %p190 = por %p188, %p189
      %p191 = scmp.ne.s32.totalorder %s179, %s180
      %p192 = scmp.eq.s32.totalorder %s86, 7
      %p193 = por %p191, %p192
      %p195 = scmp.ne.s32.totalorder %s180, %s194
      %p196 = scmp.eq.s32.totalorder %s86, 0
      %p197 = por %p195, %p196
      %s199 = sadd.s32 %s198, 1
      %p202 = scmp.eq.s32.totalorder %s80, 7
      %p203 = scmp.ne.s32.totalorder %s198, %s200
      %p204 = scmp.eq.s32.totalorder %s80, 0
      %p205 = por %p203, %p204
      %p206 = scmp.ne.s32.totalorder %s198, %s200
      %p207 = scmp.eq.s32.totalorder %s85, 7
      %p208 = por %p206, %p207
      %p209 = scmp.ne.s32.totalorder %s200, %s201
      %p210 = scmp.eq.s32.totalorder %s85, 0
      %p211 = por %p209, %p210
      %p212 = scmp.ne.s32.totalorder %s200, %s201
      %p213 = scmp.eq.s32.totalorder %s86, 7
      %p214 = por %p212, %p213
      %p216 = scmp.ne.s32.totalorder %s201, %s215
      %p217 = scmp.eq.s32.totalorder %s86, 0
      %p218 = por %p216, %p217
      %s220 = sadd.s32 %s219, 1
      %p223 = scmp.eq.s32.totalorder %s80, 7
      %p224 = scmp.ne.s32.totalorder %s219, %s221
      %p225 = scmp.eq.s32.totalorder %s80, 0
      %p226 = por %p224, %p225
      %p227 = scmp.ne.s32.totalorder %s219, %s221
      %p228 = scmp.eq.s32.totalorder %s85, 7
      %p229 = por %p227, %p228
      %p230 = scmp.ne.s32.totalorder %s221, %s222
      %p231 = scmp.eq.s32.totalorder %s85, 0
      %p232 = por %p230, %p231
      %p233 = scmp.ne.s32.totalorder %s221, %s222
      %p234 = scmp.eq.s32.totalorder %s86, 7
      %p235 = por %p233, %p234
      %p237 = scmp.ne.s32.totalorder %s222, %s236
      %p238 = scmp.eq.s32.totalorder %s86, 0
      %p239 = por %p237, %p238
      %s241 = sadd.s32 %s240, 1
      %p244 = scmp.eq.s32.totalorder %s80, 7
      %p245 = scmp.ne.s32.totalorder %s240, %s242
      %p246 = scmp.eq.s32.totalorder %s80, 0
      %p247 = por %p245, %p246
      %p248 = scmp.ne.s32.totalorder %s240, %s242
      %p249 = scmp.eq.s32.totalorder %s85, 7
      %p250 = por %p248, %p249
      %p251 = scmp.ne.s32.totalorder %s242, %s243
      %p252 = scmp.eq.s32.totalorder %s85, 0
      %p253 = por %p251, %p252
      %p254 = scmp.ne.s32.totalorder %s242, %s243
      %p255 = scmp.eq.s32.totalorder %s86, 7
      %p256 = por %p254, %p255
      %p258 = scmp.ne.s32.totalorder %s243, %s257
      %p259 = scmp.eq.s32.totalorder %s86, 0
      %p260 = por %p258, %p259
      %s262 = sadd.s32 %s261, 1
      %p265 = scmp.eq.s32.totalorder %s80, 7
      %p266 = scmp.ne.s32.totalorder %s261, %s263
      %p267 = scmp.eq.s32.totalorder %s80, 0
      %p268 = por %p266, %p267
      %p269 = scmp.ne.s32.totalorder %s261, %s263
      %p270 = scmp.eq.s32.totalorder %s85, 7
      %p271 = por %p269, %p270
      %p272 = scmp.ne.s32.totalorder %s263, %s264
      %p273 = scmp.eq.s32.totalorder %s85, 0
      %p274 = por %p272, %p273
      %p275 = scmp.ne.s32.totalorder %s263, %s264
      %p276 = scmp.eq.s32.totalorder %s86, 7
      %p277 = por %p275, %p276
      %p279 = scmp.ne.s32.totalorder %s264, %s278
      %p280 = scmp.eq.s32.totalorder %s86, 0
      %p281 = por %p279, %p280
      %s283 = sadd.s32 %s282, 1
      %p286 = scmp.eq.s32.totalorder %s80, 7
      %p287 = scmp.ne.s32.totalorder %s282, %s284
      %p288 = scmp.eq.s32.totalorder %s80, 0
      %p289 = por %p287, %p288
      %p290 = scmp.ne.s32.totalorder %s282, %s284
      %p291 = scmp.eq.s32.totalorder %s85, 7
      %p292 = por %p290, %p291
      %p293 = scmp.ne.s32.totalorder %s284, %s285
      %p294 = scmp.eq.s32.totalorder %s85, 0
      %p295 = por %p293, %p294
      %p296 = scmp.ne.s32.totalorder %s284, %s285
      %p297 = scmp.eq.s32.totalorder %s86, 7
      %p298 = por %p296, %p297
      %p300 = scmp.ne.s32.totalorder %s285, %s299
      %p301 = scmp.eq.s32.totalorder %s86, 0
      %p302 = por %p300, %p301
      %s304 = sadd.s32 %s303, 1
      %p307 = scmp.eq.s32.totalorder %s80, 7
      %p308 = scmp.ne.s32.totalorder %s303, %s305
      %p309 = scmp.eq.s32.totalorder %s80, 0
      %p310 = por %p308, %p309
      %p311 = scmp.ne.s32.totalorder %s303, %s305
      %p312 = scmp.eq.s32.totalorder %s85, 7
      %p313 = por %p311, %p312
      %p314 = scmp.ne.s32.totalorder %s305, %s306
      %p315 = scmp.eq.s32.totalorder %s85, 0
      %p316 = por %p314, %p315
      %p317 = scmp.ne.s32.totalorder %s305, %s306
      %p318 = scmp.eq.s32.totalorder %s86, 7
      %p319 = por %p317, %p318
      %p321 = scmp.ne.s32.totalorder %s306, %s320
      %p322 = scmp.eq.s32.totalorder %s86, 0
      %p323 = por %p321, %p322
      %s325 = sadd.s32 %s324, 1
      %p328 = scmp.eq.s32.totalorder %s80, 7
      %p329 = scmp.ne.s32.totalorder %s324, %s326
      %p330 = scmp.eq.s32.totalorder %s80, 0
      %p331 = por %p329, %p330
      %p332 = scmp.ne.s32.totalorder %s324, %s326
      %p333 = scmp.eq.s32.totalorder %s85, 7
      %p334 = por %p332, %p333
      %p335 = scmp.ne.s32.totalorder %s326, %s327
      %p336 = scmp.eq.s32.totalorder %s85, 0
      %p337 = por %p335, %p336
      %p338 = scmp.ne.s32.totalorder %s326, %s327
      %p339 = scmp.eq.s32.totalorder %s86, 7
      %p340 = por %p338, %p339
      %p342 = scmp.ne.s32.totalorder %s327, %s341
      %p343 = scmp.eq.s32.totalorder %s86, 0
      %p344 = por %p342, %p343
      %s346 = sadd.s32 %s345, 1
      %p349 = scmp.eq.s32.totalorder %s80, 7
      %p350 = scmp.ne.s32.totalorder %s345, %s347
      %p351 = scmp.eq.s32.totalorder %s80, 0
      %p352 = por %p350, %p351
      %p353 = scmp.ne.s32.totalorder %s345, %s347
      %p354 = scmp.eq.s32.totalorder %s85, 7
      %p355 = por %p353, %p354
      %p356 = scmp.ne.s32.totalorder %s347, %s348
      %p357 = scmp.eq.s32.totalorder %s85, 0
      %p358 = por %p356, %p357
      %p359 = scmp.ne.s32.totalorder %s347, %s348
      %p360 = scmp.eq.s32.totalorder %s86, 7
      %p361 = por %p359, %p360
      %p363 = scmp.ne.s32.totalorder %s348, %s362
      %p364 = scmp.eq.s32.totalorder %s86, 0
      %p365 = por %p363, %p364
      %s367 = sadd.s32 %s366, 1
      %p370 = scmp.eq.s32.totalorder %s80, 7
      %p371 = scmp.ne.s32.totalorder %s366, %s368
      %p372 = scmp.eq.s32.totalorder %s80, 0
      %p373 = por %p371, %p372
      %p374 = scmp.ne.s32.totalorder %s366, %s368
      %p375 = scmp.eq.s32.totalorder %s85, 7
      %p376 = por %p374, %p375
      %p377 = scmp.ne.s32.totalorder %s368, %s369
      %p378 = scmp.eq.s32.totalorder %s85, 0
      %p379 = por %p377, %p378
      %p380 = scmp.ne.s32.totalorder %s368, %s369
      %p381 = scmp.eq.s32.totalorder %s86, 7
      %p382 = por %p380, %p381
      %p384 = scmp.ne.s32.totalorder %s369, %s383
      %p385 = scmp.eq.s32.totalorder %s86, 0
      %p386 = por %p384, %p385
      %s388 = sadd.s32 %s387, 1
      %p391 = scmp.eq.s32.totalorder %s80, 7
      %p392 = scmp.ne.s32.totalorder %s387, %s389
      %p393 = scmp.eq.s32.totalorder %s80, 0
      %p394 = por %p392, %p393
      %p395 = scmp.ne.s32.totalorder %s387, %s389
      %p396 = scmp.eq.s32.totalorder %s85, 7
      %p397 = por %p395, %p396
      %p398 = scmp.ne.s32.totalorder %s389, %s390
      %p399 = scmp.eq.s32.totalorder %s85, 0
      %p400 = por %p398, %p399
      %p401 = scmp.ne.s32.totalorder %s389, %s390
      %p402 = scmp.eq.s32.totalorder %s86, 7
      %p403 = por %p401, %p402
      %p405 = scmp.ne.s32.totalorder %s390, %s404
      %p406 = scmp.eq.s32.totalorder %s86, 0
      %p407 = por %p405, %p406
      %s409 = sadd.s32 %s408, 1
      %p412 = scmp.eq.s32.totalorder %s80, 7
      %p413 = scmp.ne.s32.totalorder %s408, %s410
      %p414 = scmp.eq.s32.totalorder %s80, 0
      %p415 = por %p413, %p414
      %p416 = scmp.ne.s32.totalorder %s408, %s410
      %p417 = scmp.eq.s32.totalorder %s85, 7
      %p418 = por %p416, %p417
      %p419 = scmp.ne.s32.totalorder %s410, %s411
      %p420 = scmp.eq.s32.totalorder %s85, 0
      %p421 = por %p419, %p420
      %p422 = scmp.ne.s32.totalorder %s410, %s411
      %p423 = scmp.eq.s32.totalorder %s86, 7
      %p424 = por %p422, %p423
      %p426 = scmp.ne.s32.totalorder %s411, %s425
      %p427 = scmp.eq.s32.totalorder %s86, 0
      %p428 = por %p426, %p427
      %s430 = sadd.s32 %s429, 1
      %p433 = scmp.eq.s32.totalorder %s80, 7
      %p434 = scmp.ne.s32.totalorder %s429, %s431
      %p435 = scmp.eq.s32.totalorder %s80, 0
      %p436 = por %p434, %p435
      %p437 = scmp.ne.s32.totalorder %s429, %s431
      %p438 = scmp.eq.s32.totalorder %s85, 7
      %p439 = por %p437, %p438
      %p440 = scmp.ne.s32.totalorder %s431, %s432
      %p441 = scmp.eq.s32.totalorder %s85, 0
      %p442 = por %p440, %p441
      %p443 = scmp.ne.s32.totalorder %s431, %s432
      %p444 = scmp.eq.s32.totalorder %s86, 7
      %p445 = por %p443, %p444
      %p447 = scmp.ne.s32.totalorder %s432, %s446
      %p448 = scmp.eq.s32.totalorder %s86, 0
      %p449 = por %p447, %p448
      %s451 = sadd.s32 %s450, 1
      %p454 = scmp.eq.s32.totalorder %s80, 7
      %p455 = scmp.ne.s32.totalorder %s450, %s452
      %p456 = scmp.eq.s32.totalorder %s80, 0
      %p457 = por %p455, %p456
      %p458 = scmp.ne.s32.totalorder %s450, %s452
      %p459 = scmp.eq.s32.totalorder %s85, 7
      %p460 = por %p458, %p459
      %p461 = scmp.ne.s32.totalorder %s452, %s453
      %p462 = scmp.eq.s32.totalorder %s85, 0
      %p463 = por %p461, %p462
      %p464 = scmp.ne.s32.totalorder %s452, %s453
      %p465 = scmp.eq.s32.totalorder %s86, 7
      %p466 = por %p464, %p465
      %p468 = scmp.ne.s32.totalorder %s453, %s467
      %p469 = scmp.eq.s32.totalorder %s86, 0
      %p470 = por %p468, %p469
      %s472 = sadd.s32 %s471, 1
      %p475 = scmp.eq.s32.totalorder %s80, 7
      %p476 = scmp.ne.s32.totalorder %s471, %s473
      %p477 = scmp.eq.s32.totalorder %s80, 0
      %p478 = por %p476, %p477
      %p479 = scmp.ne.s32.totalorder %s471, %s473
      %p480 = scmp.eq.s32.totalorder %s85, 7
      %p481 = por %p479, %p480
      %p482 = scmp.ne.s32.totalorder %s473, %s474
      %p483 = scmp.eq.s32.totalorder %s85, 0
      %p484 = por %p482, %p483
      %p485 = scmp.ne.s32.totalorder %s473, %s474
      %p486 = scmp.eq.s32.totalorder %s86, 7
      %p487 = por %p485, %p486
      %p489 = scmp.ne.s32.totalorder %s474, %s488
      %p490 = scmp.eq.s32.totalorder %s86, 0
      %p491 = por %p489, %p490
      %s493 = sadd.s32 %s492, 1
      %p496 = scmp.eq.s32.totalorder %s80, 7
      %p497 = scmp.ne.s32.totalorder %s492, %s494
      %p498 = scmp.eq.s32.totalorder %s80, 0
      %p499 = por %p497, %p498
      %p500 = scmp.ne.s32.totalorder %s492, %s494
      %p501 = scmp.eq.s32.totalorder %s85, 7
      %p502 = por %p500, %p501
      %p503 = scmp.ne.s32.totalorder %s494, %s495
      %p504 = scmp.eq.s32.totalorder %s85, 0
      %p505 = por %p503, %p504
      %p506 = scmp.ne.s32.totalorder %s494, %s495
      %p507 = scmp.eq.s32.totalorder %s86, 7
      %p508 = por %p506, %p507
      %p510 = scmp.ne.s32.totalorder %s495, %s509
      %p511 = scmp.eq.s32.totalorder %s86, 0
      %p512 = por %p510, %p511
      %s514 = sadd.s32 %s513, 1
      %p517 = scmp.eq.s32.totalorder %s80, 7
      %p518 = scmp.ne.s32.totalorder %s513, %s515
      %p519 = scmp.eq.s32.totalorder %s80, 0
      %p520 = por %p518, %p519
      %p521 = scmp.ne.s32.totalorder %s513, %s515
      %p522 = scmp.eq.s32.totalorder %s85, 7
      %p523 = por %p521, %p522
      %p524 = scmp.ne.s32.totalorder %s515, %s516
      %p525 = scmp.eq.s32.totalorder %s85, 0
      %p526 = por %p524, %p525
      %p527 = scmp.ne.s32.totalorder %s515, %s516
      %p528 = scmp.eq.s32.totalorder %s86, 7
      %p529 = por %p527, %p528
      %p531 = scmp.ne.s32.totalorder %s516, %s530
      %p532 = scmp.eq.s32.totalorder %s86, 0
      %p533 = por %p531, %p532
      %s535 = sadd.s32 %s534, 1
      %p538 = scmp.eq.s32.totalorder %s80, 7
      %p539 = scmp.ne.s32.totalorder %s534, %s536
      %p540 = scmp.eq.s32.totalorder %s80, 0
      %p541 = por %p539, %p540
      %p542 = scmp.ne.s32.totalorder %s534, %s536
      %p543 = scmp.eq.s32.totalorder %s85, 7
      %p544 = por %p542, %p543
      %p545 = scmp.ne.s32.totalorder %s536, %s537
      %p546 = scmp.eq.s32.totalorder %s85, 0
      %p547 = por %p545, %p546
      %p548 = scmp.ne.s32.totalorder %s536, %s537
      %p549 = scmp.eq.s32.totalorder %s86, 7
      %p550 = por %p548, %p549
      %p552 = scmp.ne.s32.totalorder %s537, %s551
      %p553 = scmp.eq.s32.totalorder %s86, 0
      %p554 = por %p552, %p553
      %s556 = sadd.s32 %s555, 1
      %p559 = scmp.eq.s32.totalorder %s80, 7
      %p560 = scmp.ne.s32.totalorder %s555, %s557
      %p561 = scmp.eq.s32.totalorder %s80, 0
      %p562 = por %p560, %p561
      %p563 = scmp.ne.s32.totalorder %s555, %s557
      %p564 = scmp.eq.s32.totalorder %s85, 7
      %p565 = por %p563, %p564
      %p566 = scmp.ne.s32.totalorder %s557, %s558
      %p567 = scmp.eq.s32.totalorder %s85, 0
      %p568 = por %p566, %p567
      %p569 = scmp.ne.s32.totalorder %s557, %s558
      %p570 = scmp.eq.s32.totalorder %s86, 7
      %p571 = por %p569, %p570
      %p573 = scmp.ne.s32.totalorder %s558, %s572
      %p574 = scmp.eq.s32.totalorder %s86, 0
      %p575 = por %p573, %p574
      %s577 = sadd.s32 %s576, 1
      %p580 = scmp.eq.s32.totalorder %s80, 7
      %p581 = scmp.ne.s32.totalorder %s576, %s578
      %p582 = scmp.eq.s32.totalorder %s80, 0
      %p583 = por %p581, %p582
      %p584 = scmp.ne.s32.totalorder %s576, %s578
      %p585 = scmp.eq.s32.totalorder %s85, 7
      %p586 = por %p584, %p585
      %p587 = scmp.ne.s32.totalorder %s578, %s579
      %p588 = scmp.eq.s32.totalorder %s85, 0
      %p589 = por %p587, %p588
      %p590 = scmp.ne.s32.totalorder %s578, %s579
      %p591 = scmp.eq.s32.totalorder %s86, 7
      %p592 = por %p590, %p591
      %p594 = scmp.ne.s32.totalorder %s579, %s593
      %p595 = scmp.eq.s32.totalorder %s86, 0
      %p596 = por %p594, %p595
      %s598 = sadd.s32 %s597, 1
      %p601 = scmp.eq.s32.totalorder %s80, 7
      %p602 = scmp.ne.s32.totalorder %s597, %s599
      %p603 = scmp.eq.s32.totalorder %s80, 0
      %p604 = por %p602, %p603
      %p605 = scmp.ne.s32.totalorder %s597, %s599
      %p606 = scmp.eq.s32.totalorder %s85, 7
      %p607 = por %p605, %p606
      %p608 = scmp.ne.s32.totalorder %s599, %s600
      %p609 = scmp.eq.s32.totalorder %s85, 0
      %p610 = por %p608, %p609
      %p611 = scmp.ne.s32.totalorder %s599, %s600
      %p612 = scmp.eq.s32.totalorder %s86, 7
      %p613 = por %p611, %p612
      %p615 = scmp.ne.s32.totalorder %s600, %s614
      %p616 = scmp.eq.s32.totalorder %s86, 0
      %p617 = por %p615, %p616
      %s619 = sadd.s32 %s618, 1
      %p622 = scmp.eq.s32.totalorder %s80, 7
      %p623 = scmp.ne.s32.totalorder %s618, %s620
      %p624 = scmp.eq.s32.totalorder %s80, 0
      %p625 = por %p623, %p624
      %p626 = scmp.ne.s32.totalorder %s618, %s620
      %p627 = scmp.eq.s32.totalorder %s85, 7
      %p628 = por %p626, %p627
      %p629 = scmp.ne.s32.totalorder %s620, %s621
      %p630 = scmp.eq.s32.totalorder %s85, 0
      %p631 = por %p629, %p630
      %p632 = scmp.ne.s32.totalorder %s620, %s621
      %p633 = scmp.eq.s32.totalorder %s86, 7
      %p634 = por %p632, %p633
      %p636 = scmp.ne.s32.totalorder %s621, %s635
      %p637 = scmp.eq.s32.totalorder %s86, 0
      %p638 = por %p636, %p637
      %s640 = sadd.s32 %s639, 1
      %p643 = scmp.eq.s32.totalorder %s80, 7
      %p644 = scmp.ne.s32.totalorder %s639, %s641
      %p645 = scmp.eq.s32.totalorder %s80, 0
      %p646 = por %p644, %p645
      %p647 = scmp.ne.s32.totalorder %s639, %s641
      %p648 = scmp.eq.s32.totalorder %s85, 7
      %p649 = por %p647, %p648
      %p650 = scmp.ne.s32.totalorder %s641, %s642
      %p651 = scmp.eq.s32.totalorder %s85, 0
      %p652 = por %p650, %p651
      %p653 = scmp.ne.s32.totalorder %s641, %s642
      %p654 = scmp.eq.s32.totalorder %s86, 7
      %p655 = por %p653, %p654
      %p657 = scmp.ne.s32.totalorder %s642, %s656
      %p658 = scmp.eq.s32.totalorder %s86, 0
      %p659 = por %p657, %p658
      %s661 = sadd.s32 %s660, 1
      %p664 = scmp.eq.s32.totalorder %s80, 7
      %p665 = scmp.ne.s32.totalorder %s660, %s662
      %p666 = scmp.eq.s32.totalorder %s80, 0
      %p667 = por %p665, %p666
      %p668 = scmp.ne.s32.totalorder %s660, %s662
      %p669 = scmp.eq.s32.totalorder %s85, 7
      %p670 = por %p668, %p669
      %p671 = scmp.ne.s32.totalorder %s662, %s663
      %p672 = scmp.eq.s32.totalorder %s85, 0
      %p673 = por %p671, %p672
      %p674 = scmp.ne.s32.totalorder %s662, %s663
      %p675 = scmp.eq.s32.totalorder %s86, 7
      %p676 = por %p674, %p675
      %p678 = scmp.ne.s32.totalorder %s663, %s677
      %p679 = scmp.eq.s32.totalorder %s86, 0
      %p680 = por %p678, %p679
      %s682 = sadd.s32 %s681, 1
      %p685 = scmp.eq.s32.totalorder %s80, 7
      %p686 = scmp.ne.s32.totalorder %s681, %s683
      %p687 = scmp.eq.s32.totalorder %s80, 0
      %p688 = por %p686, %p687
      %p689 = scmp.ne.s32.totalorder %s681, %s683
      %p690 = scmp.eq.s32.totalorder %s85, 7
      %p691 = por %p689, %p690
      %p692 = scmp.ne.s32.totalorder %s683, %s684
      %p693 = scmp.eq.s32.totalorder %s85, 0
      %p694 = por %p692, %p693
      %p695 = scmp.ne.s32.totalorder %s683, %s684
      %p696 = scmp.eq.s32.totalorder %s86, 7
      %p697 = por %p695, %p696
      %p699 = scmp.ne.s32.totalorder %s684, %s698
      %p700 = scmp.eq.s32.totalorder %s86, 0
      %p701 = por %p699, %p700
      %p702 = scmp.le.s32.totalorder 1, %s80
      %p703 = scmp.lt.s32.totalorder %s80, 9
      %p704 = pnand %p702, %p703
      %p705 = pneg %p704
      // Predicated region
      $region9: #{tpu_custom_call.1} parent=5 // pred_check
        _
      $region10: #{tpu_custom_call.1} parent=5 // pred_check_branch
        %707 = sbr.rel (%p704) target = $region12
      $region11: #{tpu_custom_call.1} parent=5 // pred_region
        %s708 = ssub.s32 %s80, 1
        // Predicated region
        $region13: #{tpu_custom_call.1} parent=11 // pred_check
          %p709 = pneg %p127
        $region14: #{tpu_custom_call.1} parent=11 // pred_check_branch
          %711 = sbr.rel (%p709) target = $region16
        $region15: #{tpu_custom_call.1} parent=11 // pred_region
          %s713 = ssub.s32 128, 128
          %714 = vsyncadd [#allocation9], %s713
          %s716 = sshll.u32 [#allocation8], 4
          %s717 = int_to_ptr.vmem [resolvable:$true] %s716
          %719 = dma.hbm_to_vmem [thread:$0]  %s7, 128, %s717, [#allocation9]
        $region16: #{tpu_custom_call.1} parent=11 // pred_fallthru
          _
        // Predicated region
        $region17: #{tpu_custom_call.1} parent=11 // pred_check
          %p720 = pneg %p148
        $region18: #{tpu_custom_call.1} parent=11 // pred_check_branch
          %722 = sbr.rel (%p720) target = $region20
        $region19: #{tpu_custom_call.1} parent=11 // pred_region
          _
        $region20: #{tpu_custom_call.1} parent=11 // pred_fallthru
          _
        // Predicated region
        $region21: #{tpu_custom_call.1} parent=11 // pred_check
          %p723 = pneg %p169
        $region22: #{tpu_custom_call.1} parent=11 // pred_check_branch
          %725 = sbr.rel (%p723) target = $region24
        $region23: #{tpu_custom_call.1} parent=11 // pred_region
          %s727 = ssub.s32 64, 64
          %728 = vsyncadd [#allocation11], %s727
          %s730 = sshll.u32 [#allocation10], 4
          %s731 = int_to_ptr.vmem [resolvable:$true] %s730
          %733 = dma.hbm_to_vmem [thread:$0]  %s11, 64, %s731, [#allocation11]
        $region24: #{tpu_custom_call.1} parent=11 // pred_fallthru
          _
        // Predicated region
        $region25: #{tpu_custom_call.1} parent=11 // pred_check
          %p734 = pneg %p190
        $region26: #{tpu_custom_call.1} parent=11 // pred_check_branch
          %736 = sbr.rel (%p734) target = $region28
        $region27: #{tpu_custom_call.1} parent=11 // pred_region
          %s738 = ssub.s32 64, 64
          %739 = vsyncadd [#allocation11], %s738
          %s741 = sshll.u32 [#allocation12], 4
          %s742 = int_to_ptr.vmem [resolvable:$true] %s741
          %744 = dma.hbm_to_vmem [thread:$0]  %s13, 64, %s742, [#allocation11]
        $region28: #{tpu_custom_call.1} parent=11 // pred_fallthru
          _
        // Predicated region
        $region29: #{tpu_custom_call.1} parent=11 // pred_check
          %p745 = pneg %p211
        $region30: #{tpu_custom_call.1} parent=11 // pred_check_branch
          %747 = sbr.rel (%p745) target = $region32
        $region31: #{tpu_custom_call.1} parent=11 // pred_region
          _
        $region32: #{tpu_custom_call.1} parent=11 // pred_fallthru
          _
        // Predicated region
        $region33: #{tpu_custom_call.1} parent=11 // pred_check
          %p748 = pneg %p232
        $region34: #{tpu_custom_call.1} parent=11 // pred_check_branch
          %750 = sbr.rel (%p748) target = $region36
        $region35: #{tpu_custom_call.1} parent=11 // pred_region
          _
        $region36: #{tpu_custom_call.1} parent=11 // pred_fallthru
          _
        // Predicated region
        $region37: #{tpu_custom_call.1} parent=11 // pred_check
          %p751 = pneg %p253
        $region38: #{tpu_custom_call.1} parent=11 // pred_check_branch
          %753 = sbr.rel (%p751) target = $region40
        $region39: #{tpu_custom_call.1} parent=11 // pred_region
          %s755 = ssub.s32 16, 16
          %756 = vsyncadd [#allocation14], %s755
          %s758 = sshll.u32 [#allocation13], 4
          %s759 = int_to_ptr.vmem [resolvable:$true] %s758
          %761 = dma.hbm_to_vmem [thread:$0]  %s19, 16, %s759, [#allocation14]
        $region40: #{tpu_custom_call.1} parent=11 // pred_fallthru
          _
        // Predicated region
        $region41: #{tpu_custom_call.1} parent=11 // pred_check
          %p762 = pneg %p274
        $region42: #{tpu_custom_call.1} parent=11 // pred_check_branch
          %764 = sbr.rel (%p762) target = $region44
        $region43: #{tpu_custom_call.1} parent=11 // pred_region
          %s766 = ssub.s32 16, 16
          %767 = vsyncadd [#allocation14], %s766
          %s769 = sshll.u32 [#allocation15], 4
          %s770 = int_to_ptr.vmem [resolvable:$true] %s769
          %772 = dma.hbm_to_vmem [thread:$0]  %s21, 16, %s770, [#allocation14]
        $region44: #{tpu_custom_call.1} parent=11 // pred_fallthru
          _
        // Predicated region
        $region45: #{tpu_custom_call.1} parent=11 // pred_check
          %p773 = pneg %p295
        $region46: #{tpu_custom_call.1} parent=11 // pred_check_branch
          %775 = sbr.rel (%p773) target = $region48
        $region47: #{tpu_custom_call.1} parent=11 // pred_region
          %s777 = ssub.s32 16, 16
          %778 = vsyncadd [#allocation17], %s777
          %s780 = sshll.u32 [#allocation16], 4
          %s781 = int_to_ptr.vmem [resolvable:$true] %s780
          %783 = dma.hbm_to_vmem [thread:$0]  %s23, 16, %s781, [#allocation17]
        $region48: #{tpu_custom_call.1} parent=11 // pred_fallthru
          _
        // Predicated region
        $region49: #{tpu_custom_call.1} parent=11 // pred_check
          %p784 = pneg %p316
        $region50: #{tpu_custom_call.1} parent=11 // pred_check_branch
          %786 = sbr.rel (%p784) target = $region52
        $region51: #{tpu_custom_call.1} parent=11 // pred_region
          _
        $region52: #{tpu_custom_call.1} parent=11 // pred_fallthru
          _
        // Predicated region
        $region53: #{tpu_custom_call.1} parent=11 // pred_check
          %p787 = pneg %p337
        $region54: #{tpu_custom_call.1} parent=11 // pred_check_branch
          %789 = sbr.rel (%p787) target = $region56
        $region55: #{tpu_custom_call.1} parent=11 // pred_region
          %s791 = ssub.s32 16, 16
          %792 = vsyncadd [#allocation17], %s791
          %s794 = sshll.u32 [#allocation18], 4
          %s795 = int_to_ptr.vmem [resolvable:$true] %s794
          %797 = dma.hbm_to_vmem [thread:$0]  %s27, 16, %s795, [#allocation17]
        $region56: #{tpu_custom_call.1} parent=11 // pred_fallthru
          _
        // Predicated region
        $region57: #{tpu_custom_call.1} parent=11 // pred_check
          %p798 = pneg %p358
        $region58: #{tpu_custom_call.1} parent=11 // pred_check_branch
          %800 = sbr.rel (%p798) target = $region60
        $region59: #{tpu_custom_call.1} parent=11 // pred_region
          _
        $region60: #{tpu_custom_call.1} parent=11 // pred_fallthru
          _
        // Predicated region
        $region61: #{tpu_custom_call.1} parent=11 // pred_check
          %p801 = pneg %p379
        $region62: #{tpu_custom_call.1} parent=11 // pred_check_branch
          %803 = sbr.rel (%p801) target = $region64
        $region63: #{tpu_custom_call.1} parent=11 // pred_region
          _
        $region64: #{tpu_custom_call.1} parent=11 // pred_fallthru
          _
        // Predicated region
        $region65: #{tpu_custom_call.1} parent=11 // pred_check
          %p804 = pneg %p400
        $region66: #{tpu_custom_call.1} parent=11 // pred_check_branch
          %806 = sbr.rel (%p804) target = $region68
        $region67: #{tpu_custom_call.1} parent=11 // pred_region
          _
        $region68: #{tpu_custom_call.1} parent=11 // pred_fallthru
          _
        // Predicated region
        $region69: #{tpu_custom_call.1} parent=11 // pred_check
          %p807 = pneg %p421
        $region70: #{tpu_custom_call.1} parent=11 // pred_check_branch
          %809 = sbr.rel (%p807) target = $region72
        $region71: #{tpu_custom_call.1} parent=11 // pred_region
          _
        $region72: #{tpu_custom_call.1} parent=11 // pred_fallthru
          _
        // Predicated region
        $region73: #{tpu_custom_call.1} parent=11 // pred_check
          %p810 = pneg %p442
        $region74: #{tpu_custom_call.1} parent=11 // pred_check_branch
          %812 = sbr.rel (%p810) target = $region76
        $region75: #{tpu_custom_call.1} parent=11 // pred_region
          %s814 = ssub.s32 16, 16
          %815 = vsyncadd [#allocation20], %s814
          %s817 = sshll.u32 [#allocation19], 4
          %s818 = int_to_ptr.vmem [resolvable:$true] %s817
          %820 = dma.hbm_to_vmem [thread:$0]  %s37, 16, %s818, [#allocation20]
        $region76: #{tpu_custom_call.1} parent=11 // pred_fallthru
          _
        // Predicated region
        $region77: #{tpu_custom_call.1} parent=11 // pred_check
          %p821 = pneg %p463
        $region78: #{tpu_custom_call.1} parent=11 // pred_check_branch
          %823 = sbr.rel (%p821) target = $region80
        $region79: #{tpu_custom_call.1} parent=11 // pred_region
          _
        $region80: #{tpu_custom_call.1} parent=11 // pred_fallthru
          _
        // Predicated region
        $region81: #{tpu_custom_call.1} parent=11 // pred_check
          %p824 = pneg %p484
        $region82: #{tpu_custom_call.1} parent=11 // pred_check_branch
          %826 = sbr.rel (%p824) target = $region84
        $region83: #{tpu_custom_call.1} parent=11 // pred_region
          _
        $region84: #{tpu_custom_call.1} parent=11 // pred_fallthru
          _
        // Predicated region
        $region85: #{tpu_custom_call.1} parent=11 // pred_check
          %p827 = pneg %p505
        $region86: #{tpu_custom_call.1} parent=11 // pred_check_branch
          %829 = sbr.rel (%p827) target = $region88
        $region87: #{tpu_custom_call.1} parent=11 // pred_region
          %s831 = ssub.s32 1024, 1024
          %832 = vsyncadd [#allocation20], %s831
          %s833 = sshll.u32 [#allocation21], 4
          %s834 = int_to_ptr.vmem [resolvable:$true] %s833
          %839 = dma.hbm_to_vmem [thread:$0]  %s43, 1024, %s834, [#allocation20], 64, 64, 4
        $region88: #{tpu_custom_call.1} parent=11 // pred_fallthru
          _
        // Predicated region
        $region89: #{tpu_custom_call.1} parent=11 // pred_check
          %p840 = pneg %p526
        $region90: #{tpu_custom_call.1} parent=11 // pred_check_branch
          %842 = sbr.rel (%p840) target = $region92
        $region91: #{tpu_custom_call.1} parent=11 // pred_region
          _
        $region92: #{tpu_custom_call.1} parent=11 // pred_fallthru
          _
        // Predicated region
        $region93: #{tpu_custom_call.1} parent=11 // pred_check
          %p843 = pneg %p547
        $region94: #{tpu_custom_call.1} parent=11 // pred_check_branch
          %845 = sbr.rel (%p843) target = $region96
        $region95: #{tpu_custom_call.1} parent=11 // pred_region
          _
        $region96: #{tpu_custom_call.1} parent=11 // pred_fallthru
          _
        // Predicated region
        $region97: #{tpu_custom_call.1} parent=11 // pred_check
          %p846 = pneg %p568
        $region98: #{tpu_custom_call.1} parent=11 // pred_check_branch
          %848 = sbr.rel (%p846) target = $region100
        $region99: #{tpu_custom_call.1} parent=11 // pred_region
          %s850 = ssub.s32 1024, 1024
          %851 = vsyncadd [#allocation23], %s850
          %s852 = sshll.u32 [#allocation22], 4
          %s853 = int_to_ptr.vmem [resolvable:$true] %s852
          %858 = dma.hbm_to_vmem [thread:$0]  %s49, 1024, %s853, [#allocation23], 64, 64, 4
        $region100: #{tpu_custom_call.1} parent=11 // pred_fallthru
          _
        // Predicated region
        $region101: #{tpu_custom_call.1} parent=11 // pred_check
          %p859 = pneg %p589
        $region102: #{tpu_custom_call.1} parent=11 // pred_check_branch
          %861 = sbr.rel (%p859) target = $region104
        $region103: #{tpu_custom_call.1} parent=11 // pred_region
          _
        $region104: #{tpu_custom_call.1} parent=11 // pred_fallthru
          _
        // Predicated region
        $region105: #{tpu_custom_call.1} parent=11 // pred_check
          %p862 = pneg %p610
        $region106: #{tpu_custom_call.1} parent=11 // pred_check_branch
          %864 = sbr.rel (%p862) target = $region108
        $region107: #{tpu_custom_call.1} parent=11 // pred_region
          %s866 = ssub.s32 1024, 1024
          %867 = vsyncadd [#allocation23], %s866
          %s868 = sshll.u32 [#allocation24], 4
          %s869 = int_to_ptr.vmem [resolvable:$true] %s868
          %874 = dma.hbm_to_vmem [thread:$0]  %s53, 1024, %s869, [#allocation23], 64, 64, 4
        $region108: #{tpu_custom_call.1} parent=11 // pred_fallthru
          _
        // Predicated region
        $region109: #{tpu_custom_call.1} parent=11 // pred_check
          %p875 = pneg %p631
        $region110: #{tpu_custom_call.1} parent=11 // pred_check_branch
          %877 = sbr.rel (%p875) target = $region112
        $region111: #{tpu_custom_call.1} parent=11 // pred_region
          _
        $region112: #{tpu_custom_call.1} parent=11 // pred_fallthru
          _
        // Predicated region
        $region113: #{tpu_custom_call.1} parent=11 // pred_check
          %p878 = pneg %p652
        $region114: #{tpu_custom_call.1} parent=11 // pred_check_branch
          %880 = sbr.rel (%p878) target = $region116
        $region115: #{tpu_custom_call.1} parent=11 // pred_region
          _
        $region116: #{tpu_custom_call.1} parent=11 // pred_fallthru
          _
        // Predicated region
        $region117: #{tpu_custom_call.1} parent=11 // pred_check
          %p881 = pneg %p673
        $region118: #{tpu_custom_call.1} parent=11 // pred_check_branch
          %883 = sbr.rel (%p881) target = $region120
        $region119: #{tpu_custom_call.1} parent=11 // pred_region
          %s885 = ssub.s32 1024, 1024
          %886 = vsyncadd [#allocation26], %s885
          %s887 = sshll.u32 [#allocation25], 4
          %s888 = int_to_ptr.vmem [resolvable:$true] %s887
          %893 = dma.hbm_to_vmem [thread:$0]  %s59, 1024, %s888, [#allocation26], 64, 64, 4
        $region120: #{tpu_custom_call.1} parent=11 // pred_fallthru
          _
      $region12: #{tpu_custom_call.1} parent=5 // pred_fallthru
        _
      %p894 = scmp.lt.s32.totalorder %s80, 8
      // Predicated region
      $region121: #{tpu_custom_call.1} parent=5 // pred_check
        %p895 = pneg %p894
      $region122: #{tpu_custom_call.1} parent=5 // pred_check_branch
        %897 = sbr.rel (%p895) target = $region124
      $region123: #{tpu_custom_call.1} parent=5 // pred_region
        // Predicated region
        $region125: #{tpu_custom_call.1} parent=123 // pred_check
          %p898 = pneg %p100
        $region126: #{tpu_custom_call.1} parent=123 // pred_check_branch
          %900 = sbr.rel (%p898) target = $region128
        $region127: #{tpu_custom_call.1} parent=123 // pred_region
          %p901 = scmp.lt.s32.totalorder %s80, 7
          %s902 = scalar_select %p901, %s80, 7
          %s903 = smul.addr %s902, 4
          %s904 = smul.addr %s903, 8
          %s905 = scalar_lea.vmem %s5, %s904
        $region128: #{tpu_custom_call.1} parent=123 // pred_fallthru
          _
      $region124: #{tpu_custom_call.1} parent=5 // pred_fallthru
        _
      %p906 = scmp.le.s32.totalorder 1, %s80
      %p907 = scmp.lt.s32.totalorder %s80, 9
      %p908 = pnand %p906, %p907
      %p909 = pneg %p908
      // Predicated region
      $region129: #{tpu_custom_call.1} parent=5 // pred_check
        _
      $region130: #{tpu_custom_call.1} parent=5 // pred_check_branch
        %911 = sbr.rel (%p908) target = $region132
      $region131: #{tpu_custom_call.1} parent=5 // pred_region
        %s912 = ssub.s32 %s80, 1
        // Predicated region
        $region133: #{tpu_custom_call.1} parent=131 // pred_check
          %p913 = pneg %p127
        $region134: #{tpu_custom_call.1} parent=131 // pred_check_branch
          %915 = sbr.rel (%p913) target = $region136
        $region135: #{tpu_custom_call.1} parent=131 // pred_region
          %916 = dma.done [#allocation9], 128
        $region136: #{tpu_custom_call.1} parent=131 // pred_fallthru
          _
        // Predicated region
        $region137: #{tpu_custom_call.1} parent=131 // pred_check
          %p917 = pneg %p169
        $region138: #{tpu_custom_call.1} parent=131 // pred_check_branch
          %919 = sbr.rel (%p917) target = $region140
        $region139: #{tpu_custom_call.1} parent=131 // pred_region
          %920 = dma.done [#allocation11], 64
        $region140: #{tpu_custom_call.1} parent=131 // pred_fallthru
          _
        // Predicated region
        $region141: #{tpu_custom_call.1} parent=131 // pred_check
          %p921 = pneg %p190
        $region142: #{tpu_custom_call.1} parent=131 // pred_check_branch
          %923 = sbr.rel (%p921) target = $region144
        $region143: #{tpu_custom_call.1} parent=131 // pred_region
          %924 = dma.done [#allocation11], 64
        $region144: #{tpu_custom_call.1} parent=131 // pred_fallthru
          _
        // Predicated region
        $region145: #{tpu_custom_call.1} parent=131 // pred_check
          %p925 = pneg %p253
        $region146: #{tpu_custom_call.1} parent=131 // pred_check_branch
          %927 = sbr.rel (%p925) target = $region148
        $region147: #{tpu_custom_call.1} parent=131 // pred_region
          %928 = dma.done [#allocation14], 16
        $region148: #{tpu_custom_call.1} parent=131 // pred_fallthru
          _
        // Predicated region
        $region149: #{tpu_custom_call.1} parent=131 // pred_check
          %p929 = pneg %p274
        $region150: #{tpu_custom_call.1} parent=131 // pred_check_branch
          %931 = sbr.rel (%p929) target = $region152
        $region151: #{tpu_custom_call.1} parent=131 // pred_region
          %932 = dma.done [#allocation14], 16
        $region152: #{tpu_custom_call.1} parent=131 // pred_fallthru
          _
        // Predicated region
        $region153: #{tpu_custom_call.1} parent=131 // pred_check
          %p933 = pneg %p295
        $region154: #{tpu_custom_call.1} parent=131 // pred_check_branch
          %935 = sbr.rel (%p933) target = $region156
        $region155: #{tpu_custom_call.1} parent=131 // pred_region
          %936 = dma.done [#allocation17], 16
        $region156: #{tpu_custom_call.1} parent=131 // pred_fallthru
          _
        // Predicated region
        $region157: #{tpu_custom_call.1} parent=131 // pred_check
          %p937 = pneg %p337
        $region158: #{tpu_custom_call.1} parent=131 // pred_check_branch
          %939 = sbr.rel (%p937) target = $region160
        $region159: #{tpu_custom_call.1} parent=131 // pred_region
          %940 = dma.done [#allocation17], 16
        $region160: #{tpu_custom_call.1} parent=131 // pred_fallthru
          _
        // Predicated region
        $region161: #{tpu_custom_call.1} parent=131 // pred_check
          %p941 = pneg %p442
        $region162: #{tpu_custom_call.1} parent=131 // pred_check_branch
          %943 = sbr.rel (%p941) target = $region164
        $region163: #{tpu_custom_call.1} parent=131 // pred_region
          %944 = dma.done [#allocation20], 16
        $region164: #{tpu_custom_call.1} parent=131 // pred_fallthru
          _
        // Predicated region
        $region165: #{tpu_custom_call.1} parent=131 // pred_check
          %p945 = pneg %p505
        $region166: #{tpu_custom_call.1} parent=131 // pred_check_branch
          %947 = sbr.rel (%p945) target = $region168
        $region167: #{tpu_custom_call.1} parent=131 // pred_region
          %948 = dma.done [#allocation20], 1024
        $region168: #{tpu_custom_call.1} parent=131 // pred_fallthru
          _
        // Predicated region
        $region169: #{tpu_custom_call.1} parent=131 // pred_check
          %p949 = pneg %p568
        $region170: #{tpu_custom_call.1} parent=131 // pred_check_branch
          %951 = sbr.rel (%p949) target = $region172
        $region171: #{tpu_custom_call.1} parent=131 // pred_region
          %952 = dma.done [#allocation23], 1024
        $region172: #{tpu_custom_call.1} parent=131 // pred_fallthru
          _
        // Predicated region
        $region173: #{tpu_custom_call.1} parent=131 // pred_check
          %p953 = pneg %p610
        $region174: #{tpu_custom_call.1} parent=131 // pred_check_branch
          %955 = sbr.rel (%p953) target = $region176
        $region175: #{tpu_custom_call.1} parent=131 // pred_region
          %956 = dma.done [#allocation23], 1024
        $region176: #{tpu_custom_call.1} parent=131 // pred_fallthru
          _
        // Predicated region
        $region177: #{tpu_custom_call.1} parent=131 // pred_check
          %p957 = pneg %p673
        $region178: #{tpu_custom_call.1} parent=131 // pred_check_branch
          %959 = sbr.rel (%p957) target = $region180
        $region179: #{tpu_custom_call.1} parent=131 // pred_region
          %960 = dma.done [#allocation26], 1024
        $region180: #{tpu_custom_call.1} parent=131 // pred_fallthru
          _
        %p961 = scmp.lt.s32.totalorder %s85, 7
        %s962 = scalar_select %p961, %s85, 7
        %s963 = smul.addr %s962, 4
        %s964 = smul.addr %s963, 8
        %s965 = scalar_lea.vmem %s5, %s964
        %p966 = pneg %p106
        %p967 = pneg %p103
        %p968 = pneg %p127
        %p969 = pneg %p124
        %p970 = pneg %p148
        %p971 = pneg %p145
        %p972 = pneg %p169
        %p973 = pneg %p166
        %p974 = pneg %p190
        %p975 = pneg %p187
        %p976 = pneg %p211
        %p977 = pneg %p208
        %p978 = pneg %p232
        %p979 = pneg %p229
        %p980 = pneg %p253
        %p981 = pneg %p250
        %p982 = pneg %p274
        %p983 = pneg %p271
        %p984 = pneg %p295
        %p985 = pneg %p292
        %p986 = pneg %p316
        %p987 = pneg %p313
        %p988 = pneg %p337
        %p989 = pneg %p334
        %p990 = pneg %p358
        %p991 = pneg %p355
        %p992 = pneg %p379
        %p993 = pneg %p376
        %p994 = pneg %p400
        %p995 = pneg %p397
        %p996 = pneg %p421
        %p997 = pneg %p418
        %p998 = pneg %p442
        %p999 = pneg %p439
        %p1000 = pneg %p463
        %p1001 = pneg %p460
        %p1002 = pneg %p484
        %p1003 = pneg %p481
        %p1004 = pneg %p505
        %p1005 = pneg %p502
        %p1006 = pneg %p526
        %p1007 = pneg %p523
        %p1008 = pneg %p547
        %p1009 = pneg %p544
        %p1010 = pneg %p568
        %p1011 = pneg %p565
        %p1012 = pneg %p589
        %p1013 = pneg %p586
        %p1014 = pneg %p610
        %p1015 = pneg %p607
        %p1016 = pneg %p631
        %p1017 = pneg %p628
        %p1018 = pneg %p652
        %p1019 = pneg %p649
        %p1020 = pneg %p673
        %p1021 = pneg %p670
        %p1022 = pneg %p694
        %p1023 = pneg %p691
        %p1024 = scmp.lt.s32.totalorder %s85, 7
        %s1025 = scalar_select %p1024, %s85, 7
        %s1026 = smul.addr %s1025, 4
        %s1027 = smul.addr %s1026, 8
        %s1028 = scalar_lea.vmem %s5, %s1027
        %v1030 = vld [vmem:[%s1028] sm:$0xff]
        %v1031 = vld [vmem:[%s1028 + $0x8] sm:$0xff]
        %v1032 = vld [vmem:[%s1028 + $0x10] sm:$0xff]
        %v1033 = vld [vmem:[%s1028 + $0x18] sm:$0xff]
        %v1034 = vld [vmem:[#allocation12] sm:$0x7]
        %v1035 = vpack.c.bf16 %v1031, %v1030
        %v1036 = vpack.c.bf16 %v1033, %v1032
        %v1037 = vld [vmem:[%s15] sm:$0x1]
        %v1039 = vlaneseq
        %v1040 = vshrl.u32 %v1039, 7
        %v1041 = vsub.s32 0, %v1040
        %v1042 = vrot.slane %v1037, %v1041
        %vm1044 = vcmask 48128
        %v1046 = vsel %vm1044, %v1035, 0
        %v1049 = vsel %vm1044, %v1036, 0
        %vm1051 = vcmask 1042432
        %v1053 = vsel %vm1051, %v1034, 0
        %1055 = vmatprep.subr.bf16.mxu0 0
        %1056 = vmatpush1.bf16.msra.mxu0 0
        %1057 = vmatprep.subr.bf16.mxu0 0
        %1058 = vmatpush1.bf16.msra.mxu0 0
        %1059 = vmatprep.subr.bf16.mxu0 0
        %1060 = vmatpush1.bf16.msra.mxu0 0
        %1061 = vmatprep.subr.bf16.mxu0 0
        %1062 = vmatpush1.bf16.msra.mxu0 0
        %1063 = vmatprep.subr.bf16.mxu0 0
        %1064 = vmatpush1.bf16.msra.mxu0 0
        %1065 = vmatprep.subr.bf16.mxu0 0
        %1066 = vmatpush1.bf16.msra.mxu0 0
        %1067 = vmatprep.subr.bf16.mxu0 0
        %1068 = vmatpush1.bf16.msra.mxu0 0
        %1069 = vmatprep.subr.bf16.mxu0 0
        %1070 = vmatpush1.bf16.msra.mxu0 %v1053
        %1071 = vmatprep.subr.bf16.mxu0 0
        %1072 = vmatpush2.bf16.msra.mxu0 0
        %1073 = vmatprep.subr.bf16.mxu0 0
        %1074 = vmatpush2.bf16.msra.mxu0 0
        %1075 = vmatprep.subr.bf16.mxu0 0
        %1076 = vmatpush2.bf16.msra.mxu0 0
        %1077 = vmatprep.subr.bf16.mxu0 0
        %1078 = vmatpush2.bf16.msra.mxu0 0
        %1079 = vmatprep.subr.bf16.mxu0 0
        %1080 = vmatpush2.bf16.msra.mxu0 0
        %1081 = vmatprep.subr.bf16.mxu0 0
        %1082 = vmatpush2.bf16.msra.mxu0 0
        %1083 = vmatprep.subr.bf16.mxu0 0
        %1084 = vmatpush2.bf16.msra.mxu0 0
        %1085 = vmatprep.subr.bf16.mxu0 0
        %1086 = vmatpush2.bf16.msra.mxu0 0
        %1087 = vmatprep.mubr.bf16.mxu0 0
        %1088 = vmatmul.mubr.bf16.gmra.mxu0 %v1046
        %v1089 = vpop.f32.mrf.mxu0
        %v1090 = vadd.f32 %v1042, %v1089
        %v1091 = vpop.f32.mrf.mxu0
        %v1092 = vpop.f32.mrf.mxu0
        %v1093 = vadd.f32 %v1042, %v1092
        %v1094 = vpop.f32.mrf.mxu0
        %1095 = vmatprep.mubr.bf16.mxu0 0
        %1096 = vmatmul.mubr.bf16.gmra.mxu0 %v1049
        %v1097 = vpop.f32.mrf.mxu0
        %v1098 = vadd.f32 %v1042, %v1097
        %v1099 = vpop.f32.mrf.mxu0
        %v1100 = vpop.f32.mrf.mxu0
        %v1101 = vadd.f32 %v1042, %v1100
        %v1102 = vpop.f32.mrf.mxu0
        %1103 = vdwg.mxu0
        %v1104 = vmax.f32 %v1090, %v1093
        %v1105 = vmax.f32 %v1098, %v1101
        %v1106 = vmax.f32 %v1104, %v1105
        %v1107 = vrot.slane %v1106, 4
        %v1108 = vmax.f32 %v1106, %v1107
        %v1109 = vrot.slane %v1108, 2
        %v1110 = vmax.f32 %v1108, %v1109
        %v1111 = vrot.slane %v1110, 1
        %v1112 = vmax.f32 %v1110, %v1111
        %s1113 = scalar_lea.vmem [#allocation2], %s85
        %1114 = vst [vmem:[%s1113] sm:$0x1] %v1112
        %p1115 = scmp.eq.s32.totalorder %s85, 7
        // Predicated region
        $region181: #{tpu_custom_call.1} parent=131 // pred_check
          %p1116 = pneg %p1115
        $region182: #{tpu_custom_call.1} parent=131 // pred_check_branch
          %1118 = sbr.rel (%p1116) target = $region184
        $region183: #{tpu_custom_call.1} parent=131 // pred_region
          %v1119 = vld [vmem:[#allocation2] sm:$0xff]
          %v1120 = vmax.f32 %v1119, 0.0
          %v1121 = vld [vmem:[#allocation8] sm:$0xff]
          %v1122 = vld [vmem:[%s9] sm:$0xff]
          %v1123 = vld [vmem:[%s17] sm:$0xf]
          %v1124 = vld [vmem:[%s17 + $0x4] sm:$0xf]
          %v1125 = vld [vmem:[%s17 + $0x8] sm:$0xf]
          %v1126 = vld [vmem:[%s17 + $0xc] sm:$0xf]
          %v1127 = vld [vmem:[%s17 + $0x10] sm:$0xf]
          %v1128 = vld [vmem:[%s17 + $0x14] sm:$0xf]
          %v1129 = vld [vmem:[%s17 + $0x18] sm:$0xf]
          %v1130 = vld [vmem:[%s17 + $0x1c] sm:$0xf]
          %v1131 = vld [vmem:[%s17 + $0x20] sm:$0xf]
          %v1132 = vld [vmem:[%s17 + $0x24] sm:$0xf]
          %v1133 = vld [vmem:[%s17 + $0x28] sm:$0xf]
          %v1134 = vld [vmem:[%s17 + $0x2c] sm:$0xf]
          %v1135 = vld [vmem:[%s17 + $0x30] sm:$0xf]
          %v1136 = vld [vmem:[%s17 + $0x34] sm:$0xf]
          %v1137 = vld [vmem:[%s17 + $0x38] sm:$0xf]
          %v1138 = vld [vmem:[%s17 + $0x3c] sm:$0xf]
          %v1139 = vpack.c.bf16 %v1120, %v1120
          %v1140 = vld [vmem:[#allocation13] sm:$0x1]
          %v1142 = vlaneseq
          %v1143 = vshrl.u32 %v1142, 7
          %v1144 = vsub.s32 0, %v1143
          %v1145 = vrot.slane %v1140, %v1144
          %v1163 = vunpack.c.l.b16 %v1123
          %v1164 = vunpack.c.l.b16 %v1124
          %v1165 = vunpack.c.l.b16 %v1125
          %v1166 = vunpack.c.l.b16 %v1126
          %v1167 = vunpack.c.l.b16 %v1127
          %v1168 = vunpack.c.l.b16 %v1128
          %v1169 = vunpack.c.l.b16 %v1129
          %v1170 = vunpack.c.l.b16 %v1130
          %v1171 = vunpack.c.l.b16 %v1131
          %v1172 = vunpack.c.l.b16 %v1132
          %v1173 = vunpack.c.l.b16 %v1133
          %v1174 = vunpack.c.l.b16 %v1134
          %v1175 = vunpack.c.l.b16 %v1135
          %v1176 = vunpack.c.l.b16 %v1136
          %v1177 = vunpack.c.l.b16 %v1137
          %v1178 = vunpack.c.l.b16 %v1138
          %v1179 = vpack.c.b16 %v1164, %v1163
          %v1180 = vpack.c.b16 %v1166, %v1165
          %v1181 = vpack.c.b16 %v1168, %v1167
          %v1182 = vpack.c.b16 %v1170, %v1169
          %v1183 = vpack.c.b16 %v1172, %v1171
          %v1184 = vpack.c.b16 %v1174, %v1173
          %v1185 = vpack.c.b16 %v1176, %v1175
          %v1186 = vpack.c.b16 %v1178, %v1177
          %1195 = vmatprep.subr.bf16.mxu0 0
          %1196 = vmatpush1.bf16.msra.mxu0 %v1186
          %1197 = vmatprep.subr.bf16.mxu0 0
          %1198 = vmatpush1.bf16.msra.mxu0 %v1185
          %1199 = vmatprep.subr.bf16.mxu0 0
          %1200 = vmatpush1.bf16.msra.mxu0 %v1184
          %1201 = vmatprep.subr.bf16.mxu0 0
          %1202 = vmatpush1.bf16.msra.mxu0 %v1183
          %1203 = vmatprep.subr.bf16.mxu0 0
          %1204 = vmatpush1.bf16.msra.mxu0 %v1182
          %1205 = vmatprep.subr.bf16.mxu0 0
          %1206 = vmatpush1.bf16.msra.mxu0 %v1181
          %1207 = vmatprep.subr.bf16.mxu0 0
          %1208 = vmatpush1.bf16.msra.mxu0 %v1180
          %1209 = vmatprep.subr.bf16.mxu0 0
          %1210 = vmatpush1.bf16.msra.mxu0 %v1179
          %1211 = vmatprep.subr.bf16.mxu0 0
          %1212 = vmatpush2.bf16.msra.mxu0 0
          %1213 = vmatprep.subr.bf16.mxu0 0
          %1214 = vmatpush2.bf16.msra.mxu0 0
          %1215 = vmatprep.subr.bf16.mxu0 0
          %1216 = vmatpush2.bf16.msra.mxu0 0
          %1217 = vmatprep.subr.bf16.mxu0 0
          %1218 = vmatpush2.bf16.msra.mxu0 0
          %1219 = vmatprep.subr.bf16.mxu0 0
          %1220 = vmatpush2.bf16.msra.mxu0 0
          %1221 = vmatprep.subr.bf16.mxu0 0
          %1222 = vmatpush2.bf16.msra.mxu0 0
          %1223 = vmatprep.subr.bf16.mxu0 0
          %1224 = vmatpush2.bf16.msra.mxu0 0
          %1225 = vmatprep.subr.bf16.mxu0 0
          %1226 = vmatpush2.bf16.msra.mxu0 0
          %1227 = vmatprep.mubr.bf16.mxu0 0
          %1228 = vmatmul.mubr.bf16.gmra.mxu0 %v1139
          %v1229 = vpop.f32.mrf.mxu0
          %v1230 = vadd.f32 %v1145, %v1229
          %v1231 = vpop.f32.mrf.mxu0
          %v1232 = vpop.f32.mrf.mxu0
          %v1233 = vpop.f32.mrf.mxu0
          %1234 = vdwg.mxu0
          %1235 = vadd.xlane.f32.xlu0 %v1230
          %v1236 = vpop.xlane.xlu0 %1235
          %v1237 = vrcp.pop 128.0
          %v1238 = vmul.f32 %v1236, %v1237
          %v1239 = vsub.f32 %v1230, %v1238
          %v1240 = vmul.f32 %v1239, %v1239
          %1241 = vadd.xlane.f32.xlu0 %v1240
          %v1242 = vpop.xlane.xlu0 %1241
          %v1243 = vmul.f32 %v1242, %v1237
          %v1244 = vadd.f32 %v1243, 1e-05
          %v1245 = vrsqrt.pop %v1244
          %v1246 = vmul.f32 %v1239, %v1245
          %v1247 = vld [vmem:[#allocation15] sm:$0x1]
          %v1249 = vlaneseq
          %v1250 = vshrl.u32 %v1249, 7
          %v1251 = vsub.s32 0, %v1250
          %v1252 = vrot.slane %v1247, %v1251
          %v1254 = vmul.f32 %v1246, %v1252
          %v1255 = vld [vmem:[#allocation16] sm:$0x1]
          %v1257 = vlaneseq
          %v1258 = vshrl.u32 %v1257, 7
          %v1259 = vsub.s32 0, %v1258
          %v1260 = vrot.slane %v1255, %v1259
          %v1262 = vadd.f32 %v1254, %v1260
          %v1263 = vmax.f32 %v1262, 0.0
          %v1264 = vld [vmem:[%s25] sm:$0xf]
          %v1265 = vld [vmem:[%s25 + $0x4] sm:$0xf]
          %v1266 = vld [vmem:[%s25 + $0x8] sm:$0xf]
          %v1267 = vld [vmem:[%s25 + $0xc] sm:$0xf]
          %v1268 = vld [vmem:[%s25 + $0x10] sm:$0xf]
          %v1269 = vld [vmem:[%s25 + $0x14] sm:$0xf]
          %v1270 = vld [vmem:[%s25 + $0x18] sm:$0xf]
          %v1271 = vld [vmem:[%s25 + $0x1c] sm:$0xf]
          %v1272 = vld [vmem:[%s25 + $0x20] sm:$0xf]
          %v1273 = vld [vmem:[%s25 + $0x24] sm:$0xf]
          %v1274 = vld [vmem:[%s25 + $0x28] sm:$0xf]
          %v1275 = vld [vmem:[%s25 + $0x2c] sm:$0xf]
          %v1276 = vld [vmem:[%s25 + $0x30] sm:$0xf]
          %v1277 = vld [vmem:[%s25 + $0x34] sm:$0xf]
          %v1278 = vld [vmem:[%s25 + $0x38] sm:$0xf]
          %v1279 = vld [vmem:[%s25 + $0x3c] sm:$0xf]
          %v1280 = vpack.c.bf16 %v1263, %v1263
          %v1281 = vld [vmem:[#allocation18] sm:$0x1]
          %v1283 = vlaneseq
          %v1284 = vshrl.u32 %v1283, 7
          %v1285 = vsub.s32 0, %v1284
          %v1286 = vrot.slane %v1281, %v1285
          %v1304 = vunpack.c.l.b16 %v1264
          %v1305 = vunpack.c.l.b16 %v1265
          %v1306 = vunpack.c.l.b16 %v1266
          %v1307 = vunpack.c.l.b16 %v1267
          %v1308 = vunpack.c.l.b16 %v1268
          %v1309 = vunpack.c.l.b16 %v1269
          %v1310 = vunpack.c.l.b16 %v1270
          %v1311 = vunpack.c.l.b16 %v1271
          %v1312 = vunpack.c.l.b16 %v1272
          %v1313 = vunpack.c.l.b16 %v1273
          %v1314 = vunpack.c.l.b16 %v1274
          %v1315 = vunpack.c.l.b16 %v1275
          %v1316 = vunpack.c.l.b16 %v1276
          %v1317 = vunpack.c.l.b16 %v1277
          %v1318 = vunpack.c.l.b16 %v1278
          %v1319 = vunpack.c.l.b16 %v1279
          %v1320 = vpack.c.b16 %v1305, %v1304
          %v1321 = vpack.c.b16 %v1307, %v1306
          %v1322 = vpack.c.b16 %v1309, %v1308
          %v1323 = vpack.c.b16 %v1311, %v1310
          %v1324 = vpack.c.b16 %v1313, %v1312
          %v1325 = vpack.c.b16 %v1315, %v1314
          %v1326 = vpack.c.b16 %v1317, %v1316
          %v1327 = vpack.c.b16 %v1319, %v1318
          %1336 = vmatprep.subr.bf16.mxu0 0
          %1337 = vmatpush1.bf16.msra.mxu0 %v1327
          %1338 = vmatprep.subr.bf16.mxu0 0
          %1339 = vmatpush1.bf16.msra.mxu0 %v1326
          %1340 = vmatprep.subr.bf16.mxu0 0
          %1341 = vmatpush1.bf16.msra.mxu0 %v1325
          %1342 = vmatprep.subr.bf16.mxu0 0
          %1343 = vmatpush1.bf16.msra.mxu0 %v1324
          %1344 = vmatprep.subr.bf16.mxu0 0
          %1345 = vmatpush1.bf16.msra.mxu0 %v1323
          %1346 = vmatprep.subr.bf16.mxu0 0
          %1347 = vmatpush1.bf16.msra.mxu0 %v1322
          %1348 = vmatprep.subr.bf16.mxu0 0
          %1349 = vmatpush1.bf16.msra.mxu0 %v1321
          %1350 = vmatprep.subr.bf16.mxu0 0
          %1351 = vmatpush1.bf16.msra.mxu0 %v1320
          %1352 = vmatprep.subr.bf16.mxu0 0
          %1353 = vmatpush2.bf16.msra.mxu0 0
          %1354 = vmatprep.subr.bf16.mxu0 0
          %1355 = vmatpush2.bf16.msra.mxu0 0
          %1356 = vmatprep.subr.bf16.mxu0 0
          %1357 = vmatpush2.bf16.msra.mxu0 0
          %1358 = vmatprep.subr.bf16.mxu0 0
          %1359 = vmatpush2.bf16.msra.mxu0 0
          %1360 = vmatprep.subr.bf16.mxu0 0
          %1361 = vmatpush2.bf16.msra.mxu0 0
          %1362 = vmatprep.subr.bf16.mxu0 0
          %1363 = vmatpush2.bf16.msra.mxu0 0
          %1364 = vmatprep.subr.bf16.mxu0 0
          %1365 = vmatpush2.bf16.msra.mxu0 0
          %1366 = vmatprep.subr.bf16.mxu0 0
          %1367 = vmatpush2.bf16.msra.mxu0 0
          %1368 = vmatprep.mubr.bf16.mxu0 0
          %1369 = vmatmul.mubr.bf16.gmra.mxu0 %v1280
          %v1370 = vpop.f32.mrf.mxu0
          %v1371 = vadd.f32 %v1286, %v1370
          %v1372 = vpop.f32.mrf.mxu0
          %v1373 = vpop.f32.mrf.mxu0
          %v1374 = vpop.f32.mrf.mxu0
          %1375 = vdwg.mxu0
          %v1376 = vld [vmem:[%s29] sm:$0xf]
          %v1377 = vld [vmem:[%s29 + $0x4] sm:$0xf]
          %v1378 = vld [vmem:[%s29 + $0x8] sm:$0xf]
          %v1379 = vld [vmem:[%s29 + $0xc] sm:$0xf]
          %v1380 = vld [vmem:[%s29 + $0x10] sm:$0xf]
          %v1381 = vld [vmem:[%s29 + $0x14] sm:$0xf]
          %v1382 = vld [vmem:[%s29 + $0x18] sm:$0xf]
          %v1383 = vld [vmem:[%s29 + $0x1c] sm:$0xf]
          %v1384 = vld [vmem:[%s29 + $0x20] sm:$0xf]
          %v1385 = vld [vmem:[%s29 + $0x24] sm:$0xf]
          %v1386 = vld [vmem:[%s29 + $0x28] sm:$0xf]
          %v1387 = vld [vmem:[%s29 + $0x2c] sm:$0xf]
          %v1388 = vld [vmem:[%s29 + $0x30] sm:$0xf]
          %v1389 = vld [vmem:[%s29 + $0x34] sm:$0xf]
          %v1390 = vld [vmem:[%s29 + $0x38] sm:$0xf]
          %v1391 = vld [vmem:[%s29 + $0x3c] sm:$0xf]
          %v1392 = vld [vmem:[%s31] sm:$0xf]
          %v1393 = vld [vmem:[%s33] sm:$0xf]
          %v1394 = vld [vmem:[%s33 + $0x4] sm:$0xf]
          %v1395 = vld [vmem:[%s33 + $0x8] sm:$0xf]
          %v1396 = vld [vmem:[%s33 + $0xc] sm:$0xf]
          %v1397 = vld [vmem:[%s33 + $0x10] sm:$0xf]
          %v1398 = vld [vmem:[%s33 + $0x14] sm:$0xf]
          %v1399 = vld [vmem:[%s33 + $0x18] sm:$0xf]
          %v1400 = vld [vmem:[%s33 + $0x1c] sm:$0xf]
          %v1401 = vld [vmem:[%s33 + $0x20] sm:$0xf]
          %v1402 = vld [vmem:[%s33 + $0x24] sm:$0xf]
          %v1403 = vld [vmem:[%s33 + $0x28] sm:$0xf]
          %v1404 = vld [vmem:[%s33 + $0x2c] sm:$0xf]
          %v1405 = vld [vmem:[%s33 + $0x30] sm:$0xf]
          %v1406 = vld [vmem:[%s33 + $0x34] sm:$0xf]
          %v1407 = vld [vmem:[%s33 + $0x38] sm:$0xf]
          %v1408 = vld [vmem:[%s33 + $0x3c] sm:$0xf]
          %v1409 = vld [vmem:[%s35] sm:$0xf]
          %v1410 = vld [vmem:[#allocation19] sm:$0x1]
          %v1411 = vpack.c.bf16 %v1371, %v1371
          %v1412 = vpack.c.bf16 %v1121, %v1121
          %vm1413 = vcmask 56320
          %v1415 = vsel %vm1413, %v1412, 0
          %vm1417 = vcmask 1043456
          %v1418 = vsel %vm1051, 4294967295, 65535
          %v1419 = vsel %vm1417, %v1418, 0
          %v1421 = vand.u32 %v1392, %v1419
          %1423 = vmatprep.subr.bf16.mxu0 0
          %1424 = vmatpush1.bf16.msra.mxu0 0
          %1425 = vmatprep.subr.bf16.mxu0 0
          %1426 = vmatpush1.bf16.msra.mxu0 0
          %1427 = vmatprep.subr.bf16.mxu0 0
          %1428 = vmatpush1.bf16.msra.mxu0 0
          %1429 = vmatprep.subr.bf16.mxu0 0
          %1430 = vmatpush1.bf16.msra.mxu0 0
          %1431 = vmatprep.subr.bf16.mxu0 0
          %1432 = vmatpush1.bf16.msra.mxu0 0
          %1433 = vmatprep.subr.bf16.mxu0 0
          %1434 = vmatpush1.bf16.msra.mxu0 0
          %1435 = vmatprep.subr.bf16.mxu0 0
          %1436 = vmatpush1.bf16.msra.mxu0 0
          %1437 = vmatprep.subr.bf16.mxu0 0
          %1438 = vmatpush1.bf16.msra.mxu0 %v1421
          %1439 = vmatprep.subr.bf16.mxu0 0
          %1440 = vmatpush2.bf16.msra.mxu0 0
          %1441 = vmatprep.subr.bf16.mxu0 0
          %1442 = vmatpush2.bf16.msra.mxu0 0
          %1443 = vmatprep.subr.bf16.mxu0 0
          %1444 = vmatpush2.bf16.msra.mxu0 0
          %1445 = vmatprep.subr.bf16.mxu0 0
          %1446 = vmatpush2.bf16.msra.mxu0 0
          %1447 = vmatprep.subr.bf16.mxu0 0
          %1448 = vmatpush2.bf16.msra.mxu0 0
          %1449 = vmatprep.subr.bf16.mxu0 0
          %1450 = vmatpush2.bf16.msra.mxu0 0
          %1451 = vmatprep.subr.bf16.mxu0 0
          %1452 = vmatpush2.bf16.msra.mxu0 0
          %1453 = vmatprep.subr.bf16.mxu0 0
          %1454 = vmatpush2.bf16.msra.mxu0 0
          %1455 = vmatprep.mubr.bf16.mxu0 0
          %1456 = vmatmul.mubr.bf16.gmra.mxu0 %v1415
          %v1457 = vpop.f32.mrf.mxu0
          %v1458 = vadd.f32 0.0, %v1457
          %v1459 = vpop.f32.mrf.mxu0
          %v1460 = vpop.f32.mrf.mxu0
          %v1461 = vpop.f32.mrf.mxu0
          %1462 = vdwg.mxu0
          %v1479 = vunpack.c.l.b16 %v1376
          %v1480 = vunpack.c.l.b16 %v1377
          %v1481 = vunpack.c.l.b16 %v1378
          %v1482 = vunpack.c.l.b16 %v1379
          %v1483 = vunpack.c.l.b16 %v1380
          %v1484 = vunpack.c.l.b16 %v1381
          %v1485 = vunpack.c.l.b16 %v1382
          %v1486 = vunpack.c.l.b16 %v1383
          %v1487 = vunpack.c.l.b16 %v1384
          %v1488 = vunpack.c.l.b16 %v1385
          %v1489 = vunpack.c.l.b16 %v1386
          %v1490 = vunpack.c.l.b16 %v1387
          %v1491 = vunpack.c.l.b16 %v1388
          %v1492 = vunpack.c.l.b16 %v1389
          %v1493 = vunpack.c.l.b16 %v1390
          %v1494 = vunpack.c.l.b16 %v1391
          %v1495 = vpack.c.b16 %v1480, %v1479
          %v1496 = vpack.c.b16 %v1482, %v1481
          %v1497 = vpack.c.b16 %v1484, %v1483
          %v1498 = vpack.c.b16 %v1486, %v1485
          %v1499 = vpack.c.b16 %v1488, %v1487
          %v1500 = vpack.c.b16 %v1490, %v1489
          %v1501 = vpack.c.b16 %v1492, %v1491
          %v1502 = vpack.c.b16 %v1494, %v1493
          %1511 = vmatprep.subr.bf16.mxu0 0
          %1512 = vmatpush1.bf16.msra.mxu0 %v1502
          %1513 = vmatprep.subr.bf16.mxu0 0
          %1514 = vmatpush1.bf16.msra.mxu0 %v1501
          %1515 = vmatprep.subr.bf16.mxu0 0
          %1516 = vmatpush1.bf16.msra.mxu0 %v1500
          %1517 = vmatprep.subr.bf16.mxu0 0
          %1518 = vmatpush1.bf16.msra.mxu0 %v1499
          %1519 = vmatprep.subr.bf16.mxu0 0
          %1520 = vmatpush1.bf16.msra.mxu0 %v1498
          %1521 = vmatprep.subr.bf16.mxu0 0
          %1522 = vmatpush1.bf16.msra.mxu0 %v1497
          %1523 = vmatprep.subr.bf16.mxu0 0
          %1524 = vmatpush1.bf16.msra.mxu0 %v1496
          %1525 = vmatprep.subr.bf16.mxu0 0
          %1526 = vmatpush1.bf16.msra.mxu0 %v1495
          %1527 = vmatprep.subr.bf16.mxu0 0
          %1528 = vmatpush2.bf16.msra.mxu0 0
          %1529 = vmatprep.subr.bf16.mxu0 0
          %1530 = vmatpush2.bf16.msra.mxu0 0
          %1531 = vmatprep.subr.bf16.mxu0 0
          %1532 = vmatpush2.bf16.msra.mxu0 0
          %1533 = vmatprep.subr.bf16.mxu0 0
          %1534 = vmatpush2.bf16.msra.mxu0 0
          %1535 = vmatprep.subr.bf16.mxu0 0
          %1536 = vmatpush2.bf16.msra.mxu0 0
          %1537 = vmatprep.subr.bf16.mxu0 0
          %1538 = vmatpush2.bf16.msra.mxu0 0
          %1539 = vmatprep.subr.bf16.mxu0 0
          %1540 = vmatpush2.bf16.msra.mxu0 0
          %1541 = vmatprep.subr.bf16.mxu0 0
          %1542 = vmatpush2.bf16.msra.mxu0 0
          %1543 = vmatprep.mubr.bf16.mxu0 0
          %1544 = vmatmul.mubr.bf16.gmra.mxu0 %v1411
          %v1545 = vpop.f32.mrf.mxu0
          %v1546 = vadd.f32 %v1458, %v1545
          %v1547 = vpop.f32.mrf.mxu0
          %v1548 = vpop.f32.mrf.mxu0
          %v1549 = vpop.f32.mrf.mxu0
          %1550 = vdwg.mxu0
          %v1552 = vlaneseq
          %v1553 = vshrl.u32 %v1552, 7
          %v1554 = vsub.s32 0, %v1553
          %v1555 = vrot.slane %v1410, %v1554
          %v1557 = vadd.f32 %v1546, %v1555
          %v1559 = vand.u32 %v1409, %v1419
          %1561 = vmatprep.subr.bf16.mxu0 0
          %1562 = vmatpush1.bf16.msra.mxu0 0
          %1563 = vmatprep.subr.bf16.mxu0 0
          %1564 = vmatpush1.bf16.msra.mxu0 0
          %1565 = vmatprep.subr.bf16.mxu0 0
          %1566 = vmatpush1.bf16.msra.mxu0 0
          %1567 = vmatprep.subr.bf16.mxu0 0
          %1568 = vmatpush1.bf16.msra.mxu0 0
          %1569 = vmatprep.subr.bf16.mxu0 0
          %1570 = vmatpush1.bf16.msra.mxu0 0
          %1571 = vmatprep.subr.bf16.mxu0 0
          %1572 = vmatpush1.bf16.msra.mxu0 0
          %1573 = vmatprep.subr.bf16.mxu0 0
          %1574 = vmatpush1.bf16.msra.mxu0 0
          %1575 = vmatprep.subr.bf16.mxu0 0
          %1576 = vmatpush1.bf16.msra.mxu0 %v1559
          %1577 = vmatprep.subr.bf16.mxu0 0
          %1578 = vmatpush2.bf16.msra.mxu0 0
          %1579 = vmatprep.subr.bf16.mxu0 0
          %1580 = vmatpush2.bf16.msra.mxu0 0
          %1581 = vmatprep.subr.bf16.mxu0 0
          %1582 = vmatpush2.bf16.msra.mxu0 0
          %1583 = vmatprep.subr.bf16.mxu0 0
          %1584 = vmatpush2.bf16.msra.mxu0 0
          %1585 = vmatprep.subr.bf16.mxu0 0
          %1586 = vmatpush2.bf16.msra.mxu0 0
          %1587 = vmatprep.subr.bf16.mxu0 0
          %1588 = vmatpush2.bf16.msra.mxu0 0
          %1589 = vmatprep.subr.bf16.mxu0 0
          %1590 = vmatpush2.bf16.msra.mxu0 0
          %1591 = vmatprep.subr.bf16.mxu0 0
          %1592 = vmatpush2.bf16.msra.mxu0 0
          %1593 = vmatprep.mubr.bf16.mxu0 0
          %1594 = vmatmul.mubr.bf16.gmra.mxu0 %v1415
          %v1595 = vpop.f32.mrf.mxu0
          %v1596 = vadd.f32 0.0, %v1595
          %v1597 = vpop.f32.mrf.mxu0
          %v1598 = vpop.f32.mrf.mxu0
          %v1599 = vpop.f32.mrf.mxu0
          %1600 = vdwg.mxu0
          %v1617 = vunpack.c.l.b16 %v1393
          %v1618 = vunpack.c.l.b16 %v1394
          %v1619 = vunpack.c.l.b16 %v1395
          %v1620 = vunpack.c.l.b16 %v1396
          %v1621 = vunpack.c.l.b16 %v1397
          %v1622 = vunpack.c.l.b16 %v1398
          %v1623 = vunpack.c.l.b16 %v1399
          %v1624 = vunpack.c.l.b16 %v1400
          %v1625 = vunpack.c.l.b16 %v1401
          %v1626 = vunpack.c.l.b16 %v1402
          %v1627 = vunpack.c.l.b16 %v1403
          %v1628 = vunpack.c.l.b16 %v1404
          %v1629 = vunpack.c.l.b16 %v1405
          %v1630 = vunpack.c.l.b16 %v1406
          %v1631 = vunpack.c.l.b16 %v1407
          %v1632 = vunpack.c.l.b16 %v1408
          %v1633 = vpack.c.b16 %v1618, %v1617
          %v1634 = vpack.c.b16 %v1620, %v1619
          %v1635 = vpack.c.b16 %v1622, %v1621
          %v1636 = vpack.c.b16 %v1624, %v1623
          %v1637 = vpack.c.b16 %v1626, %v1625
          %v1638 = vpack.c.b16 %v1628, %v1627
          %v1639 = vpack.c.b16 %v1630, %v1629
          %v1640 = vpack.c.b16 %v1632, %v1631
          %1649 = vmatprep.subr.bf16.mxu0 0
          %1650 = vmatpush1.bf16.msra.mxu0 %v1640
          %1651 = vmatprep.subr.bf16.mxu0 0
          %1652 = vmatpush1.bf16.msra.mxu0 %v1639
          %1653 = vmatprep.subr.bf16.mxu0 0
          %1654 = vmatpush1.bf16.msra.mxu0 %v1638
          %1655 = vmatprep.subr.bf16.mxu0 0
          %1656 = vmatpush1.bf16.msra.mxu0 %v1637
          %1657 = vmatprep.subr.bf16.mxu0 0
          %1658 = vmatpush1.bf16.msra.mxu0 %v1636
          %1659 = vmatprep.subr.bf16.mxu0 0
          %1660 = vmatpush1.bf16.msra.mxu0 %v1635
          %1661 = vmatprep.subr.bf16.mxu0 0
          %1662 = vmatpush1.bf16.msra.mxu0 %v1634
          %1663 = vmatprep.subr.bf16.mxu0 0
          %1664 = vmatpush1.bf16.msra.mxu0 %v1633
          %1665 = vmatprep.subr.bf16.mxu0 0
          %1666 = vmatpush2.bf16.msra.mxu0 0
          %1667 = vmatprep.subr.bf16.mxu0 0
          %1668 = vmatpush2.bf16.msra.mxu0 0
          %1669 = vmatprep.subr.bf16.mxu0 0
          %1670 = vmatpush2.bf16.msra.mxu0 0
          %1671 = vmatprep.subr.bf16.mxu0 0
          %1672 = vmatpush2.bf16.msra.mxu0 0
          %1673 = vmatprep.subr.bf16.mxu0 0
          %1674 = vmatpush2.bf16.msra.mxu0 0
          %1675 = vmatprep.subr.bf16.mxu0 0
          %1676 = vmatpush2.bf16.msra.mxu0 0
          %1677 = vmatprep.subr.bf16.mxu0 0
          %1678 = vmatpush2.bf16.msra.mxu0 0
          %1679 = vmatprep.subr.bf16.mxu0 0
          %1680 = vmatpush2.bf16.msra.mxu0 0
          %1681 = vmatprep.mubr.bf16.mxu0 0
          %1682 = vmatmul.mubr.bf16.gmra.mxu0 %v1411
          %v1683 = vpop.f32.mrf.mxu0
          %v1684 = vadd.f32 %v1596, %v1683
          %v1685 = vpop.f32.mrf.mxu0
          %v1686 = vpop.f32.mrf.mxu0
          %v1687 = vpop.f32.mrf.mxu0
          %1688 = vdwg.mxu0
          %1689 = vst [vmem:[#allocation3] sm:$0xff] %v1684
          %v1690 = vsub.f32 %v1557, %v1684
          %v1691 = vld [vmem:[#allocation3] sm:$0x1]
          %v1692 = vlaneseq
          %v1693 = vshrl.u32 %v1692, 7
          %v1694 = vsub.s32 0, %v1693
          %v1695 = vrot.slane %v1691, %v1694
          %v1696 = vadd.f32 %v1690, %v1695
          %v1697 = vmax.f32 %v1696, 0.0
          %s1698 = sld [smem:[#allocation6]]
          %v1699 = vstv %s1698
          %vm1700 = vcmp.eq.s32.totalorder %v1122, %v1699
          %v1701 = vsel %vm1700, 1, 0
          %1702 = vset.pattern.permute.xlu0 0
          %1703 = vperm.xlu0 %1702, %v1701
          %v1704 = vpop.permute.xlu0 %1703
          %vm1705 = vcmp.eq.s32.totalorder %v1704, 1
          %v1706 = vsel %vm1705, %v1697, -1e+30
          %v1707 = vmax.f32 %v1706, -1e+30
          %v1708 = vld [vmem:[#allocation3 + $0x1] sm:$0x1]
          %v1709 = vlaneseq
          %v1710 = vshrl.u32 %v1709, 7
          %v1711 = vsub.s32 0, %v1710
          %v1712 = vrot.slane %v1708, %v1711
          %v1713 = vadd.f32 %v1690, %v1712
          %v1714 = vmax.f32 %v1713, 0.0
          %s1715 = sld [smem:[#allocation6 + $0x1]]
          %v1716 = vstv %s1715
          %vm1717 = vcmp.eq.s32.totalorder %v1122, %v1716
          %v1718 = vsel %vm1717, 1, 0
          %1719 = vset.pattern.permute.xlu0 0
          %1720 = vperm.xlu0 %1719, %v1718
          %v1721 = vpop.permute.xlu0 %1720
          %vm1722 = vcmp.eq.s32.totalorder %v1721, 1
          %v1723 = vsel %vm1722, %v1714, -1e+30
          %v1724 = vmax.f32 %v1707, %v1723
          %v1725 = vld [vmem:[#allocation3 + $0x2] sm:$0x1]
          %v1726 = vlaneseq
          %v1727 = vshrl.u32 %v1726, 7
          %v1728 = vsub.s32 0, %v1727
          %v1729 = vrot.slane %v1725, %v1728
          %v1730 = vadd.f32 %v1690, %v1729
          %v1731 = vmax.f32 %v1730, 0.0
          %s1732 = sld [smem:[#allocation6 + $0x2]]
          %v1733 = vstv %s1732
          %vm1734 = vcmp.eq.s32.totalorder %v1122, %v1733
          %v1735 = vsel %vm1734, 1, 0
          %1736 = vset.pattern.permute.xlu0 0
          %1737 = vperm.xlu0 %1736, %v1735
          %v1738 = vpop.permute.xlu0 %1737
          %vm1739 = vcmp.eq.s32.totalorder %v1738, 1
          %v1740 = vsel %vm1739, %v1731, -1e+30
          %v1741 = vmax.f32 %v1724, %v1740
          %v1742 = vld [vmem:[#allocation3 + $0x3] sm:$0x1]
          %v1743 = vlaneseq
          %v1744 = vshrl.u32 %v1743, 7
          %v1745 = vsub.s32 0, %v1744
          %v1746 = vrot.slane %v1742, %v1745
          %v1747 = vadd.f32 %v1690, %v1746
          %v1748 = vmax.f32 %v1747, 0.0
          %s1749 = sld [smem:[#allocation6 + $0x3]]
          %v1750 = vstv %s1749
          %vm1751 = vcmp.eq.s32.totalorder %v1122, %v1750
          %v1752 = vsel %vm1751, 1, 0
          %1753 = vset.pattern.permute.xlu0 0
          %1754 = vperm.xlu0 %1753, %v1752
          %v1755 = vpop.permute.xlu0 %1754
          %vm1756 = vcmp.eq.s32.totalorder %v1755, 1
          %v1757 = vsel %vm1756, %v1748, -1e+30
          %v1758 = vmax.f32 %v1741, %v1757
          %v1759 = vld [vmem:[#allocation3 + $0x4] sm:$0x1]
          %v1760 = vlaneseq
          %v1761 = vshrl.u32 %v1760, 7
          %v1762 = vsub.s32 0, %v1761
          %v1763 = vrot.slane %v1759, %v1762
          %v1764 = vadd.f32 %v1690, %v1763
          %v1765 = vmax.f32 %v1764, 0.0
          %s1766 = sld [smem:[#allocation6 + $0x4]]
          %v1767 = vstv %s1766
          %vm1768 = vcmp.eq.s32.totalorder %v1122, %v1767
          %v1769 = vsel %vm1768, 1, 0
          %1770 = vset.pattern.permute.xlu0 0
          %1771 = vperm.xlu0 %1770, %v1769
          %v1772 = vpop.permute.xlu0 %1771
          %vm1773 = vcmp.eq.s32.totalorder %v1772, 1
          %v1774 = vsel %vm1773, %v1765, -1e+30
          %v1775 = vmax.f32 %v1758, %v1774
          %v1776 = vld [vmem:[#allocation3 + $0x5] sm:$0x1]
          %v1777 = vlaneseq
          %v1778 = vshrl.u32 %v1777, 7
          %v1779 = vsub.s32 0, %v1778
          %v1780 = vrot.slane %v1776, %v1779
          %v1781 = vadd.f32 %v1690, %v1780
          %v1782 = vmax.f32 %v1781, 0.0
          %s1783 = sld [smem:[#allocation6 + $0x5]]
          %v1784 = vstv %s1783
          %vm1785 = vcmp.eq.s32.totalorder %v1122, %v1784
          %v1786 = vsel %vm1785, 1, 0
          %1787 = vset.pattern.permute.xlu0 0
          %1788 = vperm.xlu0 %1787, %v1786
          %v1789 = vpop.permute.xlu0 %1788
          %vm1790 = vcmp.eq.s32.totalorder %v1789, 1
          %v1791 = vsel %vm1790, %v1782, -1e+30
          %v1792 = vmax.f32 %v1775, %v1791
          %v1793 = vld [vmem:[#allocation3 + $0x6] sm:$0x1]
          %v1794 = vlaneseq
          %v1795 = vshrl.u32 %v1794, 7
          %v1796 = vsub.s32 0, %v1795
          %v1797 = vrot.slane %v1793, %v1796
          %v1798 = vadd.f32 %v1690, %v1797
          %v1799 = vmax.f32 %v1798, 0.0
          %s1800 = sld [smem:[#allocation6 + $0x6]]
          %v1801 = vstv %s1800
          %vm1802 = vcmp.eq.s32.totalorder %v1122, %v1801
          %v1803 = vsel %vm1802, 1, 0
          %1804 = vset.pattern.permute.xlu0 0
          %1805 = vperm.xlu0 %1804, %v1803
          %v1806 = vpop.permute.xlu0 %1805
          %vm1807 = vcmp.eq.s32.totalorder %v1806, 1
          %v1808 = vsel %vm1807, %v1799, -1e+30
          %v1809 = vmax.f32 %v1792, %v1808
          %v1810 = vld [vmem:[#allocation3 + $0x7] sm:$0x1]
          %v1811 = vlaneseq
          %v1812 = vshrl.u32 %v1811, 7
          %v1813 = vsub.s32 0, %v1812
          %v1814 = vrot.slane %v1810, %v1813
          %v1815 = vadd.f32 %v1690, %v1814
          %v1816 = vmax.f32 %v1815, 0.0
          %s1817 = sld [smem:[#allocation6 + $0x7]]
          %v1818 = vstv %s1817
          %vm1819 = vcmp.eq.s32.totalorder %v1122, %v1818
          %v1820 = vsel %vm1819, 1, 0
          %1821 = vset.pattern.permute.xlu0 0
          %1822 = vperm.xlu0 %1821, %v1820
          %v1823 = vpop.permute.xlu0 %1822
          %vm1824 = vcmp.eq.s32.totalorder %v1823, 1
          %v1825 = vsel %vm1824, %v1816, -1e+30
          %v1826 = vmax.f32 %v1809, %v1825
          %v1827 = vmax.f32 %v1826, 0.0
          %v1828 = vld [vmem:[%s39] sm:$0xf]
          %v1829 = vld [vmem:[%s39 + $0x4] sm:$0xf]
          %v1830 = vld [vmem:[%s39 + $0x8] sm:$0xf]
          %v1831 = vld [vmem:[%s39 + $0xc] sm:$0xf]
          %v1832 = vld [vmem:[%s39 + $0x10] sm:$0xf]
          %v1833 = vld [vmem:[%s39 + $0x14] sm:$0xf]
          %v1834 = vld [vmem:[%s39 + $0x18] sm:$0xf]
          %v1835 = vld [vmem:[%s39 + $0x1c] sm:$0xf]
          %v1836 = vld [vmem:[%s39 + $0x20] sm:$0xf]
          %v1837 = vld [vmem:[%s39 + $0x24] sm:$0xf]
          %v1838 = vld [vmem:[%s39 + $0x28] sm:$0xf]
          %v1839 = vld [vmem:[%s39 + $0x2c] sm:$0xf]
          %v1840 = vld [vmem:[%s39 + $0x30] sm:$0xf]
          %v1841 = vld [vmem:[%s39 + $0x34] sm:$0xf]
          %v1842 = vld [vmem:[%s39 + $0x38] sm:$0xf]
          %v1843 = vld [vmem:[%s39 + $0x3c] sm:$0xf]
          %v1844 = vld [vmem:[%s41] sm:$0xf]
          %v1845 = vld [vmem:[#allocation21] sm:$0xf]
          %v1846 = vld [vmem:[#allocation21 + $0x4] sm:$0xf]
          %v1847 = vld [vmem:[#allocation21 + $0x8] sm:$0xf]
          %v1848 = vld [vmem:[#allocation21 + $0xc] sm:$0xf]
          %v1849 = vld [vmem:[#allocation21 + $0x10] sm:$0xf]
          %v1850 = vld [vmem:[#allocation21 + $0x14] sm:$0xf]
          %v1851 = vld [vmem:[#allocation21 + $0x18] sm:$0xf]
          %v1852 = vld [vmem:[#allocation21 + $0x1c] sm:$0xf]
          %v1853 = vld [vmem:[#allocation21 + $0x20] sm:$0xf]
          %v1854 = vld [vmem:[#allocation21 + $0x24] sm:$0xf]
          %v1855 = vld [vmem:[#allocation21 + $0x28] sm:$0xf]
          %v1856 = vld [vmem:[#allocation21 + $0x2c] sm:$0xf]
          %v1857 = vld [vmem:[#allocation21 + $0x30] sm:$0xf]
          %v1858 = vld [vmem:[#allocation21 + $0x34] sm:$0xf]
          %v1859 = vld [vmem:[#allocation21 + $0x38] sm:$0xf]
          %v1860 = vld [vmem:[#allocation21 + $0x3c] sm:$0xf]
          %v1861 = vld [vmem:[%s45] sm:$0xf]
          %v1862 = vld [vmem:[%s47] sm:$0x1]
          %v1863 = vpack.c.bf16 %v1827, %v1827
          %v1865 = vand.u32 %v1844, %v1419
          %1867 = vmatprep.subr.bf16.mxu0 0
          %1868 = vmatpush1.bf16.msra.mxu0 0
          %1869 = vmatprep.subr.bf16.mxu0 0
          %1870 = vmatpush1.bf16.msra.mxu0 0
          %1871 = vmatprep.subr.bf16.mxu0 0
          %1872 = vmatpush1.bf16.msra.mxu0 0
          %1873 = vmatprep.subr.bf16.mxu0 0
          %1874 = vmatpush1.bf16.msra.mxu0 0
          %1875 = vmatprep.subr.bf16.mxu0 0
          %1876 = vmatpush1.bf16.msra.mxu0 0
          %1877 = vmatprep.subr.bf16.mxu0 0
          %1878 = vmatpush1.bf16.msra.mxu0 0
          %1879 = vmatprep.subr.bf16.mxu0 0
          %1880 = vmatpush1.bf16.msra.mxu0 0
          %1881 = vmatprep.subr.bf16.mxu0 0
          %1882 = vmatpush1.bf16.msra.mxu0 %v1865
          %1883 = vmatprep.subr.bf16.mxu0 0
          %1884 = vmatpush2.bf16.msra.mxu0 0
          %1885 = vmatprep.subr.bf16.mxu0 0
          %1886 = vmatpush2.bf16.msra.mxu0 0
          %1887 = vmatprep.subr.bf16.mxu0 0
          %1888 = vmatpush2.bf16.msra.mxu0 0
          %1889 = vmatprep.subr.bf16.mxu0 0
          %1890 = vmatpush2.bf16.msra.mxu0 0
          %1891 = vmatprep.subr.bf16.mxu0 0
          %1892 = vmatpush2.bf16.msra.mxu0 0
          %1893 = vmatprep.subr.bf16.mxu0 0
          %1894 = vmatpush2.bf16.msra.mxu0 0
          %1895 = vmatprep.subr.bf16.mxu0 0
          %1896 = vmatpush2.bf16.msra.mxu0 0
          %1897 = vmatprep.subr.bf16.mxu0 0
          %1898 = vmatpush2.bf16.msra.mxu0 0
          %1899 = vmatprep.mubr.bf16.mxu0 0
          %1900 = vmatmul.mubr.bf16.gmra.mxu0 %v1415
          %v1901 = vpop.f32.mrf.mxu0
          %v1902 = vadd.f32 0.0, %v1901
          %v1903 = vpop.f32.mrf.mxu0
          %v1904 = vpop.f32.mrf.mxu0
          %v1905 = vpop.f32.mrf.mxu0
          %1906 = vdwg.mxu0
          %v1923 = vunpack.c.l.b16 %v1828
          %v1924 = vunpack.c.l.b16 %v1829
          %v1925 = vunpack.c.l.b16 %v1830
          %v1926 = vunpack.c.l.b16 %v1831
          %v1927 = vunpack.c.l.b16 %v1832
          %v1928 = vunpack.c.l.b16 %v1833
          %v1929 = vunpack.c.l.b16 %v1834
          %v1930 = vunpack.c.l.b16 %v1835
          %v1931 = vunpack.c.l.b16 %v1836
          %v1932 = vunpack.c.l.b16 %v1837
          %v1933 = vunpack.c.l.b16 %v1838
          %v1934 = vunpack.c.l.b16 %v1839
          %v1935 = vunpack.c.l.b16 %v1840
          %v1936 = vunpack.c.l.b16 %v1841
          %v1937 = vunpack.c.l.b16 %v1842
          %v1938 = vunpack.c.l.b16 %v1843
          %v1939 = vpack.c.b16 %v1924, %v1923
          %v1940 = vpack.c.b16 %v1926, %v1925
          %v1941 = vpack.c.b16 %v1928, %v1927
          %v1942 = vpack.c.b16 %v1930, %v1929
          %v1943 = vpack.c.b16 %v1932, %v1931
          %v1944 = vpack.c.b16 %v1934, %v1933
          %v1945 = vpack.c.b16 %v1936, %v1935
          %v1946 = vpack.c.b16 %v1938, %v1937
          %1955 = vmatprep.subr.bf16.mxu0 0
          %1956 = vmatpush1.bf16.msra.mxu0 %v1946
          %1957 = vmatprep.subr.bf16.mxu0 0
          %1958 = vmatpush1.bf16.msra.mxu0 %v1945
          %1959 = vmatprep.subr.bf16.mxu0 0
          %1960 = vmatpush1.bf16.msra.mxu0 %v1944
          %1961 = vmatprep.subr.bf16.mxu0 0
          %1962 = vmatpush1.bf16.msra.mxu0 %v1943
          %1963 = vmatprep.subr.bf16.mxu0 0
          %1964 = vmatpush1.bf16.msra.mxu0 %v1942
          %1965 = vmatprep.subr.bf16.mxu0 0
          %1966 = vmatpush1.bf16.msra.mxu0 %v1941
          %1967 = vmatprep.subr.bf16.mxu0 0
          %1968 = vmatpush1.bf16.msra.mxu0 %v1940
          %1969 = vmatprep.subr.bf16.mxu0 0
          %1970 = vmatpush1.bf16.msra.mxu0 %v1939
          %1971 = vmatprep.subr.bf16.mxu0 0
          %1972 = vmatpush2.bf16.msra.mxu0 0
          %1973 = vmatprep.subr.bf16.mxu0 0
          %1974 = vmatpush2.bf16.msra.mxu0 0
          %1975 = vmatprep.subr.bf16.mxu0 0
          %1976 = vmatpush2.bf16.msra.mxu0 0
          %1977 = vmatprep.subr.bf16.mxu0 0
          %1978 = vmatpush2.bf16.msra.mxu0 0
          %1979 = vmatprep.subr.bf16.mxu0 0
          %1980 = vmatpush2.bf16.msra.mxu0 0
          %1981 = vmatprep.subr.bf16.mxu0 0
          %1982 = vmatpush2.bf16.msra.mxu0 0
          %1983 = vmatprep.subr.bf16.mxu0 0
          %1984 = vmatpush2.bf16.msra.mxu0 0
          %1985 = vmatprep.subr.bf16.mxu0 0
          %1986 = vmatpush2.bf16.msra.mxu0 0
          %1987 = vmatprep.mubr.bf16.mxu0 0
          %1988 = vmatmul.mubr.bf16.gmra.mxu0 %v1863
          %v1989 = vpop.f32.mrf.mxu0
          %v1990 = vadd.f32 %v1902, %v1989
          %v1991 = vpop.f32.mrf.mxu0
          %v1992 = vpop.f32.mrf.mxu0
          %v1993 = vpop.f32.mrf.mxu0
          %1994 = vdwg.mxu0
          %v1996 = vlaneseq
          %v1997 = vshrl.u32 %v1996, 7
          %v1998 = vsub.s32 0, %v1997
          %v1999 = vrot.slane %v1862, %v1998
          %v2001 = vadd.f32 %v1990, %v1999
          %v2003 = vand.u32 %v1861, %v1419
          %2005 = vmatprep.subr.bf16.mxu0 0
          %2006 = vmatpush1.bf16.msra.mxu0 0
          %2007 = vmatprep.subr.bf16.mxu0 0
          %2008 = vmatpush1.bf16.msra.mxu0 0
          %2009 = vmatprep.subr.bf16.mxu0 0
          %2010 = vmatpush1.bf16.msra.mxu0 0
          %2011 = vmatprep.subr.bf16.mxu0 0
          %2012 = vmatpush1.bf16.msra.mxu0 0
          %2013 = vmatprep.subr.bf16.mxu0 0
          %2014 = vmatpush1.bf16.msra.mxu0 0
          %2015 = vmatprep.subr.bf16.mxu0 0
          %2016 = vmatpush1.bf16.msra.mxu0 0
          %2017 = vmatprep.subr.bf16.mxu0 0
          %2018 = vmatpush1.bf16.msra.mxu0 0
          %2019 = vmatprep.subr.bf16.mxu0 0
          %2020 = vmatpush1.bf16.msra.mxu0 %v2003
          %2021 = vmatprep.subr.bf16.mxu0 0
          %2022 = vmatpush2.bf16.msra.mxu0 0
          %2023 = vmatprep.subr.bf16.mxu0 0
          %2024 = vmatpush2.bf16.msra.mxu0 0
          %2025 = vmatprep.subr.bf16.mxu0 0
          %2026 = vmatpush2.bf16.msra.mxu0 0
          %2027 = vmatprep.subr.bf16.mxu0 0
          %2028 = vmatpush2.bf16.msra.mxu0 0
          %2029 = vmatprep.subr.bf16.mxu0 0
          %2030 = vmatpush2.bf16.msra.mxu0 0
          %2031 = vmatprep.subr.bf16.mxu0 0
          %2032 = vmatpush2.bf16.msra.mxu0 0
          %2033 = vmatprep.subr.bf16.mxu0 0
          %2034 = vmatpush2.bf16.msra.mxu0 0
          %2035 = vmatprep.subr.bf16.mxu0 0
          %2036 = vmatpush2.bf16.msra.mxu0 0
          %2037 = vmatprep.mubr.bf16.mxu0 0
          %2038 = vmatmul.mubr.bf16.gmra.mxu0 %v1415
          %v2039 = vpop.f32.mrf.mxu0
          %v2040 = vadd.f32 0.0, %v2039
          %v2041 = vpop.f32.mrf.mxu0
          %v2042 = vpop.f32.mrf.mxu0
          %v2043 = vpop.f32.mrf.mxu0
          %2044 = vdwg.mxu0
          %v2061 = vunpack.c.l.b16 %v1845
          %v2062 = vunpack.c.l.b16 %v1846
          %v2063 = vunpack.c.l.b16 %v1847
          %v2064 = vunpack.c.l.b16 %v1848
          %v2065 = vunpack.c.l.b16 %v1849
          %v2066 = vunpack.c.l.b16 %v1850
          %v2067 = vunpack.c.l.b16 %v1851
          %v2068 = vunpack.c.l.b16 %v1852
          %v2069 = vunpack.c.l.b16 %v1853
          %v2070 = vunpack.c.l.b16 %v1854
          %v2071 = vunpack.c.l.b16 %v1855
          %v2072 = vunpack.c.l.b16 %v1856
          %v2073 = vunpack.c.l.b16 %v1857
          %v2074 = vunpack.c.l.b16 %v1858
          %v2075 = vunpack.c.l.b16 %v1859
          %v2076 = vunpack.c.l.b16 %v1860
          %v2077 = vpack.c.b16 %v2062, %v2061
          %v2078 = vpack.c.b16 %v2064, %v2063
          %v2079 = vpack.c.b16 %v2066, %v2065
          %v2080 = vpack.c.b16 %v2068, %v2067
          %v2081 = vpack.c.b16 %v2070, %v2069
          %v2082 = vpack.c.b16 %v2072, %v2071
          %v2083 = vpack.c.b16 %v2074, %v2073
          %v2084 = vpack.c.b16 %v2076, %v2075
          %2093 = vmatprep.subr.bf16.mxu0 0
          %2094 = vmatpush1.bf16.msra.mxu0 %v2084
          %2095 = vmatprep.subr.bf16.mxu0 0
          %2096 = vmatpush1.bf16.msra.mxu0 %v2083
          %2097 = vmatprep.subr.bf16.mxu0 0
          %2098 = vmatpush1.bf16.msra.mxu0 %v2082
          %2099 = vmatprep.subr.bf16.mxu0 0
          %2100 = vmatpush1.bf16.msra.mxu0 %v2081
          %2101 = vmatprep.subr.bf16.mxu0 0
          %2102 = vmatpush1.bf16.msra.mxu0 %v2080
          %2103 = vmatprep.subr.bf16.mxu0 0
          %2104 = vmatpush1.bf16.msra.mxu0 %v2079
          %2105 = vmatprep.subr.bf16.mxu0 0
          %2106 = vmatpush1.bf16.msra.mxu0 %v2078
          %2107 = vmatprep.subr.bf16.mxu0 0
          %2108 = vmatpush1.bf16.msra.mxu0 %v2077
          %2109 = vmatprep.subr.bf16.mxu0 0
          %2110 = vmatpush2.bf16.msra.mxu0 0
          %2111 = vmatprep.subr.bf16.mxu0 0
          %2112 = vmatpush2.bf16.msra.mxu0 0
          %2113 = vmatprep.subr.bf16.mxu0 0
          %2114 = vmatpush2.bf16.msra.mxu0 0
          %2115 = vmatprep.subr.bf16.mxu0 0
          %2116 = vmatpush2.bf16.msra.mxu0 0
          %2117 = vmatprep.subr.bf16.mxu0 0
          %2118 = vmatpush2.bf16.msra.mxu0 0
          %2119 = vmatprep.subr.bf16.mxu0 0
          %2120 = vmatpush2.bf16.msra.mxu0 0
          %2121 = vmatprep.subr.bf16.mxu0 0
          %2122 = vmatpush2.bf16.msra.mxu0 0
          %2123 = vmatprep.subr.bf16.mxu0 0
          %2124 = vmatpush2.bf16.msra.mxu0 0
          %2125 = vmatprep.mubr.bf16.mxu0 0
          %2126 = vmatmul.mubr.bf16.gmra.mxu0 %v1863
          %v2127 = vpop.f32.mrf.mxu0
          %v2128 = vadd.f32 %v2040, %v2127
          %v2129 = vpop.f32.mrf.mxu0
          %v2130 = vpop.f32.mrf.mxu0
          %v2131 = vpop.f32.mrf.mxu0
          %2132 = vdwg.mxu0
          %2133 = vst [vmem:[#allocation3] sm:$0xff] %v2128
          %v2134 = vsub.f32 %v2001, %v2128
          %v2135 = vld [vmem:[#allocation3] sm:$0x1]
          %v2136 = vlaneseq
          %v2137 = vshrl.u32 %v2136, 7
          %v2138 = vsub.s32 0, %v2137
          %v2139 = vrot.slane %v2135, %v2138
          %v2140 = vadd.f32 %v2134, %v2139
          %v2141 = vmax.f32 %v2140, 0.0
          %s2142 = sld [smem:[#allocation6]]
          %v2143 = vstv %s2142
          %vm2144 = vcmp.eq.s32.totalorder %v1122, %v2143
          %v2145 = vsel %vm2144, 1, 0
          %2146 = vset.pattern.permute.xlu0 0
          %2147 = vperm.xlu0 %2146, %v2145
          %v2148 = vpop.permute.xlu0 %2147
          %vm2149 = vcmp.eq.s32.totalorder %v2148, 1
          %v2150 = vsel %vm2149, %v2141, -1e+30
          %v2151 = vmax.f32 %v2150, -1e+30
          %v2152 = vld [vmem:[#allocation3 + $0x1] sm:$0x1]
          %v2153 = vlaneseq
          %v2154 = vshrl.u32 %v2153, 7
          %v2155 = vsub.s32 0, %v2154
          %v2156 = vrot.slane %v2152, %v2155
          %v2157 = vadd.f32 %v2134, %v2156
          %v2158 = vmax.f32 %v2157, 0.0
          %s2159 = sld [smem:[#allocation6 + $0x1]]
          %v2160 = vstv %s2159
          %vm2161 = vcmp.eq.s32.totalorder %v1122, %v2160
          %v2162 = vsel %vm2161, 1, 0
          %2163 = vset.pattern.permute.xlu0 0
          %2164 = vperm.xlu0 %2163, %v2162
          %v2165 = vpop.permute.xlu0 %2164
          %vm2166 = vcmp.eq.s32.totalorder %v2165, 1
          %v2167 = vsel %vm2166, %v2158, -1e+30
          %v2168 = vmax.f32 %v2151, %v2167
          %v2169 = vld [vmem:[#allocation3 + $0x2] sm:$0x1]
          %v2170 = vlaneseq
          %v2171 = vshrl.u32 %v2170, 7
          %v2172 = vsub.s32 0, %v2171
          %v2173 = vrot.slane %v2169, %v2172
          %v2174 = vadd.f32 %v2134, %v2173
          %v2175 = vmax.f32 %v2174, 0.0
          %s2176 = sld [smem:[#allocation6 + $0x2]]
          %v2177 = vstv %s2176
          %vm2178 = vcmp.eq.s32.totalorder %v1122, %v2177
          %v2179 = vsel %vm2178, 1, 0
          %2180 = vset.pattern.permute.xlu0 0
          %2181 = vperm.xlu0 %2180, %v2179
          %v2182 = vpop.permute.xlu0 %2181
          %vm2183 = vcmp.eq.s32.totalorder %v2182, 1
          %v2184 = vsel %vm2183, %v2175, -1e+30
          %v2185 = vmax.f32 %v2168, %v2184
          %v2186 = vld [vmem:[#allocation3 + $0x3] sm:$0x1]
          %v2187 = vlaneseq
          %v2188 = vshrl.u32 %v2187, 7
          %v2189 = vsub.s32 0, %v2188
          %v2190 = vrot.slane %v2186, %v2189
          %v2191 = vadd.f32 %v2134, %v2190
          %v2192 = vmax.f32 %v2191, 0.0
          %s2193 = sld [smem:[#allocation6 + $0x3]]
          %v2194 = vstv %s2193
          %vm2195 = vcmp.eq.s32.totalorder %v1122, %v2194
          %v2196 = vsel %vm2195, 1, 0
          %2197 = vset.pattern.permute.xlu0 0
          %2198 = vperm.xlu0 %2197, %v2196
          %v2199 = vpop.permute.xlu0 %2198
          %vm2200 = vcmp.eq.s32.totalorder %v2199, 1
          %v2201 = vsel %vm2200, %v2192, -1e+30
          %v2202 = vmax.f32 %v2185, %v2201
          %v2203 = vld [vmem:[#allocation3 + $0x4] sm:$0x1]
          %v2204 = vlaneseq
          %v2205 = vshrl.u32 %v2204, 7
          %v2206 = vsub.s32 0, %v2205
          %v2207 = vrot.slane %v2203, %v2206
          %v2208 = vadd.f32 %v2134, %v2207
          %v2209 = vmax.f32 %v2208, 0.0
          %s2210 = sld [smem:[#allocation6 + $0x4]]
          %v2211 = vstv %s2210
          %vm2212 = vcmp.eq.s32.totalorder %v1122, %v2211
          %v2213 = vsel %vm2212, 1, 0
          %2214 = vset.pattern.permute.xlu0 0
          %2215 = vperm.xlu0 %2214, %v2213
          %v2216 = vpop.permute.xlu0 %2215
          %vm2217 = vcmp.eq.s32.totalorder %v2216, 1
          %v2218 = vsel %vm2217, %v2209, -1e+30
          %v2219 = vmax.f32 %v2202, %v2218
          %v2220 = vld [vmem:[#allocation3 + $0x5] sm:$0x1]
          %v2221 = vlaneseq
          %v2222 = vshrl.u32 %v2221, 7
          %v2223 = vsub.s32 0, %v2222
          %v2224 = vrot.slane %v2220, %v2223
          %v2225 = vadd.f32 %v2134, %v2224
          %v2226 = vmax.f32 %v2225, 0.0
          %s2227 = sld [smem:[#allocation6 + $0x5]]
          %v2228 = vstv %s2227
          %vm2229 = vcmp.eq.s32.totalorder %v1122, %v2228
          %v2230 = vsel %vm2229, 1, 0
          %2231 = vset.pattern.permute.xlu0 0
          %2232 = vperm.xlu0 %2231, %v2230
          %v2233 = vpop.permute.xlu0 %2232
          %vm2234 = vcmp.eq.s32.totalorder %v2233, 1
          %v2235 = vsel %vm2234, %v2226, -1e+30
          %v2236 = vmax.f32 %v2219, %v2235
          %v2237 = vld [vmem:[#allocation3 + $0x6] sm:$0x1]
          %v2238 = vlaneseq
          %v2239 = vshrl.u32 %v2238, 7
          %v2240 = vsub.s32 0, %v2239
          %v2241 = vrot.slane %v2237, %v2240
          %v2242 = vadd.f32 %v2134, %v2241
          %v2243 = vmax.f32 %v2242, 0.0
          %s2244 = sld [smem:[#allocation6 + $0x6]]
          %v2245 = vstv %s2244
          %vm2246 = vcmp.eq.s32.totalorder %v1122, %v2245
          %v2247 = vsel %vm2246, 1, 0
          %2248 = vset.pattern.permute.xlu0 0
          %2249 = vperm.xlu0 %2248, %v2247
          %v2250 = vpop.permute.xlu0 %2249
          %vm2251 = vcmp.eq.s32.totalorder %v2250, 1
          %v2252 = vsel %vm2251, %v2243, -1e+30
          %v2253 = vmax.f32 %v2236, %v2252
          %v2254 = vld [vmem:[#allocation3 + $0x7] sm:$0x1]
          %v2255 = vlaneseq
          %v2256 = vshrl.u32 %v2255, 7
          %v2257 = vsub.s32 0, %v2256
          %v2258 = vrot.slane %v2254, %v2257
          %v2259 = vadd.f32 %v2134, %v2258
          %v2260 = vmax.f32 %v2259, 0.0
          %s2261 = sld [smem:[#allocation6 + $0x7]]
          %v2262 = vstv %s2261
          %vm2263 = vcmp.eq.s32.totalorder %v1122, %v2262
          %v2264 = vsel %vm2263, 1, 0
          %2265 = vset.pattern.permute.xlu0 0
          %2266 = vperm.xlu0 %2265, %v2264
          %v2267 = vpop.permute.xlu0 %2266
          %vm2268 = vcmp.eq.s32.totalorder %v2267, 1
          %v2269 = vsel %vm2268, %v2260, -1e+30
          %v2270 = vmax.f32 %v2253, %v2269
          %v2271 = vmax.f32 %v2270, 0.0
          %v2272 = vld [vmem:[#allocation22] sm:$0xf]
          %v2273 = vld [vmem:[#allocation22 + $0x4] sm:$0xf]
          %v2274 = vld [vmem:[#allocation22 + $0x8] sm:$0xf]
          %v2275 = vld [vmem:[#allocation22 + $0xc] sm:$0xf]
          %v2276 = vld [vmem:[#allocation22 + $0x10] sm:$0xf]
          %v2277 = vld [vmem:[#allocation22 + $0x14] sm:$0xf]
          %v2278 = vld [vmem:[#allocation22 + $0x18] sm:$0xf]
          %v2279 = vld [vmem:[#allocation22 + $0x1c] sm:$0xf]
          %v2280 = vld [vmem:[#allocation22 + $0x20] sm:$0xf]
          %v2281 = vld [vmem:[#allocation22 + $0x24] sm:$0xf]
          %v2282 = vld [vmem:[#allocation22 + $0x28] sm:$0xf]
          %v2283 = vld [vmem:[#allocation22 + $0x2c] sm:$0xf]
          %v2284 = vld [vmem:[#allocation22 + $0x30] sm:$0xf]
          %v2285 = vld [vmem:[#allocation22 + $0x34] sm:$0xf]
          %v2286 = vld [vmem:[#allocation22 + $0x38] sm:$0xf]
          %v2287 = vld [vmem:[#allocation22 + $0x3c] sm:$0xf]
          %v2288 = vld [vmem:[%s51] sm:$0xf]
          %v2289 = vld [vmem:[#allocation24] sm:$0xf]
          %v2290 = vld [vmem:[#allocation24 + $0x4] sm:$0xf]
          %v2291 = vld [vmem:[#allocation24 + $0x8] sm:$0xf]
          %v2292 = vld [vmem:[#allocation24 + $0xc] sm:$0xf]
          %v2293 = vld [vmem:[#allocation24 + $0x10] sm:$0xf]
          %v2294 = vld [vmem:[#allocation24 + $0x14] sm:$0xf]
          %v2295 = vld [vmem:[#allocation24 + $0x18] sm:$0xf]
          %v2296 = vld [vmem:[#allocation24 + $0x1c] sm:$0xf]
          %v2297 = vld [vmem:[#allocation24 + $0x20] sm:$0xf]
          %v2298 = vld [vmem:[#allocation24 + $0x24] sm:$0xf]
          %v2299 = vld [vmem:[#allocation24 + $0x28] sm:$0xf]
          %v2300 = vld [vmem:[#allocation24 + $0x2c] sm:$0xf]
          %v2301 = vld [vmem:[#allocation24 + $0x30] sm:$0xf]
          %v2302 = vld [vmem:[#allocation24 + $0x34] sm:$0xf]
          %v2303 = vld [vmem:[#allocation24 + $0x38] sm:$0xf]
          %v2304 = vld [vmem:[#allocation24 + $0x3c] sm:$0xf]
          %v2305 = vld [vmem:[%s55] sm:$0xf]
          %v2306 = vld [vmem:[%s57] sm:$0x1]
          %v2307 = vpack.c.bf16 %v2271, %v2271
          %v2309 = vand.u32 %v2288, %v1419
          %2311 = vmatprep.subr.bf16.mxu0 0
          %2312 = vmatpush1.bf16.msra.mxu0 0
          %2313 = vmatprep.subr.bf16.mxu0 0
          %2314 = vmatpush1.bf16.msra.mxu0 0
          %2315 = vmatprep.subr.bf16.mxu0 0
          %2316 = vmatpush1.bf16.msra.mxu0 0
          %2317 = vmatprep.subr.bf16.mxu0 0
          %2318 = vmatpush1.bf16.msra.mxu0 0
          %2319 = vmatprep.subr.bf16.mxu0 0
          %2320 = vmatpush1.bf16.msra.mxu0 0
          %2321 = vmatprep.subr.bf16.mxu0 0
          %2322 = vmatpush1.bf16.msra.mxu0 0
          %2323 = vmatprep.subr.bf16.mxu0 0
          %2324 = vmatpush1.bf16.msra.mxu0 0
          %2325 = vmatprep.subr.bf16.mxu0 0
          %2326 = vmatpush1.bf16.msra.mxu0 %v2309
          %2327 = vmatprep.subr.bf16.mxu0 0
          %2328 = vmatpush2.bf16.msra.mxu0 0
          %2329 = vmatprep.subr.bf16.mxu0 0
          %2330 = vmatpush2.bf16.msra.mxu0 0
          %2331 = vmatprep.subr.bf16.mxu0 0
          %2332 = vmatpush2.bf16.msra.mxu0 0
          %2333 = vmatprep.subr.bf16.mxu0 0
          %2334 = vmatpush2.bf16.msra.mxu0 0
          %2335 = vmatprep.subr.bf16.mxu0 0
          %2336 = vmatpush2.bf16.msra.mxu0 0
          %2337 = vmatprep.subr.bf16.mxu0 0
          %2338 = vmatpush2.bf16.msra.mxu0 0
          %2339 = vmatprep.subr.bf16.mxu0 0
          %2340 = vmatpush2.bf16.msra.mxu0 0
          %2341 = vmatprep.subr.bf16.mxu0 0
          %2342 = vmatpush2.bf16.msra.mxu0 0
          %2343 = vmatprep.mubr.bf16.mxu0 0
          %2344 = vmatmul.mubr.bf16.gmra.mxu0 %v1415
          %v2345 = vpop.f32.mrf.mxu0
          %v2346 = vadd.f32 0.0, %v2345
          %v2347 = vpop.f32.mrf.mxu0
          %v2348 = vpop.f32.mrf.mxu0
          %v2349 = vpop.f32.mrf.mxu0
          %2350 = vdwg.mxu0
          %v2367 = vunpack.c.l.b16 %v2272
          %v2368 = vunpack.c.l.b16 %v2273
          %v2369 = vunpack.c.l.b16 %v2274
          %v2370 = vunpack.c.l.b16 %v2275
          %v2371 = vunpack.c.l.b16 %v2276
          %v2372 = vunpack.c.l.b16 %v2277
          %v2373 = vunpack.c.l.b16 %v2278
          %v2374 = vunpack.c.l.b16 %v2279
          %v2375 = vunpack.c.l.b16 %v2280
          %v2376 = vunpack.c.l.b16 %v2281
          %v2377 = vunpack.c.l.b16 %v2282
          %v2378 = vunpack.c.l.b16 %v2283
          %v2379 = vunpack.c.l.b16 %v2284
          %v2380 = vunpack.c.l.b16 %v2285
          %v2381 = vunpack.c.l.b16 %v2286
          %v2382 = vunpack.c.l.b16 %v2287
          %v2383 = vpack.c.b16 %v2368, %v2367
          %v2384 = vpack.c.b16 %v2370, %v2369
          %v2385 = vpack.c.b16 %v2372, %v2371
          %v2386 = vpack.c.b16 %v2374, %v2373
          %v2387 = vpack.c.b16 %v2376, %v2375
          %v2388 = vpack.c.b16 %v2378, %v2377
          %v2389 = vpack.c.b16 %v2380, %v2379
          %v2390 = vpack.c.b16 %v2382, %v2381
          %2399 = vmatprep.subr.bf16.mxu0 0
          %2400 = vmatpush1.bf16.msra.mxu0 %v2390
          %2401 = vmatprep.subr.bf16.mxu0 0
          %2402 = vmatpush1.bf16.msra.mxu0 %v2389
          %2403 = vmatprep.subr.bf16.mxu0 0
          %2404 = vmatpush1.bf16.msra.mxu0 %v2388
          %2405 = vmatprep.subr.bf16.mxu0 0
          %2406 = vmatpush1.bf16.msra.mxu0 %v2387
          %2407 = vmatprep.subr.bf16.mxu0 0
          %2408 = vmatpush1.bf16.msra.mxu0 %v2386
          %2409 = vmatprep.subr.bf16.mxu0 0
          %2410 = vmatpush1.bf16.msra.mxu0 %v2385
          %2411 = vmatprep.subr.bf16.mxu0 0
          %2412 = vmatpush1.bf16.msra.mxu0 %v2384
          %2413 = vmatprep.subr.bf16.mxu0 0
          %2414 = vmatpush1.bf16.msra.mxu0 %v2383
          %2415 = vmatprep.subr.bf16.mxu0 0
          %2416 = vmatpush2.bf16.msra.mxu0 0
          %2417 = vmatprep.subr.bf16.mxu0 0
          %2418 = vmatpush2.bf16.msra.mxu0 0
          %2419 = vmatprep.subr.bf16.mxu0 0
          %2420 = vmatpush2.bf16.msra.mxu0 0
          %2421 = vmatprep.subr.bf16.mxu0 0
          %2422 = vmatpush2.bf16.msra.mxu0 0
          %2423 = vmatprep.subr.bf16.mxu0 0
          %2424 = vmatpush2.bf16.msra.mxu0 0
          %2425 = vmatprep.subr.bf16.mxu0 0
          %2426 = vmatpush2.bf16.msra.mxu0 0
          %2427 = vmatprep.subr.bf16.mxu0 0
          %2428 = vmatpush2.bf16.msra.mxu0 0
          %2429 = vmatprep.subr.bf16.mxu0 0
          %2430 = vmatpush2.bf16.msra.mxu0 0
          %2431 = vmatprep.mubr.bf16.mxu0 0
          %2432 = vmatmul.mubr.bf16.gmra.mxu0 %v2307
          %v2433 = vpop.f32.mrf.mxu0
          %v2434 = vadd.f32 %v2346, %v2433
          %v2435 = vpop.f32.mrf.mxu0
          %v2436 = vpop.f32.mrf.mxu0
          %v2437 = vpop.f32.mrf.mxu0
          %2438 = vdwg.mxu0
          %v2440 = vlaneseq
          %v2441 = vshrl.u32 %v2440, 7
          %v2442 = vsub.s32 0, %v2441
          %v2443 = vrot.slane %v2306, %v2442
          %v2445 = vadd.f32 %v2434, %v2443
          %v2447 = vand.u32 %v2305, %v1419
          %2449 = vmatprep.subr.bf16.mxu0 0
          %2450 = vmatpush1.bf16.msra.mxu0 0
          %2451 = vmatprep.subr.bf16.mxu0 0
          %2452 = vmatpush1.bf16.msra.mxu0 0
          %2453 = vmatprep.subr.bf16.mxu0 0
          %2454 = vmatpush1.bf16.msra.mxu0 0
          %2455 = vmatprep.subr.bf16.mxu0 0
          %2456 = vmatpush1.bf16.msra.mxu0 0
          %2457 = vmatprep.subr.bf16.mxu0 0
          %2458 = vmatpush1.bf16.msra.mxu0 0
          %2459 = vmatprep.subr.bf16.mxu0 0
          %2460 = vmatpush1.bf16.msra.mxu0 0
          %2461 = vmatprep.subr.bf16.mxu0 0
          %2462 = vmatpush1.bf16.msra.mxu0 0
          %2463 = vmatprep.subr.bf16.mxu0 0
          %2464 = vmatpush1.bf16.msra.mxu0 %v2447
          %2465 = vmatprep.subr.bf16.mxu0 0
          %2466 = vmatpush2.bf16.msra.mxu0 0
          %2467 = vmatprep.subr.bf16.mxu0 0
          %2468 = vmatpush2.bf16.msra.mxu0 0
          %2469 = vmatprep.subr.bf16.mxu0 0
          %2470 = vmatpush2.bf16.msra.mxu0 0
          %2471 = vmatprep.subr.bf16.mxu0 0
          %2472 = vmatpush2.bf16.msra.mxu0 0
          %2473 = vmatprep.subr.bf16.mxu0 0
          %2474 = vmatpush2.bf16.msra.mxu0 0
          %2475 = vmatprep.subr.bf16.mxu0 0
          %2476 = vmatpush2.bf16.msra.mxu0 0
          %2477 = vmatprep.subr.bf16.mxu0 0
          %2478 = vmatpush2.bf16.msra.mxu0 0
          %2479 = vmatprep.subr.bf16.mxu0 0
          %2480 = vmatpush2.bf16.msra.mxu0 0
          %2481 = vmatprep.mubr.bf16.mxu0 0
          %2482 = vmatmul.mubr.bf16.gmra.mxu0 %v1415
          %v2483 = vpop.f32.mrf.mxu0
          %v2484 = vadd.f32 0.0, %v2483
          %v2485 = vpop.f32.mrf.mxu0
          %v2486 = vpop.f32.mrf.mxu0
          %v2487 = vpop.f32.mrf.mxu0
          %2488 = vdwg.mxu0
          %v2505 = vunpack.c.l.b16 %v2289
          %v2506 = vunpack.c.l.b16 %v2290
          %v2507 = vunpack.c.l.b16 %v2291
          %v2508 = vunpack.c.l.b16 %v2292
          %v2509 = vunpack.c.l.b16 %v2293
          %v2510 = vunpack.c.l.b16 %v2294
          %v2511 = vunpack.c.l.b16 %v2295
          %v2512 = vunpack.c.l.b16 %v2296
          %v2513 = vunpack.c.l.b16 %v2297
          %v2514 = vunpack.c.l.b16 %v2298
          %v2515 = vunpack.c.l.b16 %v2299
          %v2516 = vunpack.c.l.b16 %v2300
          %v2517 = vunpack.c.l.b16 %v2301
          %v2518 = vunpack.c.l.b16 %v2302
          %v2519 = vunpack.c.l.b16 %v2303
          %v2520 = vunpack.c.l.b16 %v2304
          %v2521 = vpack.c.b16 %v2506, %v2505
          %v2522 = vpack.c.b16 %v2508, %v2507
          %v2523 = vpack.c.b16 %v2510, %v2509
          %v2524 = vpack.c.b16 %v2512, %v2511
          %v2525 = vpack.c.b16 %v2514, %v2513
          %v2526 = vpack.c.b16 %v2516, %v2515
          %v2527 = vpack.c.b16 %v2518, %v2517
          %v2528 = vpack.c.b16 %v2520, %v2519
          %2537 = vmatprep.subr.bf16.mxu0 0
          %2538 = vmatpush1.bf16.msra.mxu0 %v2528
          %2539 = vmatprep.subr.bf16.mxu0 0
          %2540 = vmatpush1.bf16.msra.mxu0 %v2527
          %2541 = vmatprep.subr.bf16.mxu0 0
          %2542 = vmatpush1.bf16.msra.mxu0 %v2526
          %2543 = vmatprep.subr.bf16.mxu0 0
          %2544 = vmatpush1.bf16.msra.mxu0 %v2525
          %2545 = vmatprep.subr.bf16.mxu0 0
          %2546 = vmatpush1.bf16.msra.mxu0 %v2524
          %2547 = vmatprep.subr.bf16.mxu0 0
          %2548 = vmatpush1.bf16.msra.mxu0 %v2523
          %2549 = vmatprep.subr.bf16.mxu0 0
          %2550 = vmatpush1.bf16.msra.mxu0 %v2522
          %2551 = vmatprep.subr.bf16.mxu0 0
          %2552 = vmatpush1.bf16.msra.mxu0 %v2521
          %2553 = vmatprep.subr.bf16.mxu0 0
          %2554 = vmatpush2.bf16.msra.mxu0 0
          %2555 = vmatprep.subr.bf16.mxu0 0
          %2556 = vmatpush2.bf16.msra.mxu0 0
          %2557 = vmatprep.subr.bf16.mxu0 0
          %2558 = vmatpush2.bf16.msra.mxu0 0
          %2559 = vmatprep.subr.bf16.mxu0 0
          %2560 = vmatpush2.bf16.msra.mxu0 0
          %2561 = vmatprep.subr.bf16.mxu0 0
          %2562 = vmatpush2.bf16.msra.mxu0 0
          %2563 = vmatprep.subr.bf16.mxu0 0
          %2564 = vmatpush2.bf16.msra.mxu0 0
          %2565 = vmatprep.subr.bf16.mxu0 0
          %2566 = vmatpush2.bf16.msra.mxu0 0
          %2567 = vmatprep.subr.bf16.mxu0 0
          %2568 = vmatpush2.bf16.msra.mxu0 0
          %2569 = vmatprep.mubr.bf16.mxu0 0
          %2570 = vmatmul.mubr.bf16.gmra.mxu0 %v2307
          %v2571 = vpop.f32.mrf.mxu0
          %v2572 = vadd.f32 %v2484, %v2571
          %v2573 = vpop.f32.mrf.mxu0
          %v2574 = vpop.f32.mrf.mxu0
          %v2575 = vpop.f32.mrf.mxu0
          %2576 = vdwg.mxu0
          %2577 = vst [vmem:[#allocation3] sm:$0xff] %v2572
          %v2578 = vsub.f32 %v2445, %v2572
          %v2579 = vld [vmem:[#allocation3] sm:$0x1]
          %v2580 = vlaneseq
          %v2581 = vshrl.u32 %v2580, 7
          %v2582 = vsub.s32 0, %v2581
          %v2583 = vrot.slane %v2579, %v2582
          %v2584 = vadd.f32 %v2578, %v2583
          %v2585 = vmax.f32 %v2584, 0.0
          %s2586 = sld [smem:[#allocation6]]
          %v2587 = vstv %s2586
          %vm2588 = vcmp.eq.s32.totalorder %v1122, %v2587
          %v2589 = vsel %vm2588, 1, 0
          %2590 = vset.pattern.permute.xlu0 0
          %2591 = vperm.xlu0 %2590, %v2589
          %v2592 = vpop.permute.xlu0 %2591
          %vm2593 = vcmp.eq.s32.totalorder %v2592, 1
          %v2594 = vsel %vm2593, %v2585, -1e+30
          %v2595 = vmax.f32 %v2594, -1e+30
          %v2596 = vld [vmem:[#allocation3 + $0x1] sm:$0x1]
          %v2597 = vlaneseq
          %v2598 = vshrl.u32 %v2597, 7
          %v2599 = vsub.s32 0, %v2598
          %v2600 = vrot.slane %v2596, %v2599
          %v2601 = vadd.f32 %v2578, %v2600
          %v2602 = vmax.f32 %v2601, 0.0
          %s2603 = sld [smem:[#allocation6 + $0x1]]
          %v2604 = vstv %s2603
          %vm2605 = vcmp.eq.s32.totalorder %v1122, %v2604
          %v2606 = vsel %vm2605, 1, 0
          %2607 = vset.pattern.permute.xlu0 0
          %2608 = vperm.xlu0 %2607, %v2606
          %v2609 = vpop.permute.xlu0 %2608
          %vm2610 = vcmp.eq.s32.totalorder %v2609, 1
          %v2611 = vsel %vm2610, %v2602, -1e+30
          %v2612 = vmax.f32 %v2595, %v2611
          %v2613 = vld [vmem:[#allocation3 + $0x2] sm:$0x1]
          %v2614 = vlaneseq
          %v2615 = vshrl.u32 %v2614, 7
          %v2616 = vsub.s32 0, %v2615
          %v2617 = vrot.slane %v2613, %v2616
          %v2618 = vadd.f32 %v2578, %v2617
          %v2619 = vmax.f32 %v2618, 0.0
          %s2620 = sld [smem:[#allocation6 + $0x2]]
          %v2621 = vstv %s2620
          %vm2622 = vcmp.eq.s32.totalorder %v1122, %v2621
          %v2623 = vsel %vm2622, 1, 0
          %2624 = vset.pattern.permute.xlu0 0
          %2625 = vperm.xlu0 %2624, %v2623
          %v2626 = vpop.permute.xlu0 %2625
          %vm2627 = vcmp.eq.s32.totalorder %v2626, 1
          %v2628 = vsel %vm2627, %v2619, -1e+30
          %v2629 = vmax.f32 %v2612, %v2628
          %v2630 = vld [vmem:[#allocation3 + $0x3] sm:$0x1]
          %v2631 = vlaneseq
          %v2632 = vshrl.u32 %v2631, 7
          %v2633 = vsub.s32 0, %v2632
          %v2634 = vrot.slane %v2630, %v2633
          %v2635 = vadd.f32 %v2578, %v2634
          %v2636 = vmax.f32 %v2635, 0.0
          %s2637 = sld [smem:[#allocation6 + $0x3]]
          %v2638 = vstv %s2637
          %vm2639 = vcmp.eq.s32.totalorder %v1122, %v2638
          %v2640 = vsel %vm2639, 1, 0
          %2641 = vset.pattern.permute.xlu0 0
          %2642 = vperm.xlu0 %2641, %v2640
          %v2643 = vpop.permute.xlu0 %2642
          %vm2644 = vcmp.eq.s32.totalorder %v2643, 1
          %v2645 = vsel %vm2644, %v2636, -1e+30
          %v2646 = vmax.f32 %v2629, %v2645
          %v2647 = vld [vmem:[#allocation3 + $0x4] sm:$0x1]
          %v2648 = vlaneseq
          %v2649 = vshrl.u32 %v2648, 7
          %v2650 = vsub.s32 0, %v2649
          %v2651 = vrot.slane %v2647, %v2650
          %v2652 = vadd.f32 %v2578, %v2651
          %v2653 = vmax.f32 %v2652, 0.0
          %s2654 = sld [smem:[#allocation6 + $0x4]]
          %v2655 = vstv %s2654
          %vm2656 = vcmp.eq.s32.totalorder %v1122, %v2655
          %v2657 = vsel %vm2656, 1, 0
          %2658 = vset.pattern.permute.xlu0 0
          %2659 = vperm.xlu0 %2658, %v2657
          %v2660 = vpop.permute.xlu0 %2659
          %vm2661 = vcmp.eq.s32.totalorder %v2660, 1
          %v2662 = vsel %vm2661, %v2653, -1e+30
          %v2663 = vmax.f32 %v2646, %v2662
          %v2664 = vld [vmem:[#allocation3 + $0x5] sm:$0x1]
          %v2665 = vlaneseq
          %v2666 = vshrl.u32 %v2665, 7
          %v2667 = vsub.s32 0, %v2666
          %v2668 = vrot.slane %v2664, %v2667
          %v2669 = vadd.f32 %v2578, %v2668
          %v2670 = vmax.f32 %v2669, 0.0
          %s2671 = sld [smem:[#allocation6 + $0x5]]
          %v2672 = vstv %s2671
          %vm2673 = vcmp.eq.s32.totalorder %v1122, %v2672
          %v2674 = vsel %vm2673, 1, 0
          %2675 = vset.pattern.permute.xlu0 0
          %2676 = vperm.xlu0 %2675, %v2674
          %v2677 = vpop.permute.xlu0 %2676
          %vm2678 = vcmp.eq.s32.totalorder %v2677, 1
          %v2679 = vsel %vm2678, %v2670, -1e+30
          %v2680 = vmax.f32 %v2663, %v2679
          %v2681 = vld [vmem:[#allocation3 + $0x6] sm:$0x1]
          %v2682 = vlaneseq
          %v2683 = vshrl.u32 %v2682, 7
          %v2684 = vsub.s32 0, %v2683
          %v2685 = vrot.slane %v2681, %v2684
          %v2686 = vadd.f32 %v2578, %v2685
          %v2687 = vmax.f32 %v2686, 0.0
          %s2688 = sld [smem:[#allocation6 + $0x6]]
          %v2689 = vstv %s2688
          %vm2690 = vcmp.eq.s32.totalorder %v1122, %v2689
          %v2691 = vsel %vm2690, 1, 0
          %2692 = vset.pattern.permute.xlu0 0
          %2693 = vperm.xlu0 %2692, %v2691
          %v2694 = vpop.permute.xlu0 %2693
          %vm2695 = vcmp.eq.s32.totalorder %v2694, 1
          %v2696 = vsel %vm2695, %v2687, -1e+30
          %v2697 = vmax.f32 %v2680, %v2696
          %v2698 = vld [vmem:[#allocation3 + $0x7] sm:$0x1]
          %v2699 = vlaneseq
          %v2700 = vshrl.u32 %v2699, 7
          %v2701 = vsub.s32 0, %v2700
          %v2702 = vrot.slane %v2698, %v2701
          %v2703 = vadd.f32 %v2578, %v2702
          %v2704 = vmax.f32 %v2703, 0.0
          %s2705 = sld [smem:[#allocation6 + $0x7]]
          %v2706 = vstv %s2705
          %vm2707 = vcmp.eq.s32.totalorder %v1122, %v2706
          %v2708 = vsel %vm2707, 1, 0
          %2709 = vset.pattern.permute.xlu0 0
          %2710 = vperm.xlu0 %2709, %v2708
          %v2711 = vpop.permute.xlu0 %2710
          %vm2712 = vcmp.eq.s32.totalorder %v2711, 1
          %v2713 = vsel %vm2712, %v2704, -1e+30
          %v2714 = vmax.f32 %v2697, %v2713
          %2715 = vst [vmem:[#allocation3] sm:$0xff] %v2714
          %s2716 = sld [smem:[#allocation7]]
          %s2717 = scalar_lea.vmem [#allocation3], %s2716
          %v2718 = vld [vmem:[%s2717] sm:$0x1]
          %2719 = vst [vmem:[#allocation4] sm:$0x1] %v2718
          %s2720 = sld [smem:[#allocation7 + $0x1]]
          %s2721 = scalar_lea.vmem [#allocation3], %s2720
          %v2722 = vld [vmem:[%s2721] sm:$0x1]
          %2723 = vst [vmem:[#allocation4 + $0x1] sm:$0x1] %v2722
          %s2724 = sld [smem:[#allocation7 + $0x2]]
          %s2725 = scalar_lea.vmem [#allocation3], %s2724
          %v2726 = vld [vmem:[%s2725] sm:$0x1]
          %2727 = vst [vmem:[#allocation4 + $0x2] sm:$0x1] %v2726
          %v2728 = vld [vmem:[#allocation4] sm:$0x7]
          %v2729 = vld [vmem:[#allocation25] sm:$0xf]
          %v2730 = vld [vmem:[#allocation25 + $0x4] sm:$0xf]
          %v2731 = vld [vmem:[#allocation25 + $0x8] sm:$0xf]
          %v2732 = vld [vmem:[#allocation25 + $0xc] sm:$0xf]
          %v2733 = vld [vmem:[#allocation25 + $0x10] sm:$0xf]
          %v2734 = vld [vmem:[#allocation25 + $0x14] sm:$0xf]
          %v2735 = vld [vmem:[#allocation25 + $0x18] sm:$0xf]
          %v2736 = vld [vmem:[#allocation25 + $0x1c] sm:$0xf]
          %v2737 = vld [vmem:[#allocation25 + $0x20] sm:$0xf]
          %v2738 = vld [vmem:[#allocation25 + $0x24] sm:$0xf]
          %v2739 = vld [vmem:[#allocation25 + $0x28] sm:$0xf]
          %v2740 = vld [vmem:[#allocation25 + $0x2c] sm:$0xf]
          %v2741 = vld [vmem:[#allocation25 + $0x30] sm:$0xf]
          %v2742 = vld [vmem:[#allocation25 + $0x34] sm:$0xf]
          %v2743 = vld [vmem:[#allocation25 + $0x38] sm:$0xf]
          %v2744 = vld [vmem:[#allocation25 + $0x3c] sm:$0xf]
          %v2745 = vpack.c.bf16 %v2728, %v2728
          %v2762 = vunpack.c.l.b16 %v2729
          %v2763 = vunpack.c.l.b16 %v2730
          %v2764 = vunpack.c.l.b16 %v2731
          %v2765 = vunpack.c.l.b16 %v2732
          %v2766 = vunpack.c.l.b16 %v2733
          %v2767 = vunpack.c.l.b16 %v2734
          %v2768 = vunpack.c.l.b16 %v2735
          %v2769 = vunpack.c.l.b16 %v2736
          %v2770 = vunpack.c.l.b16 %v2737
          %v2771 = vunpack.c.l.b16 %v2738
          %v2772 = vunpack.c.l.b16 %v2739
          %v2773 = vunpack.c.l.b16 %v2740
          %v2774 = vunpack.c.l.b16 %v2741
          %v2775 = vunpack.c.l.b16 %v2742
          %v2776 = vunpack.c.l.b16 %v2743
          %v2777 = vunpack.c.l.b16 %v2744
          %v2778 = vpack.c.b16 %v2763, %v2762
          %v2779 = vpack.c.b16 %v2765, %v2764
          %v2780 = vpack.c.b16 %v2767, %v2766
          %v2781 = vpack.c.b16 %v2769, %v2768
          %v2782 = vpack.c.b16 %v2771, %v2770
          %v2783 = vpack.c.b16 %v2773, %v2772
          %v2784 = vpack.c.b16 %v2775, %v2774
          %v2785 = vpack.c.b16 %v2777, %v2776
          %2794 = vmatprep.subr.bf16.mxu0 0
          %2795 = vmatpush1.bf16.msra.mxu0 %v2785
          %2796 = vmatprep.subr.bf16.mxu0 0
          %2797 = vmatpush1.bf16.msra.mxu0 %v2784
          %2798 = vmatprep.subr.bf16.mxu0 0
          %2799 = vmatpush1.bf16.msra.mxu0 %v2783
          %2800 = vmatprep.subr.bf16.mxu0 0
          %2801 = vmatpush1.bf16.msra.mxu0 %v2782
          %2802 = vmatprep.subr.bf16.mxu0 0
          %2803 = vmatpush1.bf16.msra.mxu0 %v2781
          %2804 = vmatprep.subr.bf16.mxu0 0
          %2805 = vmatpush1.bf16.msra.mxu0 %v2780
          %2806 = vmatprep.subr.bf16.mxu0 0
          %2807 = vmatpush1.bf16.msra.mxu0 %v2779
          %2808 = vmatprep.subr.bf16.mxu0 0
          %2809 = vmatpush1.bf16.msra.mxu0 %v2778
          %2810 = vmatprep.subr.bf16.mxu0 0
          %2811 = vmatpush2.bf16.msra.mxu0 0
          %2812 = vmatprep.subr.bf16.mxu0 0
          %2813 = vmatpush2.bf16.msra.mxu0 0
          %2814 = vmatprep.subr.bf16.mxu0 0
          %2815 = vmatpush2.bf16.msra.mxu0 0
          %2816 = vmatprep.subr.bf16.mxu0 0
          %2817 = vmatpush2.bf16.msra.mxu0 0
          %2818 = vmatprep.subr.bf16.mxu0 0
          %2819 = vmatpush2.bf16.msra.mxu0 0
          %2820 = vmatprep.subr.bf16.mxu0 0
          %2821 = vmatpush2.bf16.msra.mxu0 0
          %2822 = vmatprep.subr.bf16.mxu0 0
          %2823 = vmatpush2.bf16.msra.mxu0 0
          %2824 = vmatprep.subr.bf16.mxu0 0
          %2825 = vmatpush2.bf16.msra.mxu0 0
          %2826 = vmatprep.mubr.bf16.mxu0 0
          %2827 = vmatmul.mubr.bf16.gmra.mxu0 %v2745
          %v2828 = vpop.f32.mrf.mxu0
          %v2829 = vadd.f32 0.0, %v2828
          %v2830 = vpop.f32.mrf.mxu0
          %v2831 = vpop.f32.mrf.mxu0
          %v2832 = vpop.f32.mrf.mxu0
          %2833 = vdwg.mxu0
          %v2834 = vld [vmem:[#allocation10] sm:$0x7]
          %v2835 = vmul.f32 %v2829, %v2834
          %v2836 = vsel %vm1051, %v2835, 0.0
          %2837 = vadd.xlane.f32.xlu0 %v2836
          %v2838 = vpop.xlane.xlu0 %2837
          %vm2839 = vcmask 2048
          %2840 = vst.msk [vmem:[%s61] sm:$0x7] %vm2839, %v2838
        $region184: #{tpu_custom_call.1} parent=131 // pred_fallthru
          _
        // Predicated region
        $region185: #{tpu_custom_call.1} parent=131 // pred_check
          %p2841 = pneg %p691
        $region186: #{tpu_custom_call.1} parent=131 // pred_check_branch
          %2843 = sbr.rel (%p2841) target = $region188
        $region187: #{tpu_custom_call.1} parent=131 // pred_region
          _
        $region188: #{tpu_custom_call.1} parent=131 // pred_fallthru
          _
        // Predicated region
        $region189: #{tpu_custom_call.1} parent=131 // pred_check
          %p2844 = pneg %p691
        $region190: #{tpu_custom_call.1} parent=131 // pred_check_branch
          %2846 = sbr.rel (%p2844) target = $region192
        $region191: #{tpu_custom_call.1} parent=131 // pred_region
          _
        $region192: #{tpu_custom_call.1} parent=131 // pred_fallthru
          _
      $region132: #{tpu_custom_call.1} parent=5 // pred_fallthru
        _
      %p2847 = scmp.le.s32.totalorder 2, %s80
      // Predicated region
      $region193: #{tpu_custom_call.1} parent=5 // pred_check
        %p2848 = pneg %p2847
      $region194: #{tpu_custom_call.1} parent=5 // pred_check_branch
        %2850 = sbr.rel (%p2848) target = $region196
      $region195: #{tpu_custom_call.1} parent=5 // pred_region
        %s2851 = ssub.s32 %s80, 2
      $region196: #{tpu_custom_call.1} parent=5 // pred_fallthru
        _
    $region6: #{tpu_custom_call.1} parent=1 // loop_footer
      %s84 = sadd.s32 1, %s80
    $region7: #{tpu_custom_call.1} parent=1 // loop_footer_branch
      %79 = sbr.rel target = $region3
    $region8: #{tpu_custom_call.1} parent=1 // loop_exit
      _
    %2852 = vsyncpa [#allocation9], 1
    %s2853 = scalar_lea.sflag [#allocation9], 1
    %2854 = vsyncpa %s2853, 1
    %2855 = vsyncpa [#allocation11], 1
    %2856 = vsyncpa [#allocation14], 1
    %2857 = vsyncpa [#allocation17], 1
    %2858 = vsyncpa [#allocation20], 1
    %2859 = vsyncpa [#allocation23], 1
    %2860 = vsyncpa [#allocation26], 1

</llo_original>
